<compile_context>
chip_gen: v7x
topology: tpu7x:2x2x1
jax: 0.10.0
libtpu: 0.0.40
codegen_flags: <defaults>
</compile_context>

<pallas_src>
import functools
import math

import jax
import jax.numpy as jnp
from jax.experimental import pallas as pl
from jax.experimental.pallas import tpu as pltpu

# bf16 matmuls (f32 accumulation) ~2x MXU rate on v6e/v7x, more on v5e.
# Set to jnp.float32 to match the PyTorch reference numerics more closely.
MATMUL_DTYPE = jnp.bfloat16


def _round_up(x, m):
    return (x + m - 1) // m * m


# ----------------------------------------------------------------------------
# Fused kernel: all LSTM layers (one time loop) + mixture-density heads.
# ----------------------------------------------------------------------------
def _fused_kernel(lens_ref, x_ref, wx_ref, wrec_ref, b_ref, wh_ref, bh_ref,
                  slab_ref, hn_ref, cn_ref,
                  xproj_sc, out_sc, h_sc, c_sc,
                  *, num_layers, chunk_t, hidden_p, num_mixtures, slab_cols):
    # lens_ref: (Bt, 1)  int32     valid lengths (0 for padded batch rows)
    # x_ref:    (Tc, Bt, D)        time-major input chunk
    # wx_ref:   (L, D, 4Hp)        input (X-part) weights, gate blocks [i|f|g|o]
    # wrec_ref: (L, 2Hp, 4Hp)      [h_prev | prev_layer_out] recurrent weights
    # b_ref:    (L, 1, 4Hp)        b_ih + b_hh
    # wh_ref:   (L, Hp, S)         fused head weights, cols [e|ro|pi|mu|sigma|pad]
    # bh_ref:   (1, S)             fused head bias
    # slab_ref: (Tc, Bt, S)        activated head outputs
    # hn_ref/cn_ref: (L, Bt, Hp)   final states
    L, Tc, Hp, M, S = num_layers, chunk_t, hidden_p, num_mixtures, slab_cols
    Bt = x_ref.shape[1]
    D = x_ref.shape[2]
    ti = pl.program_id(1)

    @pl.when(ti == 0)
    def _():
        h_sc[...] = jnp.zeros_like(h_sc)
        c_sc[...] = jnp.zeros_like(c_sc)

    # Hoisted input projection: one tall matmul per layer for the whole chunk
    # (off the serial critical path of the recurrence).
    x_flat = x_ref[...].reshape(Tc * Bt, D).astype(MATMUL_DTYPE)
    for l in range(L):
        xproj_sc[l] = (jnp.dot(x_flat, wx_ref[l],
                               preferred_element_type=jnp.float32)
                       + b_ref[l])                               # (Tc*Bt, 4Hp)

    lens_v = lens_ref[...]                                       # (Bt, 1) int32
    t0 = ti * Tc

    # ---- serial recurrence over the chunk -----------------------------------
    @pl.loop(0, Tc)
    def _(t):
        valid = lens_v > (t0 + t)                                # (Bt, 1) bool
        row0 = pl.multiple_of(t * Bt, Bt)
        prev_out = None
        for l in range(L):
            h_prev = h_sc[l]                                     # (Bt, Hp)
            c_prev = c_sc[l]
            gates = xproj_sc.at[l][pl.ds(row0, Bt), :]           # (Bt, 4Hp)
            if l == 0:
                gates = gates + jnp.dot(h_prev.astype(MATMUL_DTYPE),
                                        wrec_ref[0, :Hp, :],
                                        preferred_element_type=jnp.float32)
            else:
                # Fuse h@W_hh and prev_out@W_ih_h into one K=2Hp matmul.
                rec_in = jnp.concatenate([h_prev, prev_out], axis=-1)
                gates = gates + jnp.dot(rec_in.astype(MATMUL_DTYPE),
                                        wrec_ref[l],
                                        preferred_element_type=jnp.float32)
            # gate slices are 128-lane aligned (Hp is a multiple of 128)
            i_g = jax.nn.sigmoid(gates[:, 0 * Hp:1 * Hp])
            f_g = jax.nn.sigmoid(gates[:, 1 * Hp:2 * Hp])
            g_g = jnp.tanh(gates[:, 2 * Hp:3 * Hp])
            o_g = jax.nn.sigmoid(gates[:, 3 * Hp:4 * Hp])

            c_new = f_g * c_prev + i_g * g_g
            h_new = o_g * jnp.tanh(c_new)

            # Packed-seq semantics via selects (freeze state / zero output
            # past each sequence's length).
            h_sc[l] = jnp.where(valid, h_new, h_prev)
            c_sc[l] = jnp.where(valid, c_new, c_prev)
            o_t = jnp.where(valid, h_new, 0.0)
            out_sc.at[l][pl.ds(row0, Bt), :] = o_t               # (Bt, Hp) store
            prev_out = o_t

    # ---- fused mixture-density heads on the chunk's outputs -----------------
    # z = sum_l out_l @ W_head_l + b  (no concat/transposes needed)
    z = None
    for l in range(L):
        part = jnp.dot(out_sc[l].astype(MATMUL_DTYPE), wh_ref[l],
                       preferred_element_type=jnp.float32)       # (Tc*Bt, S)
        z = part if z is None else z + part
    z = z + bh_ref[...]

    col = jax.lax.broadcasted_iota(jnp.int32, z.shape, 1)
    c_ro, c_pi, c_mu, c_sg, c_end = 1, 1 + M, 1 + 2 * M, 1 + 4 * M, 1 + 6 * M
    pi_mask = (col >= c_pi) & (col < c_mu)
    sg_mask = (col >= c_sg) & (col < c_end)
    mx = jnp.max(jnp.where(pi_mask, z, jnp.float32(-1e30)),
                 axis=-1, keepdims=True)
    # One EUP exp pass serves both the softmax numerator and sigma = exp(z);
    # other lanes are clamped to 0 so no non-finite intermediates appear.
    arg = jnp.where(pi_mask, z - mx, jnp.where(sg_mask, z, 0.0))
    ex = jnp.exp(arg)
    denom = jnp.sum(jnp.where(pi_mask, ex, 0.0), axis=-1, keepdims=True)
    inv = pl.reciprocal(denom, approx=True)

    out = jnp.where(col < c_ro, jax.nn.sigmoid(z),
          jnp.where(col < c_pi, jnp.tanh(z),
          jnp.where(pi_mask, ex * inv,
          jnp.where(col < c_sg, z,
          jnp.where(sg_mask, ex, 0.0)))))
    slab_ref[...] = out.reshape(Tc, Bt, S)

    # Rewritten every chunk; last chunk's write is the final state (do not
    # guard with pl.when or the resident block would go stale).
    hn_ref[...] = h_sc[...]
    cn_ref[...] = c_sc[...]


def fused_lstm_heads(x_tm, lens_col, wx, wrec, bias, w_head, b_head, *,
                     num_layers, hidden_p, num_mixtures, chunk_t, batch_tile,
                     vmem_limit):
    T, Bp, D = x_tm.shape
    L, Hp = num_layers, hidden_p
    S = w_head.shape[-1]
    Tc, Bt = chunk_t, batch_tile
    nb, nt = Bp // Bt, T // Tc

    kernel = functools.partial(_fused_kernel, num_layers=L, chunk_t=Tc,
                               hidden_p=Hp, num_mixtures=num_mixtures,
                               slab_cols=S)

    wbytes = sum(int(a.size) * jnp.dtype(a.dtype).itemsize
                 for a in (wx, wrec, bias, w_head, b_head))
    cost = pl.CostEstimate(
        flops=int(2 * T * Bp * (L * D * 4 * Hp + L * 2 * Hp * 4 * Hp
                                + L * Hp * S)),
        transcendentals=int(T * Bp * (5 * L * Hp + 3 * S)),
        bytes_accessed=int(4 * (x_tm.size + T * Bp * S + 4 * L * Bp * Hp)
                           + wbytes))

    out_shapes = (jax.ShapeDtypeStruct((T, Bp, S), jnp.float32),
                  jax.ShapeDtypeStruct((L, Bp, Hp), jnp.float32),
                  jax.ShapeDtypeStruct((L, Bp, Hp), jnp.float32))

    def build(single_buffer_weights):
        if single_buffer_weights:
            # Whole weight arrays resident in VMEM: one copy, no per-step
            # double-buffering (they are constant across the grid).
            w_specs = [pl.BlockSpec(memory_space=pltpu.MemorySpace.VMEM)
                       for _ in range(5)]
        else:
            def cspec(arr):
                n = arr.ndim
                return pl.BlockSpec(arr.shape, lambda bi, ti, n=n: (0,) * n)
            w_specs = [cspec(a) for a in (wx, wrec, bias, w_head, b_head)]

        grid_spec = pltpu.PrefetchScalarGridSpec(
            num_scalar_prefetch=0,
            grid=(nb, nt),
            in_specs=[pl.BlockSpec((Bt, 1), lambda bi, ti: (bi, 0)),     # lens
                      pl.BlockSpec((Tc, Bt, D),
                                   lambda bi, ti: (ti, bi, 0))]          # x
                     + w_specs,
            out_specs=(
                pl.BlockSpec((Tc, Bt, S), lambda bi, ti: (ti, bi, 0)),   # slab
                pl.BlockSpec((L, Bt, Hp), lambda bi, ti: (0, bi, 0)),    # h_n
                pl.BlockSpec((L, Bt, Hp), lambda bi, ti: (0, bi, 0)),    # c_n
            ),
            scratch_shapes=[
                pltpu.VMEM((L, Tc * Bt, 4 * Hp), jnp.float32),   # hoisted x-proj
                pltpu.VMEM((L, Tc * Bt, Hp), jnp.float32),       # layer outputs
                pltpu.VMEM((L, Bt, Hp), jnp.float32),            # h state
                pltpu.VMEM((L, Bt, Hp), jnp.float32),            # c state
            ])
        return pl.pallas_call(
            kernel,
            out_shape=out_shapes,
            grid_spec=grid_spec,
            compiler_params=pltpu.CompilerParams(
                dimension_semantics=("parallel", "arbitrary"),
                vmem_limit_bytes=int(vmem_limit)),
            cost_estimate=cost)

    args = (lens_col, x_tm, wx, wrec, bias, w_head, b_head)
    try:
        return build(True)(*args)
    except Exception:
        # Fallback: constant-index blocked weight specs (double-buffered).
        return build(False)(*args)


# ----------------------------------------------------------------------------
# Tile / VMEM-budget derivation (per generation via get_tpu_info)
# ----------------------------------------------------------------------------
def _derive_tiles(B, t_max, D, L, Hp, slab_cols):
    try:
        cap = int(pltpu.get_tpu_info().vmem_capacity_bytes)
    except Exception:
        cap = 64 * 1024 * 1024                       # v7x-safe fallback
    vmem_limit = min(cap * 3 // 4, 100 * 1024 * 1024)
    budget = vmem_limit * 85 // 100

    Bp = _round_up(B, 8)
    Bt = min(Bp, 256)                                # MXU M dim: grow with batch
    while Bp % Bt != 0:
        Bt -= 8

    wsz = jnp.dtype(MATMUL_DTYPE).itemsize
    fixed = (wsz * (L * D * 4 * Hp + L * 2 * Hp * 4 * Hp + L * Hp * slab_cols)
             + 4 * (L * 4 * Hp + slab_cols)          # f32 biases
             + 4 * 2 * L * Bt * Hp                   # h / c scratch
             + 4 * 2 * 2 * L * Bt * Hp)              # hn / cn out blocks (x2)
    per_t = (4 * Bt * L * (4 * Hp + Hp)              # xproj + layer-out scratch
             + 2 * 4 * Bt * (D + slab_cols))         # x + slab blocks (x2 buf)
    tc_fit = max((budget - fixed) // max(per_t, 1), 1)
    Tc = int(max(1, min(128, tc_fit)))
    Tc = min(Tc, _round_up(max(t_max, 1), 8))
    return Bp, Bt, Tc, int(vmem_limit)


# ----------------------------------------------------------------------------
# Parameter construction (PyTorch-style uniform init, packed/padded layouts)
# ----------------------------------------------------------------------------
def _init_lstm_layer(key, in_dim, H):
    bound = 1.0 / math.sqrt(H)
    k1, k2, k3, k4 = jax.random.split(key, 4)
    w_ih = jax.random.uniform(k1, (4 * H, in_dim), jnp.float32, -bound, bound)
    w_hh = jax.random.uniform(k2, (4 * H, H), jnp.float32, -bound, bound)
    b_ih = jax.random.uniform(k3, (4 * H,), jnp.float32, -bound, bound)
    b_hh = jax.random.uniform(k4, (4 * H,), jnp.float32, -bound, bound)
    return w_ih, w_hh, b_ih + b_hh


def _init_linear(key, in_dim, out_dim):
    bound = 1.0 / math.sqrt(in_dim)
    k1, k2 = jax.random.split(key)
    w = jax.random.uniform(k1, (out_dim, in_dim), jnp.float32, -bound, bound)
    b = jax.random.uniform(k2, (out_dim,), jnp.float32, -bound, bound)
    return w, b


def _pad_gate_cols(w, H, Hp):
    # w: (rows, 4H) -> (rows, 4Hp); each gate block [i|f|g|o] padded H -> Hp.
    rows = w.shape[0]
    out = jnp.zeros((rows, 4 * Hp), jnp.float32)
    for k in range(4):
        out = out.at[:, k * Hp:k * Hp + H].set(w[:, k * H:(k + 1) * H])
    return out


def make_params(key, inp_dim, hidden, num_layers, num_mixtures,
                hidden_p, slab_cols):
    H, Hp, L, M, D, S = hidden, hidden_p, num_layers, num_mixtures, inp_dim, slab_cols
    keys = jax.random.split(key, num_layers + 5)

    wx_l, wrec_l, b_l = [], [], []
    for l in range(L):
        in_dim = D if l == 0 else D + H
        w_ih, w_hh, b = _init_lstm_layer(keys[l], in_dim, H)
        wx = _pad_gate_cols(w_ih[:, :D].T, H, Hp)                  # (D, 4Hp)
        # Combined recurrent weight: rows [0:Hp] act on h_prev (W_hh), rows
        # [Hp:2Hp] on the previous layer's output (the X-concat part of W_ih).
        wrec = jnp.zeros((2 * Hp, 4 * Hp), jnp.float32)
        wrec = wrec.at[:H].set(_pad_gate_cols(w_hh.T, H, Hp))
        if l > 0:
            wrec = wrec.at[Hp:Hp + H].set(_pad_gate_cols(w_ih[:, D:].T, H, Hp))
        bias = _pad_gate_cols(b.reshape(1, 4 * H), H, Hp)          # (1, 4Hp)
        wx_l.append(wx); wrec_l.append(wrec); b_l.append(bias)

    # Fused head weights, per layer: (Hp, S), cols [e | ro | pi | mu | sigma | pad].
    # Padded hidden rows are zero and the LSTM output there is exactly zero, so
    # the math is identical to the reference Linear layers on cat(outputs).
    lh = L * H
    we, be = _init_linear(keys[L + 0], lh, 1)
    wro, bro = _init_linear(keys[L + 1], lh, M)
    wpi, bpi = _init_linear(keys[L + 2], lh, M)
    wmu, bmu = _init_linear(keys[L + 3], lh, 2 * M)
    ws, bs = _init_linear(keys[L + 4], lh, 2 * M)
    w_cat = jnp.concatenate([we, wro, wpi, wmu, ws], axis=0).T     # (L*H, 1+6M)
    b_cat = jnp.concatenate([be, bro, bpi, bmu, bs], axis=0)       # (1+6M,)

    w_head = jnp.zeros((L, Hp, S), jnp.float32)
    for l in range(L):
        w_head = w_head.at[l, :H, :1 + 6 * M].set(w_cat[l * H:(l + 1) * H])
    b_head = jnp.zeros((1, S), jnp.float32).at[0, :1 + 6 * M].set(b_cat)

    return {"wx": jnp.stack(wx_l).astype(MATMUL_DTYPE),
            "wrec": jnp.stack(wrec_l).astype(MATMUL_DTYPE),
            "bias": jnp.stack(b_l),
            "w_head": w_head.astype(MATMUL_DTYPE),
            "b_head": b_head}


# ----------------------------------------------------------------------------
# Full forward pass (glue in plain JAX, hot path in the fused Pallas kernel)
# ----------------------------------------------------------------------------
def model_forward(X, lens, params, hidden, num_layers, num_mixtures, hidden_p):
    B, _, D = X.shape
    L, H, Hp, M = num_layers, hidden, hidden_p, num_mixtures
    S = params["w_head"].shape[-1]

    # lens.sort(0, descending=True); X = X[perm_idx]  (reference keeps sorted order)
    order = jnp.argsort(-lens)
    lens_s = lens[order].astype(jnp.int32)
    Xs = X[order].astype(jnp.float32)

    # pad_packed_sequence pads only up to the longest valid length.
    # TODO(synk): t_max must be concrete; pass it statically when jitting.
    t_max = int(jnp.max(lens_s))
    Xs = Xs[:, :t_max]

    Bp, Bt, Tc, vmem_limit = _derive_tiles(B, t_max, D, L, Hp, S)
    Tp = _round_up(t_max, Tc)

    x_pad = jnp.zeros((Bp, Tp, D), jnp.float32).at[:B, :t_max].set(Xs)
    lens_pad = jnp.zeros((Bp, 1), jnp.int32).at[:B, 0].set(lens_s)
    x_tm = jnp.transpose(x_pad, (1, 0, 2))                        # (Tp, Bp, D)

    slab_tm, h_n, c_n = fused_lstm_heads(
        x_tm, lens_pad, params["wx"], params["wrec"], params["bias"],
        params["w_head"], params["b_head"],
        num_layers=L, hidden_p=Hp, num_mixtures=M,
        chunk_t=Tc, batch_tile=Bt, vmem_limit=vmem_limit)

    # Only the narrow (128-wide) activated slab leaves the kernel; transpose it
    # (cheap) instead of the full (T, B, L*Hp) hidden-state tensor.
    slab = jnp.transpose(slab_tm, (1, 0, 2))[:B, :t_max]           # (B, t, S)

    e = slab[..., 0:1]
    ro = slab[..., 1:1 + M]
    pi = slab[..., 1 + M:1 + 2 * M]
    mu = slab[..., 1 + 2 * M:1 + 4 * M]
    sigma = slab[..., 1 + 4 * M:1 + 6 * M]

    final_hc = [(h_n[l, :B, :H][None], c_n[l, :B, :H][None]) for l in range(L)]
    return e, ro, pi, mu, sigma, final_hc


# ----------------------------------------------------------------------------
if __name__ == "__main__":
    B, T, INP_DIM, HIDDEN, NUM_LAYERS, NUM_MIX = 4, 8, 3, 32, 2, 20
    HIDDEN_P = _round_up(HIDDEN, 128)            # lane-aligned hidden size
    SLAB = _round_up(1 + 6 * NUM_MIX, 128)       # fused head output width

    root = jax.random.PRNGKey(0)
    k_x, k_p = jax.random.split(root)

    X = jax.random.normal(k_x, (B, T, INP_DIM), dtype=jnp.float32)
    lens = jnp.array([5, 8, 3, 7], dtype=jnp.int32)   # max == T

    params = make_params(k_p, INP_DIM, HIDDEN, NUM_LAYERS, NUM_MIX,
                         hidden_p=HIDDEN_P, slab_cols=SLAB)

    e, ro, pi, mu, sigma, final_hc = model_forward(
        X, lens, params, HIDDEN, NUM_LAYERS, NUM_MIX, hidden_p=HIDDEN_P)

    jax.block_until_ready((e, ro, pi, mu, sigma,
                           [t for hc in final_hc for t in hc]))

    assert e.shape == (B, T, 1)
    assert ro.shape == (B, T, NUM_MIX)
    assert pi.shape == (B, T, NUM_MIX)
    assert mu.shape == (B, T, 2 * NUM_MIX)
    assert sigma.shape == (B, T, 2 * NUM_MIX)
    assert final_hc[0][0].shape == (1, B, HIDDEN)

    # Sanity checks on the fused-head activations (tolerance accounts for the
    # approximate EUP reciprocal used for the softmax denominator).
    assert bool(jnp.all(jnp.isfinite(mu)))
    assert bool(jnp.abs(jnp.sum(pi[0, 0]) - 1.0) < 5e-3)
    assert bool(jnp.all(sigma > 0.0))
    assert bool(jnp.all((e > 0.0) & (e < 1.0)))

    print("KERNEL_OK")
</pallas_src>

<mosaic_0001>
module attributes {stable_mosaic.version = 11 : i64} {
  func.func @_fused_kernel(%arg0: i32, %arg1: i32, %arg2: memref<8x1xi32, #tpu.memory_space<vmem>>, %arg3: memref<8x8x3xf32, #tpu.memory_space<vmem>>, %arg4: memref<2x3x512xbf16, #tpu.memory_space<vmem>>, %arg5: memref<2x256x512xbf16, #tpu.memory_space<vmem>>, %arg6: memref<2x1x512xf32, #tpu.memory_space<vmem>>, %arg7: memref<2x128x128xbf16, #tpu.memory_space<vmem>>, %arg8: memref<1x128xf32, #tpu.memory_space<vmem>>, %arg9: memref<8x8x128xf32, #tpu.memory_space<vmem>>, %arg10: memref<2x8x128xf32, #tpu.memory_space<vmem>>, %arg11: memref<2x8x128xf32, #tpu.memory_space<vmem>>, %arg12: memref<2x64x512xf32, #tpu.memory_space<vmem>>, %arg13: memref<2x64x128xf32, #tpu.memory_space<vmem>>, %arg14: memref<2x8x128xf32, #tpu.memory_space<vmem>>, %arg15: memref<2x8x128xf32, #tpu.memory_space<vmem>>) attributes {dimension_semantics = [#tpu.dimension_semantics<parallel>, #tpu.dimension_semantics<arbitrary>], iteration_bounds = array<i64: 1, 1>, scalar_prefetch = 0 : i64, scratch_operands = 4 : i64, tpu.core_type = #tpu.core_type<tc>, window_params = [{transform_indices = @transform_0, window_bounds = array<i64: 8, 1>}, {transform_indices = @transform_1, window_bounds = array<i64: 8, 8, 3>}, {pipeline_mode = #tpu.pipeline_mode<synchronous>, transform_indices = @transform_2, window_bounds = array<i64: 2, 3, 512>}, {pipeline_mode = #tpu.pipeline_mode<synchronous>, transform_indices = @transform_3, window_bounds = array<i64: 2, 256, 512>}, {pipeline_mode = #tpu.pipeline_mode<synchronous>, transform_indices = @transform_4, window_bounds = array<i64: 2, 1, 512>}, {pipeline_mode = #tpu.pipeline_mode<synchronous>, transform_indices = @transform_5, window_bounds = array<i64: 2, 128, 128>}, {pipeline_mode = #tpu.pipeline_mode<synchronous>, transform_indices = @transform_6, window_bounds = array<i64: 1, 128>}, {transform_indices = @transform_7, window_bounds = array<i64: 8, 8, 128>}, {transform_indices = @transform_8, window_bounds = array<i64: 2, 8, 128>}, {transform_indices = @transform_9, window_bounds = array<i64: 2, 8, 128>}]} {
    %c0_i32 = arith.constant 0 : i32
    %0 = arith.cmpi eq, %arg1, %c0_i32 : i32
    %1 = arith.extui %0 : i1 to i32
    %c0_i32_0 = arith.constant 0 : i32
    %2 = arith.cmpi ne, %1, %c0_i32_0 : i32
    scf.if %2 {
      %cst_67 = arith.constant 0.000000e+00 : f32
      %97 = vector.broadcast %cst_67 : f32 to vector<2x8x128xf32>
      %c0_68 = arith.constant 0 : index
      %c0_69 = arith.constant 0 : index
      %c0_70 = arith.constant 0 : index
      %98 = vector.load %arg14[%c0_68, %c0_69, %c0_70] : memref<2x8x128xf32, #tpu.memory_space<vmem>>, vector<2x8x128xf32>
      tpu.vector_store %arg14[%c0_68, %c0_69, %c0_70], %97 {strides = array<i32>} : memref<2x8x128xf32, #tpu.memory_space<vmem>>, vector<2x8x128xf32>,
      %cst_71 = arith.constant 0.000000e+00 : f32
      %99 = vector.broadcast %cst_71 : f32 to vector<2x8x128xf32>
      %c0_72 = arith.constant 0 : index
      %c0_73 = arith.constant 0 : index
      %c0_74 = arith.constant 0 : index
      %100 = vector.load %arg15[%c0_72, %c0_73, %c0_74] : memref<2x8x128xf32, #tpu.memory_space<vmem>>, vector<2x8x128xf32>
      tpu.vector_store %arg15[%c0_72, %c0_73, %c0_74], %99 {strides = array<i32>} : memref<2x8x128xf32, #tpu.memory_space<vmem>>, vector<2x8x128xf32>,
    } else {
    }
    %c0 = arith.constant 0 : index
    %c0_1 = arith.constant 0 : index
    %c0_2 = arith.constant 0 : index
    %3 = vector.load %arg3[%c0, %c0_1, %c0_2] : memref<8x8x3xf32, #tpu.memory_space<vmem>>, vector<8x8x3xf32>
    %4 = vector.shape_cast %3 : vector<8x8x3xf32> to vector<64x3xf32>
    %5 = arith.truncf %4 : vector<64x3xf32> to vector<64x3xbf16>
    %c0_3 = arith.constant 0 : index
    %c0_4 = arith.constant 0 : index
    %c0_5 = arith.constant 0 : index
    %6 = vector.load %arg4[%c0_3, %c0_4, %c0_5] : memref<2x3x512xbf16, #tpu.memory_space<vmem>>, vector<1x3x512xbf16>
    %7 = vector.shape_cast %6 : vector<1x3x512xbf16> to vector<3x512xbf16>
    %cst = arith.constant dense<0.000000e+00> : vector<64x512xf32>
    %8 = tpu.matmul %5, %7, %cst {dimension_numbers = #tpu.dot_dimension_numbers<[1], [0], [0], [1], [0, 0, 1, 1], [], []>} : vector<64x3xbf16>, vector<3x512xbf16>, vector<64x512xf32> -> vector<64x512xf32>
    %c0_6 = arith.constant 0 : index
    %c0_7 = arith.constant 0 : index
    %c0_8 = arith.constant 0 : index
    %9 = vector.load %arg6[%c0_6, %c0_7, %c0_8] : memref<2x1x512xf32, #tpu.memory_space<vmem>>, vector<1x1x512xf32>
    %10 = vector.shape_cast %9 : vector<1x1x512xf32> to vector<1x512xf32>
    %11 = vector.broadcast %10 : vector<1x512xf32> to vector<64x512xf32>
    %12 = arith.addf %8, %11 : vector<64x512xf32>
    %c0_9 = arith.constant 0 : index
    %c0_10 = arith.constant 0 : index
    %c0_11 = arith.constant 0 : index
    %13 = vector.load %arg12[%c0_9, %c0_10, %c0_11] : memref<2x64x512xf32, #tpu.memory_space<vmem>>, vector<1x64x512xf32>
    %14 = vector.shape_cast %13 : vector<1x64x512xf32> to vector<64x512xf32>
    %15 = vector.shape_cast %12 : vector<64x512xf32> to vector<1x64x512xf32>
    tpu.vector_store %arg12[%c0_9, %c0_10, %c0_11], %15 {strides = array<i32>} : memref<2x64x512xf32, #tpu.memory_space<vmem>>, vector<1x64x512xf32>,
    %c1 = arith.constant 1 : index
    %c0_12 = arith.constant 0 : index
    %c0_13 = arith.constant 0 : index
    %16 = vector.load %arg4[%c1, %c0_12, %c0_13] : memref<2x3x512xbf16, #tpu.memory_space<vmem>>, vector<1x3x512xbf16>
    %17 = vector.shape_cast %16 : vector<1x3x512xbf16> to vector<3x512xbf16>
    %cst_14 = arith.constant dense<0.000000e+00> : vector<64x512xf32>
    %18 = tpu.matmul %5, %17, %cst_14 {dimension_numbers = #tpu.dot_dimension_numbers<[1], [0], [0], [1], [0, 0, 1, 1], [], []>} : vector<64x3xbf16>, vector<3x512xbf16>, vector<64x512xf32> -> vector<64x512xf32>
    %c1_15 = arith.constant 1 : index
    %c0_16 = arith.constant 0 : index
    %c0_17 = arith.constant 0 : index
    %19 = vector.load %arg6[%c1_15, %c0_16, %c0_17] : memref<2x1x512xf32, #tpu.memory_space<vmem>>, vector<1x1x512xf32>
    %20 = vector.shape_cast %19 : vector<1x1x512xf32> to vector<1x512xf32>
    %21 = vector.broadcast %20 : vector<1x512xf32> to vector<64x512xf32>
    %22 = arith.addf %18, %21 : vector<64x512xf32>
    %c1_18 = arith.constant 1 : index
    %c0_19 = arith.constant 0 : index
    %c0_20 = arith.constant 0 : index
    %23 = vector.load %arg12[%c1_18, %c0_19, %c0_20] : memref<2x64x512xf32, #tpu.memory_space<vmem>>, vector<1x64x512xf32>
    %24 = vector.shape_cast %23 : vector<1x64x512xf32> to vector<64x512xf32>
    %25 = vector.shape_cast %22 : vector<64x512xf32> to vector<1x64x512xf32>
    tpu.vector_store %arg12[%c1_18, %c0_19, %c0_20], %25 {strides = array<i32>} : memref<2x64x512xf32, #tpu.memory_space<vmem>>, vector<1x64x512xf32>,
    %c0_21 = arith.constant 0 : index
    %c0_22 = arith.constant 0 : index
    %26 = vector.load %arg2[%c0_21, %c0_22] : memref<8x1xi32, #tpu.memory_space<vmem>>, vector<8x1xi32>
    %c8_i32 = arith.constant 8 : i32
    %27 = arith.muli %arg1, %c8_i32 : i32
    %c0_i32_23 = arith.constant 0 : i32
    %c8_i32_24 = arith.constant 8 : i32
    %28 = arith.addi %c0_i32_23, %c8_i32_24 : i32
    %c1_i32 = arith.constant 1 : i32
    scf.for %arg16 = %c0_i32_23 to %28 step %c1_i32  : i32 {
      %c1_i32_67 = arith.constant 1 : i32
      %97 = arith.muli %arg16, %c1_i32_67 : i32
      %c0_i32_68 = arith.constant 0 : i32
      %98 = arith.addi %c0_i32_68, %97 : i32
      %99 = arith.addi %27, %98 : i32
      %100 = vector.broadcast %99 : i32 to vector<8x1xi32>
      %101 = arith.cmpi sgt, %26, %100 : vector<8x1xi32>
      %c8_i32_69 = arith.constant 8 : i32
      %102 = arith.muli %98, %c8_i32_69 : i32
      %103 = tpu.assume_multiple %102, 8 : i32
      %c0_70 = arith.constant 0 : index
      %c0_71 = arith.constant 0 : index
      %c0_72 = arith.constant 0 : index
      %104 = vector.load %arg14[%c0_70, %c0_71, %c0_72] : memref<2x8x128xf32, #tpu.memory_space<vmem>>, vector<1x8x128xf32>
      %105 = vector.shape_cast %104 : vector<1x8x128xf32> to vector<8x128xf32>
      %c0_73 = arith.constant 0 : index
      %c0_74 = arith.constant 0 : index
      %c0_75 = arith.constant 0 : index
      %106 = vector.load %arg15[%c0_73, %c0_74, %c0_75] : memref<2x8x128xf32, #tpu.memory_space<vmem>>, vector<1x8x128xf32>
      %107 = vector.shape_cast %106 : vector<1x8x128xf32> to vector<8x128xf32>
      %c0_i32_76 = arith.constant 0 : i32
      %c0_i32_77 = arith.constant 0 : i32
      %c0_i32_78 = arith.constant 0 : i32
      %108 = tpu.memref_slice %arg12[%c0_i32_76, %c0_i32_77, %c0_i32_78] : memref<2x64x512xf32, #tpu.memory_space<vmem>> -> memref<1x64x512xf32, #tpu.memory_space<vmem>>
      %109 = tpu.memref_squeeze %108 : memref<1x64x512xf32, #tpu.memory_space<vmem>> -> memref<64x512xf32, #tpu.memory_space<vmem>>
      %110 = arith.index_cast %103 : i32 to index
      %c0_79 = arith.constant 0 : index
      %111 = vector.load %109[%110, %c0_79] : memref<64x512xf32, #tpu.memory_space<vmem>>, vector<8x512xf32>
      %112 = arith.truncf %105 : vector<8x128xf32> to vector<8x128xbf16>
      %c0_80 = arith.constant 0 : index
      %c0_81 = arith.constant 0 : index
      %c0_82 = arith.constant 0 : index
      %113 = vector.load %arg5[%c0_80, %c0_81, %c0_82] : memref<2x256x512xbf16, #tpu.memory_space<vmem>>, vector<1x128x512xbf16>
      %114 = vector.shape_cast %113 : vector<1x128x512xbf16> to vector<128x512xbf16>
      %cst_83 = arith.constant dense<0.000000e+00> : vector<8x512xf32>
      %115 = tpu.matmul %112, %114, %cst_83 {dimension_numbers = #tpu.dot_dimension_numbers<[1], [0], [0], [1], [0, 0, 1, 1], [], []>} : vector<8x128xbf16>, vector<128x512xbf16>, vector<8x512xf32> -> vector<8x512xf32>
      %116 = arith.addf %111, %115 : vector<8x512xf32>
      %117 = vector.extract_strided_slice %116 {offsets = [0, 0], sizes = [8, 128], strides = [1, 1]} : vector<8x512xf32> to vector<8x128xf32>
      %118 = arith.negf %117 : vector<8x128xf32>
      %119 = math.exp %118 : vector<8x128xf32>
      %cst_84 = arith.constant 1.000000e+00 : f32
      %120 = vector.broadcast %cst_84 : f32 to vector<8x128xf32>
      %121 = arith.addf %120, %119 : vector<8x128xf32>
      %122 = arith.divf %120, %121 : vector<8x128xf32>
      %123 = vector.extract_strided_slice %116 {offsets = [0, 128], sizes = [8, 128], strides = [1, 1]} : vector<8x512xf32> to vector<8x128xf32>
      %124 = arith.negf %123 : vector<8x128xf32>
      %125 = math.exp %124 : vector<8x128xf32>
      %cst_85 = arith.constant 1.000000e+00 : f32
      %126 = vector.broadcast %cst_85 : f32 to vector<8x128xf32>
      %127 = arith.addf %126, %125 : vector<8x128xf32>
      %128 = arith.divf %126, %127 : vector<8x128xf32>
      %129 = vector.extract_strided_slice %116 {offsets = [0, 256], sizes = [8, 128], strides = [1, 1]} : vector<8x512xf32> to vector<8x128xf32>
      %130 = math.tanh %129 : vector<8x128xf32>
      %131 = vector.extract_strided_slice %116 {offsets = [0, 384], sizes = [8, 128], strides = [1, 1]} : vector<8x512xf32> to vector<8x128xf32>
      %132 = arith.negf %131 : vector<8x128xf32>
      %133 = math.exp %132 : vector<8x128xf32>
      %cst_86 = arith.constant 1.000000e+00 : f32
      %134 = vector.broadcast %cst_86 : f32 to vector<8x128xf32>
      %135 = arith.addf %134, %133 : vector<8x128xf32>
      %136 = arith.divf %134, %135 : vector<8x128xf32>
      %137 = arith.mulf %128, %107 : vector<8x128xf32>
      %138 = arith.mulf %122, %130 : vector<8x128xf32>
      %139 = arith.addf %137, %138 : vector<8x128xf32>
      %140 = math.tanh %139 : vector<8x128xf32>
      %141 = arith.mulf %136, %140 : vector<8x128xf32>
      %142 = vector.shape_cast %101 : vector<8x1xi1> to vector<8x1xi1>
      %143 = vector.broadcast %142 : vector<8x1xi1> to vector<8x128xi1>
      %144 = arith.select %143, %141, %105 : vector<8x128xi1>, vector<8x128xf32>
      %c0_87 = arith.constant 0 : index
      %c0_88 = arith.constant 0 : index
      %c0_89 = arith.constant 0 : index
      %145 = vector.load %arg14[%c0_87, %c0_88, %c0_89] : memref<2x8x128xf32, #tpu.memory_space<vmem>>, vector<1x8x128xf32>
      %146 = vector.shape_cast %145 : vector<1x8x128xf32> to vector<8x128xf32>
      %147 = vector.shape_cast %144 : vector<8x128xf32> to vector<1x8x128xf32>
      tpu.vector_store %arg14[%c0_87, %c0_88, %c0_89], %147 {strides = array<i32>} : memref<2x8x128xf32, #tpu.memory_space<vmem>>, vector<1x8x128xf32>,
      %148 = vector.shape_cast %101 : vector<8x1xi1> to vector<8x1xi1>
      %149 = vector.broadcast %148 : vector<8x1xi1> to vector<8x128xi1>
      %150 = arith.select %149, %139, %107 : vector<8x128xi1>, vector<8x128xf32>
      %c0_90 = arith.constant 0 : index
      %c0_91 = arith.constant 0 : index
      %c0_92 = arith.constant 0 : index
      %151 = vector.load %arg15[%c0_90, %c0_91, %c0_92] : memref<2x8x128xf32, #tpu.memory_space<vmem>>, vector<1x8x128xf32>
      %152 = vector.shape_cast %151 : vector<1x8x128xf32> to vector<8x128xf32>
      %153 = vector.shape_cast %150 : vector<8x128xf32> to vector<1x8x128xf32>
      tpu.vector_store %arg15[%c0_90, %c0_91, %c0_92], %153 {strides = array<i32>} : memref<2x8x128xf32, #tpu.memory_space<vmem>>, vector<1x8x128xf32>,
      %cst_93 = arith.constant 0.000000e+00 : f32
      %154 = vector.shape_cast %101 : vector<8x1xi1> to vector<8x1xi1>
      %155 = vector.broadcast %154 : vector<8x1xi1> to vector<8x128xi1>
      %156 = vector.broadcast %cst_93 : f32 to vector<8x128xf32>
      %157 = arith.select %155, %141, %156 : vector<8x128xi1>, vector<8x128xf32>
      %c0_i32_94 = arith.constant 0 : i32
      %c0_i32_95 = arith.constant 0 : i32
      %c0_i32_96 = arith.constant 0 : i32
      %158 = tpu.memref_slice %arg13[%c0_i32_94, %c0_i32_95, %c0_i32_96] : memref<2x64x128xf32, #tpu.memory_space<vmem>> -> memref<1x64x128xf32, #tpu.memory_space<vmem>>
      %159 = tpu.memref_squeeze %158 : memref<1x64x128xf32, #tpu.memory_space<vmem>> -> memref<64x128xf32, #tpu.memory_space<vmem>>
      %160 = arith.index_cast %103 : i32 to index
      %c0_97 = arith.constant 0 : index
      %161 = vector.load %159[%160, %c0_97] : memref<64x128xf32, #tpu.memory_space<vmem>>, vector<8x128xf32>
      tpu.vector_store %159[%160, %c0_97], %157 {strides = array<i32>} : memref<64x128xf32, #tpu.memory_space<vmem>>, vector<8x128xf32>,
      %c1_98 = arith.constant 1 : index
      %c0_99 = arith.constant 0 : index
      %c0_100 = arith.constant 0 : index
      %162 = vector.load %arg14[%c1_98, %c0_99, %c0_100] : memref<2x8x128xf32, #tpu.memory_space<vmem>>, vector<1x8x128xf32>
      %163 = vector.shape_cast %162 : vector<1x8x128xf32> to vector<8x128xf32>
      %c1_101 = arith.constant 1 : index
      %c0_102 = arith.constant 0 : index
      %c0_103 = arith.constant 0 : index
      %164 = vector.load %arg15[%c1_101, %c0_102, %c0_103] : memref<2x8x128xf32, #tpu.memory_space<vmem>>, vector<1x8x128xf32>
      %165 = vector.shape_cast %164 : vector<1x8x128xf32> to vector<8x128xf32>
      %c1_i32_104 = arith.constant 1 : i32
      %c0_i32_105 = arith.constant 0 : i32
      %c0_i32_106 = arith.constant 0 : i32
      %166 = tpu.memref_slice %arg12[%c1_i32_104, %c0_i32_105, %c0_i32_106] : memref<2x64x512xf32, #tpu.memory_space<vmem>> -> memref<1x64x512xf32, #tpu.memory_space<vmem>>
      %167 = tpu.memref_squeeze %166 : memref<1x64x512xf32, #tpu.memory_space<vmem>> -> memref<64x512xf32, #tpu.memory_space<vmem>>
      %168 = arith.index_cast %103 : i32 to index
      %c0_107 = arith.constant 0 : index
      %169 = vector.load %167[%168, %c0_107] : memref<64x512xf32, #tpu.memory_space<vmem>>, vector<8x512xf32>
      %170 = tpu.concatenate %163, %157 in 1 : vector<8x128xf32>, vector<8x128xf32> -> vector<8x256xf32>
      %171 = arith.truncf %170 : vector<8x256xf32> to vector<8x256xbf16>
      %c1_108 = arith.constant 1 : index
      %c0_109 = arith.constant 0 : index
      %c0_110 = arith.constant 0 : index
      %172 = vector.load %arg5[%c1_108, %c0_109, %c0_110] : memref<2x256x512xbf16, #tpu.memory_space<vmem>>, vector<1x256x512xbf16>
      %173 = vector.shape_cast %172 : vector<1x256x512xbf16> to vector<256x512xbf16>
      %cst_111 = arith.constant dense<0.000000e+00> : vector<8x512xf32>
      %174 = tpu.matmul %171, %173, %cst_111 {dimension_numbers = #tpu.dot_dimension_numbers<[1], [0], [0], [1], [0, 0, 1, 1], [], []>} : vector<8x256xbf16>, vector<256x512xbf16>, vector<8x512xf32> -> vector<8x512xf32>
      %175 = arith.addf %169, %174 : vector<8x512xf32>
      %176 = vector.extract_strided_slice %175 {offsets = [0, 0], sizes = [8, 128], strides = [1, 1]} : vector<8x512xf32> to vector<8x128xf32>
      %177 = arith.negf %176 : vector<8x128xf32>
      %178 = math.exp %177 : vector<8x128xf32>
      %cst_112 = arith.constant 1.000000e+00 : f32
      %179 = vector.broadcast %cst_112 : f32 to vector<8x128xf32>
      %180 = arith.addf %179, %178 : vector<8x128xf32>
      %181 = arith.divf %179, %180 : vector<8x128xf32>
      %182 = vector.extract_strided_slice %175 {offsets = [0, 128], sizes = [8, 128], strides = [1, 1]} : vector<8x512xf32> to vector<8x128xf32>
      %183 = arith.negf %182 : vector<8x128xf32>
      %184 = math.exp %183 : vector<8x128xf32>
      %cst_113 = arith.constant 1.000000e+00 : f32
      %185 = vector.broadcast %cst_113 : f32 to vector<8x128xf32>
      %186 = arith.addf %185, %184 : vector<8x128xf32>
      %187 = arith.divf %185, %186 : vector<8x128xf32>
      %188 = vector.extract_strided_slice %175 {offsets = [0, 256], sizes = [8, 128], strides = [1, 1]} : vector<8x512xf32> to vector<8x128xf32>
      %189 = math.tanh %188 : vector<8x128xf32>
      %190 = vector.extract_strided_slice %175 {offsets = [0, 384], sizes = [8, 128], strides = [1, 1]} : vector<8x512xf32> to vector<8x128xf32>
      %191 = arith.negf %190 : vector<8x128xf32>
      %192 = math.exp %191 : vector<8x128xf32>
      %cst_114 = arith.constant 1.000000e+00 : f32
      %193 = vector.broadcast %cst_114 : f32 to vector<8x128xf32>
      %194 = arith.addf %193, %192 : vector<8x128xf32>
      %195 = arith.divf %193, %194 : vector<8x128xf32>
      %196 = arith.mulf %187, %165 : vector<8x128xf32>
      %197 = arith.mulf %181, %189 : vector<8x128xf32>
      %198 = arith.addf %196, %197 : vector<8x128xf32>
      %199 = math.tanh %198 : vector<8x128xf32>
      %200 = arith.mulf %195, %199 : vector<8x128xf32>
      %201 = vector.shape_cast %101 : vector<8x1xi1> to vector<8x1xi1>
      %202 = vector.broadcast %201 : vector<8x1xi1> to vector<8x128xi1>
      %203 = arith.select %202, %200, %163 : vector<8x128xi1>, vector<8x128xf32>
      %c1_115 = arith.constant 1 : index
      %c0_116 = arith.constant 0 : index
      %c0_117 = arith.constant 0 : index
      %204 = vector.load %arg14[%c1_115, %c0_116, %c0_117] : memref<2x8x128xf32, #tpu.memory_space<vmem>>, vector<1x8x128xf32>
      %205 = vector.shape_cast %204 : vector<1x8x128xf32> to vector<8x128xf32>
      %206 = vector.shape_cast %203 : vector<8x128xf32> to vector<1x8x128xf32>
      tpu.vector_store %arg14[%c1_115, %c0_116, %c0_117], %206 {strides = array<i32>} : memref<2x8x128xf32, #tpu.memory_space<vmem>>, vector<1x8x128xf32>,
      %207 = vector.shape_cast %101 : vector<8x1xi1> to vector<8x1xi1>
      %208 = vector.broadcast %207 : vector<8x1xi1> to vector<8x128xi1>
      %209 = arith.select %208, %198, %165 : vector<8x128xi1>, vector<8x128xf32>
      %c1_118 = arith.constant 1 : index
      %c0_119 = arith.constant 0 : index
      %c0_120 = arith.constant 0 : index
      %210 = vector.load %arg15[%c1_118, %c0_119, %c0_120] : memref<2x8x128xf32, #tpu.memory_space<vmem>>, vector<1x8x128xf32>
      %211 = vector.shape_cast %210 : vector<1x8x128xf32> to vector<8x128xf32>
      %212 = vector.shape_cast %209 : vector<8x128xf32> to vector<1x8x128xf32>
      tpu.vector_store %arg15[%c1_118, %c0_119, %c0_120], %212 {strides = array<i32>} : memref<2x8x128xf32, #tpu.memory_space<vmem>>, vector<1x8x128xf32>,
      %cst_121 = arith.constant 0.000000e+00 : f32
      %213 = vector.shape_cast %101 : vector<8x1xi1> to vector<8x1xi1>
      %214 = vector.broadcast %213 : vector<8x1xi1> to vector<8x128xi1>
      %215 = vector.broadcast %cst_121 : f32 to vector<8x128xf32>
      %216 = arith.select %214, %200, %215 : vector<8x128xi1>, vector<8x128xf32>
      %c1_i32_122 = arith.constant 1 : i32
      %c0_i32_123 = arith.constant 0 : i32
      %c0_i32_124 = arith.constant 0 : i32
      %217 = tpu.memref_slice %arg13[%c1_i32_122, %c0_i32_123, %c0_i32_124] : memref<2x64x128xf32, #tpu.memory_space<vmem>> -> memref<1x64x128xf32, #tpu.memory_space<vmem>>
      %218 = tpu.memref_squeeze %217 : memref<1x64x128xf32, #tpu.memory_space<vmem>> -> memref<64x128xf32, #tpu.memory_space<vmem>>
      %219 = arith.index_cast %103 : i32 to index
      %c0_125 = arith.constant 0 : index
      %220 = vector.load %218[%219, %c0_125] : memref<64x128xf32, #tpu.memory_space<vmem>>, vector<8x128xf32>
      tpu.vector_store %218[%219, %c0_125], %216 {strides = array<i32>} : memref<64x128xf32, #tpu.memory_space<vmem>>, vector<8x128xf32>,
    }
    %c8_i32_25 = arith.constant 8 : i32
    %c0_26 = arith.constant 0 : index
    %c0_27 = arith.constant 0 : index
    %c0_28 = arith.constant 0 : index
    %29 = vector.load %arg13[%c0_26, %c0_27, %c0_28] : memref<2x64x128xf32, #tpu.memory_space<vmem>>, vector<1x64x128xf32>
    %30 = vector.shape_cast %29 : vector<1x64x128xf32> to vector<64x128xf32>
    %31 = arith.truncf %30 : vector<64x128xf32> to vector<64x128xbf16>
    %c0_29 = arith.constant 0 : index
    %c0_30 = arith.constant 0 : index
    %c0_31 = arith.constant 0 : index
    %32 = vector.load %arg7[%c0_29, %c0_30, %c0_31] : memref<2x128x128xbf16, #tpu.memory_space<vmem>>, vector<1x128x128xbf16>
    %33 = vector.shape_cast %32 : vector<1x128x128xbf16> to vector<128x128xbf16>
    %cst_32 = arith.constant dense<0.000000e+00> : vector<64x128xf32>
    %34 = tpu.matmul %31, %33, %cst_32 {dimension_numbers = #tpu.dot_dimension_numbers<[1], [0], [0], [1], [0, 0, 1, 1], [], []>} : vector<64x128xbf16>, vector<128x128xbf16>, vector<64x128xf32> -> vector<64x128xf32>
    %c1_33 = arith.constant 1 : index
    %c0_34 = arith.constant 0 : index
    %c0_35 = arith.constant 0 : index
    %35 = vector.load %arg13[%c1_33, %c0_34, %c0_35] : memref<2x64x128xf32, #tpu.memory_space<vmem>>, vector<1x64x128xf32>
    %36 = vector.shape_cast %35 : vector<1x64x128xf32> to vector<64x128xf32>
    %37 = arith.truncf %36 : vector<64x128xf32> to vector<64x128xbf16>
    %c1_36 = arith.constant 1 : index
    %c0_37 = arith.constant 0 : index
    %c0_38 = arith.constant 0 : index
    %38 = vector.load %arg7[%c1_36, %c0_37, %c0_38] : memref<2x128x128xbf16, #tpu.memory_space<vmem>>, vector<1x128x128xbf16>
    %39 = vector.shape_cast %38 : vector<1x128x128xbf16> to vector<128x128xbf16>
    %cst_39 = arith.constant dense<0.000000e+00> : vector<64x128xf32>
    %40 = tpu.matmul %37, %39, %cst_39 {dimension_numbers = #tpu.dot_dimension_numbers<[1], [0], [0], [1], [0, 0, 1, 1], [], []>} : vector<64x128xbf16>, vector<128x128xbf16>, vector<64x128xf32> -> vector<64x128xf32>
    %41 = arith.addf %34, %40 : vector<64x128xf32>
    %c0_40 = arith.constant 0 : index
    %c0_41 = arith.constant 0 : index
    %42 = vector.load %arg8[%c0_40, %c0_41] : memref<1x128xf32, #tpu.memory_space<vmem>>, vector<1x128xf32>
    %43 = vector.broadcast %42 : vector<1x128xf32> to vector<64x128xf32>
    %44 = arith.addf %41, %43 : vector<64x128xf32>
    %45 = tpu.iota {dimensions = array<i32: 1>} : vector<64x128xi32>
    %c21_i32 = arith.constant 21 : i32
    %46 = vector.broadcast %c21_i32 : i32 to vector<64x128xi32>
    %47 = arith.cmpi sge, %45, %46 : vector<64x128xi32>
    %c41_i32 = arith.constant 41 : i32
    %48 = vector.broadcast %c41_i32 : i32 to vector<64x128xi32>
    %49 = arith.cmpi slt, %45, %48 : vector<64x128xi32>
    %50 = arith.andi %47, %49 : vector<64x128xi1>
    %c81_i32 = arith.constant 81 : i32
    %51 = vector.broadcast %c81_i32 : i32 to vector<64x128xi32>
    %52 = arith.cmpi sge, %45, %51 : vector<64x128xi32>
    %c121_i32 = arith.constant 121 : i32
    %53 = vector.broadcast %c121_i32 : i32 to vector<64x128xi32>
    %54 = arith.cmpi slt, %45, %53 : vector<64x128xi32>
    %55 = arith.andi %52, %54 : vector<64x128xi1>
    %cst_42 = arith.constant -1.000000e+30 : f32
    %56 = vector.broadcast %cst_42 : f32 to vector<64x128xf32>
    %57 = arith.select %50, %44, %56 : vector<64x128xi1>, vector<64x128xf32>
    %cst_43 = arith.constant dense<0xFF800000> : vector<64xf32>
    %58 = vector.multi_reduction <maximumf>, %57, %cst_43 [1] : vector<64x128xf32> to vector<64xf32>
    %59 = vector.shape_cast %58 : vector<64xf32> to vector<64x1xf32>
    %60 = vector.broadcast %59 : vector<64x1xf32> to vector<64x128xf32>
    %61 = arith.subf %44, %60 : vector<64x128xf32>
    %cst_44 = arith.constant 0.000000e+00 : f32
    %62 = vector.broadcast %cst_44 : f32 to vector<64x128xf32>
    %63 = arith.select %55, %44, %62 : vector<64x128xi1>, vector<64x128xf32>
    %64 = arith.select %50, %61, %63 : vector<64x128xi1>, vector<64x128xf32>
    %65 = math.exp %64 : vector<64x128xf32>
    %cst_45 = arith.constant 0.000000e+00 : f32
    %66 = vector.broadcast %cst_45 : f32 to vector<64x128xf32>
    %67 = arith.select %50, %65, %66 : vector<64x128xi1>, vector<64x128xf32>
    %cst_46 = arith.constant dense<0.000000e+00> : vector<64xf32>
    %68 = vector.multi_reduction <add>, %67, %cst_46 [1] : vector<64x128xf32> to vector<64xf32>
    %69 = vector.shape_cast %68 : vector<64xf32> to vector<64x1xf32>
    %70 = tpu.reciprocal %69 {approx = true} : vector<64x1xf32> -> vector<64x1xf32>
    %c1_i32_47 = arith.constant 1 : i32
    %71 = vector.broadcast %c1_i32_47 : i32 to vector<64x128xi32>
    %72 = arith.cmpi slt, %45, %71 : vector<64x128xi32>
    %73 = arith.negf %44 : vector<64x128xf32>
    %74 = math.exp %73 : vector<64x128xf32>
    %cst_48 = arith.constant 1.000000e+00 : f32
    %75 = vector.broadcast %cst_48 : f32 to vector<64x128xf32>
    %76 = arith.addf %75, %74 : vector<64x128xf32>
    %77 = arith.divf %75, %76 : vector<64x128xf32>
    %c21_i32_49 = arith.constant 21 : i32
    %78 = vector.broadcast %c21_i32_49 : i32 to vector<64x128xi32>
    %79 = arith.cmpi slt, %45, %78 : vector<64x128xi32>
    %80 = math.tanh %44 : vector<64x128xf32>
    %81 = vector.broadcast %70 : vector<64x1xf32> to vector<64x128xf32>
    %82 = arith.mulf %65, %81 : vector<64x128xf32>
    %c81_i32_50 = arith.constant 81 : i32
    %83 = vector.broadcast %c81_i32_50 : i32 to vector<64x128xi32>
    %84 = arith.cmpi slt, %45, %83 : vector<64x128xi32>
    %cst_51 = arith.constant 0.000000e+00 : f32
    %85 = vector.broadcast %cst_51 : f32 to vector<64x128xf32>
    %86 = arith.select %55, %65, %85 : vector<64x128xi1>, vector<64x128xf32>
    %87 = arith.select %84, %44, %86 : vector<64x128xi1>, vector<64x128xf32>
    %88 = arith.select %50, %82, %87 : vector<64x128xi1>, vector<64x128xf32>
    %89 = arith.select %79, %80, %88 : vector<64x128xi1>, vector<64x128xf32>
    %90 = arith.select %72, %77, %89 : vector<64x128xi1>, vector<64x128xf32>
    %91 = vector.shape_cast %90 : vector<64x128xf32> to vector<8x8x128xf32>
    %c0_52 = arith.constant 0 : index
    %c0_53 = arith.constant 0 : index
    %c0_54 = arith.constant 0 : index
    %92 = vector.load %arg9[%c0_52, %c0_53, %c0_54] : memref<8x8x128xf32, #tpu.memory_space<vmem>>, vector<8x8x128xf32>
    tpu.vector_store %arg9[%c0_52, %c0_53, %c0_54], %91 {strides = array<i32>} : memref<8x8x128xf32, #tpu.memory_space<vmem>>, vector<8x8x128xf32>,
    %c0_55 = arith.constant 0 : index
    %c0_56 = arith.constant 0 : index
    %c0_57 = arith.constant 0 : index
    %93 = vector.load %arg14[%c0_55, %c0_56, %c0_57] : memref<2x8x128xf32, #tpu.memory_space<vmem>>, vector<2x8x128xf32>
    %c0_58 = arith.constant 0 : index
    %c0_59 = arith.constant 0 : index
    %c0_60 = arith.constant 0 : index
    %94 = vector.load %arg10[%c0_58, %c0_59, %c0_60] : memref<2x8x128xf32, #tpu.memory_space<vmem>>, vector<2x8x128xf32>
    tpu.vector_store %arg10[%c0_58, %c0_59, %c0_60], %93 {strides = array<i32>} : memref<2x8x128xf32, #tpu.memory_space<vmem>>, vector<2x8x128xf32>,
    %c0_61 = arith.constant 0 : index
    %c0_62 = arith.constant 0 : index
    %c0_63 = arith.constant 0 : index
    %95 = vector.load %arg15[%c0_61, %c0_62, %c0_63] : memref<2x8x128xf32, #tpu.memory_space<vmem>>, vector<2x8x128xf32>
    %c0_64 = arith.constant 0 : index
    %c0_65 = arith.constant 0 : index
    %c0_66 = arith.constant 0 : index
    %96 = vector.load %arg11[%c0_64, %c0_65, %c0_66] : memref<2x8x128xf32, #tpu.memory_space<vmem>>, vector<2x8x128xf32>
    tpu.vector_store %arg11[%c0_64, %c0_65, %c0_66], %95 {strides = array<i32>} : memref<2x8x128xf32, #tpu.memory_space<vmem>>, vector<2x8x128xf32>,
    return
  }
  func.func @transform_0(%arg0: i32, %arg1: i32) -> (i32, i32) {
    %c0_i32 = arith.constant 0 : i32
    %c0_i32_0 = arith.constant 0 : i32
    return %arg0, %c0_i32 : i32, i32
  }
  func.func @transform_1(%arg0: i32, %arg1: i32) -> (i32, i32, i32) {
    %c0_i32 = arith.constant 0 : i32
    %c0_i32_0 = arith.constant 0 : i32
    return %arg1, %arg0, %c0_i32 : i32, i32, i32
  }
  func.func @transform_2(%arg0: i32, %arg1: i32) -> (i32, i32, i32) {
    %c0_i32 = arith.constant 0 : i32
    %c0_i32_0 = arith.constant 0 : i32
    %c0_i32_1 = arith.constant 0 : i32
    %c0_i32_2 = arith.constant 0 : i32
    return %c0_i32, %c0_i32_0, %c0_i32_1 : i32, i32, i32
  }
  func.func @transform_3(%arg0: i32, %arg1: i32) -> (i32, i32, i32) {
    %c0_i32 = arith.constant 0 : i32
    %c0_i32_0 = arith.constant 0 : i32
    %c0_i32_1 = arith.constant 0 : i32
    %c0_i32_2 = arith.constant 0 : i32
    return %c0_i32, %c0_i32_0, %c0_i32_1 : i32, i32, i32
  }
  func.func @transform_4(%arg0: i32, %arg1: i32) -> (i32, i32, i32) {
    %c0_i32 = arith.constant 0 : i32
    %c0_i32_0 = arith.constant 0 : i32
    %c0_i32_1 = arith.constant 0 : i32
    %c0_i32_2 = arith.constant 0 : i32
    return %c0_i32, %c0_i32_0, %c0_i32_1 : i32, i32, i32
  }
  func.func @transform_5(%arg0: i32, %arg1: i32) -> (i32, i32, i32) {
    %c0_i32 = arith.constant 0 : i32
    %c0_i32_0 = arith.constant 0 : i32
    %c0_i32_1 = arith.constant 0 : i32
    %c0_i32_2 = arith.constant 0 : i32
    return %c0_i32, %c0_i32_0, %c0_i32_1 : i32, i32, i32
  }
  func.func @transform_6(%arg0: i32, %arg1: i32) -> (i32, i32) {
    %c0_i32 = arith.constant 0 : i32
    %c0_i32_0 = arith.constant 0 : i32
    %c0_i32_1 = arith.constant 0 : i32
    return %c0_i32, %c0_i32_0 : i32, i32
  }
  func.func @transform_7(%arg0: i32, %arg1: i32) -> (i32, i32, i32) {
    %c0_i32 = arith.constant 0 : i32
    %c0_i32_0 = arith.constant 0 : i32
    return %arg1, %arg0, %c0_i32 : i32, i32, i32
  }
  func.func @transform_8(%arg0: i32, %arg1: i32) -> (i32, i32, i32) {
    %c0_i32 = arith.constant 0 : i32
    %c0_i32_0 = arith.constant 0 : i32
    %c0_i32_1 = arith.constant 0 : i32
    return %c0_i32, %arg0, %c0_i32_0 : i32, i32, i32
  }
  func.func @transform_9(%arg0: i32, %arg1: i32) -> (i32, i32, i32) {
    %c0_i32 = arith.constant 0 : i32
    %c0_i32_0 = arith.constant 0 : i32
    %c0_i32_1 = arith.constant 0 : i32
    return %c0_i32, %arg0, %c0_i32_0 : i32, i32, i32
  }
}

module attributes {stable_mosaic.version = 11 : i64} {
  func.func @_fused_kernel(%arg0: i32, %arg1: i32, %arg2: memref<8x1xi32, #tpu.memory_space<vmem>>, %arg3: memref<8x8x3xf32, #tpu.memory_space<vmem>>, %arg4: memref<2x3x512xbf16, #tpu.memory_space<vmem>>, %arg5: memref<2x256x512xbf16, #tpu.memory_space<vmem>>, %arg6: memref<2x1x512xf32, #tpu.memory_space<vmem>>, %arg7: memref<2x128x128xbf16, #tpu.memory_space<vmem>>, %arg8: memref<1x128xf32, #tpu.memory_space<vmem>>, %arg9: memref<8x8x128xf32, #tpu.memory_space<vmem>>, %arg10: memref<2x8x128xf32, #tpu.memory_space<vmem>>, %arg11: memref<2x8x128xf32, #tpu.memory_space<vmem>>, %arg12: memref<2x64x512xf32, #tpu.memory_space<vmem>>, %arg13: memref<2x64x128xf32, #tpu.memory_space<vmem>>, %arg14: memref<2x8x128xf32, #tpu.memory_space<vmem>>, %arg15: memref<2x8x128xf32, #tpu.memory_space<vmem>>) attributes {dimension_semantics = [#tpu.dimension_semantics<parallel>, #tpu.dimension_semantics<arbitrary>], iteration_bounds = array<i64: 1, 1>, scalar_prefetch = 0 : i64, scratch_operands = 4 : i64, tpu.core_type = #tpu.core_type<tc>, window_params = [{transform_indices = @transform_0, window_bounds = array<i64: 8, 1>}, {transform_indices = @transform_1, window_bounds = array<i64: 8, 8, 3>}, {pipeline_mode = #tpu.pipeline_mode<synchronous>, transform_indices = @transform_2, window_bounds = array<i64: 2, 3, 512>}, {pipeline_mode = #tpu.pipeline_mode<synchronous>, transform_indices = @transform_3, window_bounds = array<i64: 2, 256, 512>}, {pipeline_mode = #tpu.pipeline_mode<synchronous>, transform_indices = @transform_4, window_bounds = array<i64: 2, 1, 512>}, {pipeline_mode = #tpu.pipeline_mode<synchronous>, transform_indices = @transform_5, window_bounds = array<i64: 2, 128, 128>}, {pipeline_mode = #tpu.pipeline_mode<synchronous>, transform_indices = @transform_6, window_bounds = array<i64: 1, 128>}, {transform_indices = @transform_7, window_bounds = array<i64: 8, 8, 128>}, {transform_indices = @transform_8, window_bounds = array<i64: 2, 8, 128>}, {transform_indices = @transform_9, window_bounds = array<i64: 2, 8, 128>}]} {
    %c0_i32 = arith.constant 0 : i32
    %0 = arith.cmpi eq, %arg1, %c0_i32 : i32
    %1 = arith.extui %0 : i1 to i32
    %c0_i32_0 = arith.constant 0 : i32
    %2 = arith.cmpi ne, %1, %c0_i32_0 : i32
    scf.if %2 {
      %cst_67 = arith.constant 0.000000e+00 : f32
      %97 = vector.broadcast %cst_67 : f32 to vector<2x8x128xf32>
      %c0_68 = arith.constant 0 : index
      %c0_69 = arith.constant 0 : index
      %c0_70 = arith.constant 0 : index
      %98 = vector.load %arg14[%c0_68, %c0_69, %c0_70] : memref<2x8x128xf32, #tpu.memory_space<vmem>>, vector<2x8x128xf32>
      tpu.vector_store %arg14[%c0_68, %c0_69, %c0_70], %97 {strides = array<i32>} : memref<2x8x128xf32, #tpu.memory_space<vmem>>, vector<2x8x128xf32>,
      %cst_71 = arith.constant 0.000000e+00 : f32
      %99 = vector.broadcast %cst_71 : f32 to vector<2x8x128xf32>
      %c0_72 = arith.constant 0 : index
      %c0_73 = arith.constant 0 : index
      %c0_74 = arith.constant 0 : index
      %100 = vector.load %arg15[%c0_72, %c0_73, %c0_74] : memref<2x8x128xf32, #tpu.memory_space<vmem>>, vector<2x8x128xf32>
      tpu.vector_store %arg15[%c0_72, %c0_73, %c0_74], %99 {strides = array<i32>} : memref<2x8x128xf32, #tpu.memory_space<vmem>>, vector<2x8x128xf32>,
    } else {
    }
    %c0 = arith.constant 0 : index
    %c0_1 = arith.constant 0 : index
    %c0_2 = arith.constant 0 : index
    %3 = vector.load %arg3[%c0, %c0_1, %c0_2] : memref<8x8x3xf32, #tpu.memory_space<vmem>>, vector<8x8x3xf32>
    %4 = vector.shape_cast %3 : vector<8x8x3xf32> to vector<64x3xf32>
    %5 = arith.truncf %4 : vector<64x3xf32> to vector<64x3xbf16>
    %c0_3 = arith.constant 0 : index
    %c0_4 = arith.constant 0 : index
    %c0_5 = arith.constant 0 : index
    %6 = vector.load %arg4[%c0_3, %c0_4, %c0_5] : memref<2x3x512xbf16, #tpu.memory_space<vmem>>, vector<1x3x512xbf16>
    %7 = vector.shape_cast %6 : vector<1x3x512xbf16> to vector<3x512xbf16>
    %cst = arith.constant dense<0.000000e+00> : vector<64x512xf32>
    %8 = tpu.matmul %5, %7, %cst {dimension_numbers = #tpu.dot_dimension_numbers<[1], [0], [0], [1], [0, 0, 1, 1], [], []>} : vector<64x3xbf16>, vector<3x512xbf16>, vector<64x512xf32> -> vector<64x512xf32>
    %c0_6 = arith.constant 0 : index
    %c0_7 = arith.constant 0 : index
    %c0_8 = arith.constant 0 : index
    %9 = vector.load %arg6[%c0_6, %c0_7, %c0_8] : memref<2x1x512xf32, #tpu.memory_space<vmem>>, vector<1x1x512xf32>
    %10 = vector.shape_cast %9 : vector<1x1x512xf32> to vector<1x512xf32>
    %11 = vector.broadcast %10 : vector<1x512xf32> to vector<64x512xf32>
    %12 = arith.addf %8, %11 : vector<64x512xf32>
    %c0_9 = arith.constant 0 : index
    %c0_10 = arith.constant 0 : index
    %c0_11 = arith.constant 0 : index
    %13 = vector.load %arg12[%c0_9, %c0_10, %c0_11] : memref<2x64x512xf32, #tpu.memory_space<vmem>>, vector<1x64x512xf32>
    %14 = vector.shape_cast %13 : vector<1x64x512xf32> to vector<64x512xf32>
    %15 = vector.shape_cast %12 : vector<64x512xf32> to vector<1x64x512xf32>
    tpu.vector_store %arg12[%c0_9, %c0_10, %c0_11], %15 {strides = array<i32>} : memref<2x64x512xf32, #tpu.memory_space<vmem>>, vector<1x64x512xf32>,
    %c1 = arith.constant 1 : index
    %c0_12 = arith.constant 0 : index
    %c0_13 = arith.constant 0 : index
    %16 = vector.load %arg4[%c1, %c0_12, %c0_13] : memref<2x3x512xbf16, #tpu.memory_space<vmem>>, vector<1x3x512xbf16>
    %17 = vector.shape_cast %16 : vector<1x3x512xbf16> to vector<3x512xbf16>
    %cst_14 = arith.constant dense<0.000000e+00> : vector<64x512xf32>
    %18 = tpu.matmul %5, %17, %cst_14 {dimension_numbers = #tpu.dot_dimension_numbers<[1], [0], [0], [1], [0, 0, 1, 1], [], []>} : vector<64x3xbf16>, vector<3x512xbf16>, vector<64x512xf32> -> vector<64x512xf32>
    %c1_15 = arith.constant 1 : index
    %c0_16 = arith.constant 0 : index
    %c0_17 = arith.constant 0 : index
    %19 = vector.load %arg6[%c1_15, %c0_16, %c0_17] : memref<2x1x512xf32, #tpu.memory_space<vmem>>, vector<1x1x512xf32>
    %20 = vector.shape_cast %19 : vector<1x1x512xf32> to vector<1x512xf32>
    %21 = vector.broadcast %20 : vector<1x512xf32> to vector<64x512xf32>
    %22 = arith.addf %18, %21 : vector<64x512xf32>
    %c1_18 = arith.constant 1 : index
    %c0_19 = arith.constant 0 : index
    %c0_20 = arith.constant 0 : index
    %23 = vector.load %arg12[%c1_18, %c0_19, %c0_20] : memref<2x64x512xf32, #tpu.memory_space<vmem>>, vector<1x64x512xf32>
    %24 = vector.shape_cast %23 : vector<1x64x512xf32> to vector<64x512xf32>
    %25 = vector.shape_cast %22 : vector<64x512xf32> to vector<1x64x512xf32>
    tpu.vector_store %arg12[%c1_18, %c0_19, %c0_20], %25 {strides = array<i32>} : memref<2x64x512xf32, #tpu.memory_space<vmem>>, vector<1x64x512xf32>,
    %c0_21 = arith.constant 0 : index
    %c0_22 = arith.constant 0 : index
    %26 = vector.load %arg2[%c0_21, %c0_22] : memref<8x1xi32, #tpu.memory_space<vmem>>, vector<8x1xi32>
    %c8_i32 = arith.constant 8 : i32
    %27 = arith.muli %arg1, %c8_i32 : i32
    %c0_i32_23 = arith.constant 0 : i32
    %c8_i32_24 = arith.constant 8 : i32
    %28 = arith.addi %c0_i32_23, %c8_i32_24 : i32
    %c1_i32 = arith.constant 1 : i32
    scf.for %arg16 = %c0_i32_23 to %28 step %c1_i32  : i32 {
      %c1_i32_67 = arith.constant 1 : i32
      %97 = arith.muli %arg16, %c1_i32_67 : i32
      %c0_i32_68 = arith.constant 0 : i32
      %98 = arith.addi %c0_i32_68, %97 : i32
      %99 = arith.addi %27, %98 : i32
      %100 = vector.broadcast %99 : i32 to vector<8x1xi32>
      %101 = arith.cmpi sgt, %26, %100 : vector<8x1xi32>
      %c8_i32_69 = arith.constant 8 : i32
      %102 = arith.muli %98, %c8_i32_69 : i32
      %103 = tpu.assume_multiple %102, 8 : i32
      %c0_70 = arith.constant 0 : index
      %c0_71 = arith.constant 0 : index
      %c0_72 = arith.constant 0 : index
      %104 = vector.load %arg14[%c0_70, %c0_71, %c0_72] : memref<2x8x128xf32, #tpu.memory_space<vmem>>, vector<1x8x128xf32>
      %105 = vector.shape_cast %104 : vector<1x8x128xf32> to vector<8x128xf32>
      %c0_73 = arith.constant 0 : index
      %c0_74 = arith.constant 0 : index
      %c0_75 = arith.constant 0 : index
      %106 = vector.load %arg15[%c0_73, %c0_74, %c0_75] : memref<2x8x128xf32, #tpu.memory_space<vmem>>, vector<1x8x128xf32>
      %107 = vector.shape_cast %106 : vector<1x8x128xf32> to vector<8x128xf32>
      %c0_i32_76 = arith.constant 0 : i32
      %c0_i32_77 = arith.constant 0 : i32
      %c0_i32_78 = arith.constant 0 : i32
      %108 = tpu.memref_slice %arg12[%c0_i32_76, %c0_i32_77, %c0_i32_78] : memref<2x64x512xf32, #tpu.memory_space<vmem>> -> memref<1x64x512xf32, #tpu.memory_space<vmem>>
      %109 = tpu.memref_squeeze %108 : memref<1x64x512xf32, #tpu.memory_space<vmem>> -> memref<64x512xf32, #tpu.memory_space<vmem>>
      %110 = arith.index_cast %103 : i32 to index
      %c0_79 = arith.constant 0 : index
      %111 = vector.load %109[%110, %c0_79] : memref<64x512xf32, #tpu.memory_space<vmem>>, vector<8x512xf32>
      %112 = arith.truncf %105 : vector<8x128xf32> to vector<8x128xbf16>
      %c0_80 = arith.constant 0 : index
      %c0_81 = arith.constant 0 : index
      %c0_82 = arith.constant 0 : index
      %113 = vector.load %arg5[%c0_80, %c0_81, %c0_82] : memref<2x256x512xbf16, #tpu.memory_space<vmem>>, vector<1x128x512xbf16>
      %114 = vector.shape_cast %113 : vector<1x128x512xbf16> to vector<128x512xbf16>
      %cst_83 = arith.constant dense<0.000000e+00> : vector<8x512xf32>
      %115 = tpu.matmul %112, %114, %cst_83 {dimension_numbers = #tpu.dot_dimension_numbers<[1], [0], [0], [1], [0, 0, 1, 1], [], []>} : vector<8x128xbf16>, vector<128x512xbf16>, vector<8x512xf32> -> vector<8x512xf32>
      %116 = arith.addf %111, %115 : vector<8x512xf32>
      %117 = vector.extract_strided_slice %116 {offsets = [0, 0], sizes = [8, 128], strides = [1, 1]} : vector<8x512xf32> to vector<8x128xf32>
      %118 = arith.negf %117 : vector<8x128xf32>
      %119 = math.exp %118 : vector<8x128xf32>
      %cst_84 = arith.constant 1.000000e+00 : f32
      %120 = vector.broadcast %cst_84 : f32 to vector<8x128xf32>
      %121 = arith.addf %120, %119 : vector<8x128xf32>
      %122 = arith.divf %120, %121 : vector<8x128xf32>
      %123 = vector.extract_strided_slice %116 {offsets = [0, 128], sizes = [8, 128], strides = [1, 1]} : vector<8x512xf32> to vector<8x128xf32>
      %124 = arith.negf %123 : vector<8x128xf32>
      %125 = math.exp %124 : vector<8x128xf32>
      %cst_85 = arith.constant 1.000000e+00 : f32
      %126 = vector.broadcast %cst_85 : f32 to vector<8x128xf32>
      %127 = arith.addf %126, %125 : vector<8x128xf32>
      %128 = arith.divf %126, %127 : vector<8x128xf32>
      %129 = vector.extract_strided_slice %116 {offsets = [0, 256], sizes = [8, 128], strides = [1, 1]} : vector<8x512xf32> to vector<8x128xf32>
      %130 = math.tanh %129 : vector<8x128xf32>
      %131 = vector.extract_strided_slice %116 {offsets = [0, 384], sizes = [8, 128], strides = [1, 1]} : vector<8x512xf32> to vector<8x128xf32>
      %132 = arith.negf %131 : vector<8x128xf32>
      %133 = math.exp %132 : vector<8x128xf32>
      %cst_86 = arith.constant 1.000000e+00 : f32
      %134 = vector.broadcast %cst_86 : f32 to vector<8x128xf32>
      %135 = arith.addf %134, %133 : vector<8x128xf32>
      %136 = arith.divf %134, %135 : vector<8x128xf32>
      %137 = arith.mulf %128, %107 : vector<8x128xf32>
      %138 = arith.mulf %122, %130 : vector<8x128xf32>
      %139 = arith.addf %137, %138 : vector<8x128xf32>
      %140 = math.tanh %139 : vector<8x128xf32>
      %141 = arith.mulf %136, %140 : vector<8x128xf32>
      %142 = vector.shape_cast %101 : vector<8x1xi1> to vector<8x1xi1>
      %143 = vector.broadcast %142 : vector<8x1xi1> to vector<8x128xi1>
      %144 = arith.select %143, %141, %105 : vector<8x128xi1>, vector<8x128xf32>
      %c0_87 = arith.constant 0 : index
      %c0_88 = arith.constant 0 : index
      %c0_89 = arith.constant 0 : index
      %145 = vector.load %arg14[%c0_87, %c0_88, %c0_89] : memref<2x8x128xf32, #tpu.memory_space<vmem>>, vector<1x8x128xf32>
      %146 = vector.shape_cast %145 : vector<1x8x128xf32> to vector<8x128xf32>
      %147 = vector.shape_cast %144 : vector<8x128xf32> to vector<1x8x128xf32>
      tpu.vector_store %arg14[%c0_87, %c0_88, %c0_89], %147 {strides = array<i32>} : memref<2x8x128xf32, #tpu.memory_space<vmem>>, vector<1x8x128xf32>,
      %148 = vector.shape_cast %101 : vector<8x1xi1> to vector<8x1xi1>
      %149 = vector.broadcast %148 : vector<8x1xi1> to vector<8x128xi1>
      %150 = arith.select %149, %139, %107 : vector<8x128xi1>, vector<8x128xf32>
      %c0_90 = arith.constant 0 : index
      %c0_91 = arith.constant 0 : index
      %c0_92 = arith.constant 0 : index
      %151 = vector.load %arg15[%c0_90, %c0_91, %c0_92] : memref<2x8x128xf32, #tpu.memory_space<vmem>>, vector<1x8x128xf32>
      %152 = vector.shape_cast %151 : vector<1x8x128xf32> to vector<8x128xf32>
      %153 = vector.shape_cast %150 : vector<8x128xf32> to vector<1x8x128xf32>
      tpu.vector_store %arg15[%c0_90, %c0_91, %c0_92], %153 {strides = array<i32>} : memref<2x8x128xf32, #tpu.memory_space<vmem>>, vector<1x8x128xf32>,
      %cst_93 = arith.constant 0.000000e+00 : f32
      %154 = vector.shape_cast %101 : vector<8x1xi1> to vector<8x1xi1>
      %155 = vector.broadcast %154 : vector<8x1xi1> to vector<8x128xi1>
      %156 = vector.broadcast %cst_93 : f32 to vector<8x128xf32>
      %157 = arith.select %155, %141, %156 : vector<8x128xi1>, vector<8x128xf32>
      %c0_i32_94 = arith.constant 0 : i32
      %c0_i32_95 = arith.constant 0 : i32
      %c0_i32_96 = arith.constant 0 : i32
      %158 = tpu.memref_slice %arg13[%c0_i32_94, %c0_i32_95, %c0_i32_96] : memref<2x64x128xf32, #tpu.memory_space<vmem>> -> memref<1x64x128xf32, #tpu.memory_space<vmem>>
      %159 = tpu.memref_squeeze %158 : memref<1x64x128xf32, #tpu.memory_space<vmem>> -> memref<64x128xf32, #tpu.memory_space<vmem>>
      %160 = arith.index_cast %103 : i32 to index
      %c0_97 = arith.constant 0 : index
      %161 = vector.load %159[%160, %c0_97] : memref<64x128xf32, #tpu.memory_space<vmem>>, vector<8x128xf32>
      tpu.vector_store %159[%160, %c0_97], %157 {strides = array<i32>} : memref<64x128xf32, #tpu.memory_space<vmem>>, vector<8x128xf32>,
      %c1_98 = arith.constant 1 : index
      %c0_99 = arith.constant 0 : index
      %c0_100 = arith.constant 0 : index
      %162 = vector.load %arg14[%c1_98, %c0_99, %c0_100] : memref<2x8x128xf32, #tpu.memory_space<vmem>>, vector<1x8x128xf32>
      %163 = vector.shape_cast %162 : vector<1x8x128xf32> to vector<8x128xf32>
      %c1_101 = arith.constant 1 : index
      %c0_102 = arith.constant 0 : index
      %c0_103 = arith.constant 0 : index
      %164 = vector.load %arg15[%c1_101, %c0_102, %c0_103] : memref<2x8x128xf32, #tpu.memory_space<vmem>>, vector<1x8x128xf32>
      %165 = vector.shape_cast %164 : vector<1x8x128xf32> to vector<8x128xf32>
      %c1_i32_104 = arith.constant 1 : i32
      %c0_i32_105 = arith.constant 0 : i32
      %c0_i32_106 = arith.constant 0 : i32
      %166 = tpu.memref_slice %arg12[%c1_i32_104, %c0_i32_105, %c0_i32_106] : memref<2x64x512xf32, #tpu.memory_space<vmem>> -> memref<1x64x512xf32, #tpu.memory_space<vmem>>
      %167 = tpu.memref_squeeze %166 : memref<1x64x512xf32, #tpu.memory_space<vmem>> -> memref<64x512xf32, #tpu.memory_space<vmem>>
      %168 = arith.index_cast %103 : i32 to index
      %c0_107 = arith.constant 0 : index
      %169 = vector.load %167[%168, %c0_107] : memref<64x512xf32, #tpu.memory_space<vmem>>, vector<8x512xf32>
      %170 = tpu.concatenate %163, %157 in 1 : vector<8x128xf32>, vector<8x128xf32> -> vector<8x256xf32>
      %171 = arith.truncf %170 : vector<8x256xf32> to vector<8x256xbf16>
      %c1_108 = arith.constant 1 : index
      %c0_109 = arith.constant 0 : index
      %c0_110 = arith.constant 0 : index
      %172 = vector.load %arg5[%c1_108, %c0_109, %c0_110] : memref<2x256x512xbf16, #tpu.memory_space<vmem>>, vector<1x256x512xbf16>
      %173 = vector.shape_cast %172 : vector<1x256x512xbf16> to vector<256x512xbf16>
      %cst_111 = arith.constant dense<0.000000e+00> : vector<8x512xf32>
      %174 = tpu.matmul %171, %173, %cst_111 {dimension_numbers = #tpu.dot_dimension_numbers<[1], [0], [0], [1], [0, 0, 1, 1], [], []>} : vector<8x256xbf16>, vector<256x512xbf16>, vector<8x512xf32> -> vector<8x512xf32>
      %175 = arith.addf %169, %174 : vector<8x512xf32>
      %176 = vector.extract_strided_slice %175 {offsets = [0, 0], sizes = [8, 128], strides = [1, 1]} : vector<8x512xf32> to vector<8x128xf32>
      %177 = arith.negf %176 : vector<8x128xf32>
      %178 = math.exp %177 : vector<8x128xf32>
      %cst_112 = arith.constant 1.000000e+00 : f32
      %179 = vector.broadcast %cst_112 : f32 to vector<8x128xf32>
      %180 = arith.addf %179, %178 : vector<8x128xf32>
      %181 = arith.divf %179, %180 : vector<8x128xf32>
      %182 = vector.extract_strided_slice %175 {offsets = [0, 128], sizes = [8, 128], strides = [1, 1]} : vector<8x512xf32> to vector<8x128xf32>
      %183 = arith.negf %182 : vector<8x128xf32>
      %184 = math.exp %183 : vector<8x128xf32>
      %cst_113 = arith.constant 1.000000e+00 : f32
      %185 = vector.broadcast %cst_113 : f32 to vector<8x128xf32>
      %186 = arith.addf %185, %184 : vector<8x128xf32>
      %187 = arith.divf %185, %186 : vector<8x128xf32>
      %188 = vector.extract_strided_slice %175 {offsets = [0, 256], sizes = [8, 128], strides = [1, 1]} : vector<8x512xf32> to vector<8x128xf32>
      %189 = math.tanh %188 : vector<8x128xf32>
      %190 = vector.extract_strided_slice %175 {offsets = [0, 384], sizes = [8, 128], strides = [1, 1]} : vector<8x512xf32> to vector<8x128xf32>
      %191 = arith.negf %190 : vector<8x128xf32>
      %192 = math.exp %191 : vector<8x128xf32>
      %cst_114 = arith.constant 1.000000e+00 : f32
      %193 = vector.broadcast %cst_114 : f32 to vector<8x128xf32>
      %194 = arith.addf %193, %192 : vector<8x128xf32>
      %195 = arith.divf %193, %194 : vector<8x128xf32>
      %196 = arith.mulf %187, %165 : vector<8x128xf32>
      %197 = arith.mulf %181, %189 : vector<8x128xf32>
      %198 = arith.addf %196, %197 : vector<8x128xf32>
      %199 = math.tanh %198 : vector<8x128xf32>
      %200 = arith.mulf %195, %199 : vector<8x128xf32>
      %201 = vector.shape_cast %101 : vector<8x1xi1> to vector<8x1xi1>
      %202 = vector.broadcast %201 : vector<8x1xi1> to vector<8x128xi1>
      %203 = arith.select %202, %200, %163 : vector<8x128xi1>, vector<8x128xf32>
      %c1_115 = arith.constant 1 : index
      %c0_116 = arith.constant 0 : index
      %c0_117 = arith.constant 0 : index
      %204 = vector.load %arg14[%c1_115, %c0_116, %c0_117] : memref<2x8x128xf32, #tpu.memory_space<vmem>>, vector<1x8x128xf32>
      %205 = vector.shape_cast %204 : vector<1x8x128xf32> to vector<8x128xf32>
      %206 = vector.shape_cast %203 : vector<8x128xf32> to vector<1x8x128xf32>
      tpu.vector_store %arg14[%c1_115, %c0_116, %c0_117], %206 {strides = array<i32>} : memref<2x8x128xf32, #tpu.memory_space<vmem>>, vector<1x8x128xf32>,
      %207 = vector.shape_cast %101 : vector<8x1xi1> to vector<8x1xi1>
      %208 = vector.broadcast %207 : vector<8x1xi1> to vector<8x128xi1>
      %209 = arith.select %208, %198, %165 : vector<8x128xi1>, vector<8x128xf32>
      %c1_118 = arith.constant 1 : index
      %c0_119 = arith.constant 0 : index
      %c0_120 = arith.constant 0 : index
      %210 = vector.load %arg15[%c1_118, %c0_119, %c0_120] : memref<2x8x128xf32, #tpu.memory_space<vmem>>, vector<1x8x128xf32>
      %211 = vector.shape_cast %210 : vector<1x8x128xf32> to vector<8x128xf32>
      %212 = vector.shape_cast %209 : vector<8x128xf32> to vector<1x8x128xf32>
      tpu.vector_store %arg15[%c1_118, %c0_119, %c0_120], %212 {strides = array<i32>} : memref<2x8x128xf32, #tpu.memory_space<vmem>>, vector<1x8x128xf32>,
      %cst_121 = arith.constant 0.000000e+00 : f32
      %213 = vector.shape_cast %101 : vector<8x1xi1> to vector<8x1xi1>
      %214 = vector.broadcast %213 : vector<8x1xi1> to vector<8x128xi1>
      %215 = vector.broadcast %cst_121 : f32 to vector<8x128xf32>
      %216 = arith.select %214, %200, %215 : vector<8x128xi1>, vector<8x128xf32>
      %c1_i32_122 = arith.constant 1 : i32
      %c0_i32_123 = arith.constant 0 : i32
      %c0_i32_124 = arith.constant 0 : i32
      %217 = tpu.memref_slice %arg13[%c1_i32_122, %c0_i32_123, %c0_i32_124] : memref<2x64x128xf32, #tpu.memory_space<vmem>> -> memref<1x64x128xf32, #tpu.memory_space<vmem>>
      %218 = tpu.memref_squeeze %217 : memref<1x64x128xf32, #tpu.memory_space<vmem>> -> memref<64x128xf32, #tpu.memory_space<vmem>>
      %219 = arith.index_cast %103 : i32 to index
      %c0_125 = arith.constant 0 : index
      %220 = vector.load %218[%219, %c0_125] : memref<64x128xf32, #tpu.memory_space<vmem>>, vector<8x128xf32>
      tpu.vector_store %218[%219, %c0_125], %216 {strides = array<i32>} : memref<64x128xf32, #tpu.memory_space<vmem>>, vector<8x128xf32>,
    }
    %c8_i32_25 = arith.constant 8 : i32
    %c0_26 = arith.constant 0 : index
    %c0_27 = arith.constant 0 : index
    %c0_28 = arith.constant 0 : index
    %29 = vector.load %arg13[%c0_26, %c0_27, %c0_28] : memref<2x64x128xf32, #tpu.memory_space<vmem>>, vector<1x64x128xf32>
    %30 = vector.shape_cast %29 : vector<1x64x128xf32> to vector<64x128xf32>
    %31 = arith.truncf %30 : vector<64x128xf32> to vector<64x128xbf16>
    %c0_29 = arith.constant 0 : index
    %c0_30 = arith.constant 0 : index
    %c0_31 = arith.constant 0 : index
    %32 = vector.load %arg7[%c0_29, %c0_30, %c0_31] : memref<2x128x128xbf16, #tpu.memory_space<vmem>>, vector<1x128x128xbf16>
    %33 = vector.shape_cast %32 : vector<1x128x128xbf16> to vector<128x128xbf16>
    %cst_32 = arith.constant dense<0.000000e+00> : vector<64x128xf32>
    %34 = tpu.matmul %31, %33, %cst_32 {dimension_numbers = #tpu.dot_dimension_numbers<[1], [0], [0], [1], [0, 0, 1, 1], [], []>} : vector<64x128xbf16>, vector<128x128xbf16>, vector<64x128xf32> -> vector<64x128xf32>
    %c1_33 = arith.constant 1 : index
    %c0_34 = arith.constant 0 : index
    %c0_35 = arith.constant 0 : index
    %35 = vector.load %arg13[%c1_33, %c0_34, %c0_35] : memref<2x64x128xf32, #tpu.memory_space<vmem>>, vector<1x64x128xf32>
    %36 = vector.shape_cast %35 : vector<1x64x128xf32> to vector<64x128xf32>
    %37 = arith.truncf %36 : vector<64x128xf32> to vector<64x128xbf16>
    %c1_36 = arith.constant 1 : index
    %c0_37 = arith.constant 0 : index
    %c0_38 = arith.constant 0 : index
    %38 = vector.load %arg7[%c1_36, %c0_37, %c0_38] : memref<2x128x128xbf16, #tpu.memory_space<vmem>>, vector<1x128x128xbf16>
    %39 = vector.shape_cast %38 : vector<1x128x128xbf16> to vector<128x128xbf16>
    %cst_39 = arith.constant dense<0.000000e+00> : vector<64x128xf32>
    %40 = tpu.matmul %37, %39, %cst_39 {dimension_numbers = #tpu.dot_dimension_numbers<[1], [0], [0], [1], [0, 0, 1, 1], [], []>} : vector<64x128xbf16>, vector<128x128xbf16>, vector<64x128xf32> -> vector<64x128xf32>
    %41 = arith.addf %34, %40 : vector<64x128xf32>
    %c0_40 = arith.constant 0 : index
    %c0_41 = arith.constant 0 : index
    %42 = vector.load %arg8[%c0_40, %c0_41] : memref<1x128xf32, #tpu.memory_space<vmem>>, vector<1x128xf32>
    %43 = vector.broadcast %42 : vector<1x128xf32> to vector<64x128xf32>
    %44 = arith.addf %41, %43 : vector<64x128xf32>
    %45 = tpu.iota {dimensions = array<i32: 1>} : vector<64x128xi32>
    %c21_i32 = arith.constant 21 : i32
    %46 = vector.broadcast %c21_i32 : i32 to vector<64x128xi32>
    %47 = arith.cmpi sge, %45, %46 : vector<64x128xi32>
    %c41_i32 = arith.constant 41 : i32
    %48 = vector.broadcast %c41_i32 : i32 to vector<64x128xi32>
    %49 = arith.cmpi slt, %45, %48 : vector<64x128xi32>
    %50 = arith.andi %47, %49 : vector<64x128xi1>
    %c81_i32 = arith.constant 81 : i32
    %51 = vector.broadcast %c81_i32 : i32 to vector<64x128xi32>
    %52 = arith.cmpi sge, %45, %51 : vector<64x128xi32>
    %c121_i32 = arith.constant 121 : i32
    %53 = vector.broadcast %c121_i32 : i32 to vector<64x128xi32>
    %54 = arith.cmpi slt, %45, %53 : vector<64x128xi32>
    %55 = arith.andi %52, %54 : vector<64x128xi1>
    %cst_42 = arith.constant -1.000000e+30 : f32
    %56 = vector.broadcast %cst_42 : f32 to vector<64x128xf32>
    %57 = arith.select %50, %44, %56 : vector<64x128xi1>, vector<64x128xf32>
    %cst_43 = arith.constant dense<0xFF800000> : vector<64xf32>
    %58 = vector.multi_reduction <maximumf>, %57, %cst_43 [1] : vector<64x128xf32> to vector<64xf32>
    %59 = vector.shape_cast %58 : vector<64xf32> to vector<64x1xf32>
    %60 = vector.broadcast %59 : vector<64x1xf32> to vector<64x128xf32>
    %61 = arith.subf %44, %60 : vector<64x128xf32>
    %cst_44 = arith.constant 0.000000e+00 : f32
    %62 = vector.broadcast %cst_44 : f32 to vector<64x128xf32>
    %63 = arith.select %55, %44, %62 : vector<64x128xi1>, vector<64x128xf32>
    %64 = arith.select %50, %61, %63 : vector<64x128xi1>, vector<64x128xf32>
    %65 = math.exp %64 : vector<64x128xf32>
    %cst_45 = arith.constant 0.000000e+00 : f32
    %66 = vector.broadcast %cst_45 : f32 to vector<64x128xf32>
    %67 = arith.select %50, %65, %66 : vector<64x128xi1>, vector<64x128xf32>
    %cst_46 = arith.constant dense<0.000000e+00> : vector<64xf32>
    %68 = vector.multi_reduction <add>, %67, %cst_46 [1] : vector<64x128xf32> to vector<64xf32>
    %69 = vector.shape_cast %68 : vector<64xf32> to vector<64x1xf32>
    %70 = tpu.reciprocal %69 {approx = true} : vector<64x1xf32> -> vector<64x1xf32>
    %c1_i32_47 = arith.constant 1 : i32
    %71 = vector.broadcast %c1_i32_47 : i32 to vector<64x128xi32>
    %72 = arith.cmpi slt, %45, %71 : vector<64x128xi32>
    %73 = arith.negf %44 : vector<64x128xf32>
    %74 = math.exp %73 : vector<64x128xf32>
    %cst_48 = arith.constant 1.000000e+00 : f32
    %75 = vector.broadcast %cst_48 : f32 to vector<64x128xf32>
    %76 = arith.addf %75, %74 : vector<64x128xf32>
    %77 = arith.divf %75, %76 : vector<64x128xf32>
    %c21_i32_49 = arith.constant 21 : i32
    %78 = vector.broadcast %c21_i32_49 : i32 to vector<64x128xi32>
    %79 = arith.cmpi slt, %45, %78 : vector<64x128xi32>
    %80 = math.tanh %44 : vector<64x128xf32>
    %81 = vector.broadcast %70 : vector<64x1xf32> to vector<64x128xf32>
    %82 = arith.mulf %65, %81 : vector<64x128xf32>
    %c81_i32_50 = arith.constant 81 : i32
    %83 = vector.broadcast %c81_i32_50 : i32 to vector<64x128xi32>
    %84 = arith.cmpi slt, %45, %83 : vector<64x128xi32>
    %cst_51 = arith.constant 0.000000e+00 : f32
    %85 = vector.broadcast %cst_51 : f32 to vector<64x128xf32>
    %86 = arith.select %55, %65, %85 : vector<64x128xi1>, vector<64x128xf32>
    %87 = arith.select %84, %44, %86 : vector<64x128xi1>, vector<64x128xf32>
    %88 = arith.select %50, %82, %87 : vector<64x128xi1>, vector<64x128xf32>
    %89 = arith.select %79, %80, %88 : vector<64x128xi1>, vector<64x128xf32>
    %90 = arith.select %72, %77, %89 : vector<64x128xi1>, vector<64x128xf32>
    %91 = vector.shape_cast %90 : vector<64x128xf32> to vector<8x8x128xf32>
    %c0_52 = arith.constant 0 : index
    %c0_53 = arith.constant 0 : index
    %c0_54 = arith.constant 0 : index
    %92 = vector.load %arg9[%c0_52, %c0_53, %c0_54] : memref<8x8x128xf32, #tpu.memory_space<vmem>>, vector<8x8x128xf32>
    tpu.vector_store %arg9[%c0_52, %c0_53, %c0_54], %91 {strides = array<i32>} : memref<8x8x128xf32, #tpu.memory_space<vmem>>, vector<8x8x128xf32>,
    %c0_55 = arith.constant 0 : index
    %c0_56 = arith.constant 0 : index
    %c0_57 = arith.constant 0 : index
    %93 = vector.load %arg14[%c0_55, %c0_56, %c0_57] : memref<2x8x128xf32, #tpu.memory_space<vmem>>, vector<2x8x128xf32>
    %c0_58 = arith.constant 0 : index
    %c0_59 = arith.constant 0 : index
    %c0_60 = arith.constant 0 : index
    %94 = vector.load %arg10[%c0_58, %c0_59, %c0_60] : memref<2x8x128xf32, #tpu.memory_space<vmem>>, vector<2x8x128xf32>
    tpu.vector_store %arg10[%c0_58, %c0_59, %c0_60], %93 {strides = array<i32>} : memref<2x8x128xf32, #tpu.memory_space<vmem>>, vector<2x8x128xf32>,
    %c0_61 = arith.constant 0 : index
    %c0_62 = arith.constant 0 : index
    %c0_63 = arith.constant 0 : index
    %95 = vector.load %arg15[%c0_61, %c0_62, %c0_63] : memref<2x8x128xf32, #tpu.memory_space<vmem>>, vector<2x8x128xf32>
    %c0_64 = arith.constant 0 : index
    %c0_65 = arith.constant 0 : index
    %c0_66 = arith.constant 0 : index
    %96 = vector.load %arg11[%c0_64, %c0_65, %c0_66] : memref<2x8x128xf32, #tpu.memory_space<vmem>>, vector<2x8x128xf32>
    tpu.vector_store %arg11[%c0_64, %c0_65, %c0_66], %95 {strides = array<i32>} : memref<2x8x128xf32, #tpu.memory_space<vmem>>, vector<2x8x128xf32>,
    return
  }
  func.func @transform_0(%arg0: i32, %arg1: i32) -> (i32, i32) {
    %c0_i32 = arith.constant 0 : i32
    %c0_i32_0 = arith.constant 0 : i32
    return %arg0, %c0_i32 : i32, i32
  }
  func.func @transform_1(%arg0: i32, %arg1: i32) -> (i32, i32, i32) {
    %c0_i32 = arith.constant 0 : i32
    %c0_i32_0 = arith.constant 0 : i32
    return %arg1, %arg0, %c0_i32 : i32, i32, i32
  }
  func.func @transform_2(%arg0: i32, %arg1: i32) -> (i32, i32, i32) {
    %c0_i32 = arith.constant 0 : i32
    %c0_i32_0 = arith.constant 0 : i32
    %c0_i32_1 = arith.constant 0 : i32
    %c0_i32_2 = arith.constant 0 : i32
    return %c0_i32, %c0_i32_0, %c0_i32_1 : i32, i32, i32
  }
  func.func @transform_3(%arg0: i32, %arg1: i32) -> (i32, i32, i32) {
    %c0_i32 = arith.constant 0 : i32
    %c0_i32_0 = arith.constant 0 : i32
    %c0_i32_1 = arith.constant 0 : i32
    %c0_i32_2 = arith.constant 0 : i32
    return %c0_i32, %c0_i32_0, %c0_i32_1 : i32, i32, i32
  }
  func.func @transform_4(%arg0: i32, %arg1: i32) -> (i32, i32, i32) {
    %c0_i32 = arith.constant 0 : i32
    %c0_i32_0 = arith.constant 0 : i32
    %c0_i32_1 = arith.constant 0 : i32
    %c0_i32_2 = arith.constant 0 : i32
    return %c0_i32, %c0_i32_0, %c0_i32_1 : i32, i32, i32
  }
  func.func @transform_5(%arg0: i32, %arg1: i32) -> (i32, i32, i32) {
    %c0_i32 = arith.constant 0 : i32
    %c0_i32_0 = arith.constant 0 : i32
    %c0_i32_1 = arith.constant 0 : i32
    %c0_i32_2 = arith.constant 0 : i32
    return %c0_i32, %c0_i32_0, %c0_i32_1 : i32, i32, i32
  }
  func.func @transform_6(%arg0: i32, %arg1: i32) -> (i32, i32) {
    %c0_i32 = arith.constant 0 : i32
    %c0_i32_0 = arith.constant 0 : i32
    %c0_i32_1 = arith.constant 0 : i32
    return %c0_i32, %c0_i32_0 : i32, i32
  }
  func.func @transform_7(%arg0: i32, %arg1: i32) -> (i32, i32, i32) {
    %c0_i32 = arith.constant 0 : i32
    %c0_i32_0 = arith.constant 0 : i32
    return %arg1, %arg0, %c0_i32 : i32, i32, i32
  }
  func.func @transform_8(%arg0: i32, %arg1: i32) -> (i32, i32, i32) {
    %c0_i32 = arith.constant 0 : i32
    %c0_i32_0 = arith.constant 0 : i32
    %c0_i32_1 = arith.constant 0 : i32
    return %c0_i32, %arg0, %c0_i32_0 : i32, i32, i32
  }
  func.func @transform_9(%arg0: i32, %arg1: i32) -> (i32, i32, i32) {
    %c0_i32 = arith.constant 0 : i32
    %c0_i32_0 = arith.constant 0 : i32
    %c0_i32_1 = arith.constant 0 : i32
    return %c0_i32, %arg0, %c0_i32_0 : i32, i32, i32
  }
}

</mosaic_0001>

<llo_original>
// kernel: tpu_custom_call.1
$region0: #{tpu_custom_call.1}
  #allocation0 [shape = 'u32[]', space=smem, size = 0x4, offset = 0x4, fixed_abs, tag = 'smem constant byte address 0x4 - core index']
  #allocation1 [shape = 'u32[144,128]{1,0:T(1,128)}', space=vmem, size = 0x12000, scoped, tag = 'internal scratch']
  #allocation2 [shape = 'f32[2,64,512]{2,1,0:T(8,128)}', space=vmem, size = 0x40000, scoped, tag = 'scratch operand']
  #allocation3 [shape = 'f32[2,64,128]{2,1,0:T(8,128)}', space=vmem, size = 0x10000, scoped, tag = 'scratch operand']
  #allocation4 [shape = 'f32[2,8,128]{2,1,0:T(8,128)}', space=vmem, size = 0x2000, scoped, tag = 'scratch operand']
  #allocation5 [shape = 'f32[2,8,128]{2,1,0:T(8,128)}', space=vmem, size = 0x2000, scoped, tag = 'scratch operand']
  %s0 = inlined_call_operand.vmem [shape: s32[8,1], index: 0, kind: input, shape index: {}]
  %s1 = inlined_call_operand.vmem [shape: f32[8,8,3], index: 1, kind: input, shape index: {}]
  %s2 = inlined_call_operand.vmem [shape: bf16[2,3,512], index: 2, kind: input, shape index: {}]
  %s3 = inlined_call_operand.hbm [shape: bf16[2,256,512], index: 3, kind: input, shape index: {}]
  %s4 = inlined_call_operand.vmem [shape: f32[2,1,512], index: 4, kind: input, shape index: {}]
  %s5 = inlined_call_operand.vmem [shape: bf16[2,128,128], index: 5, kind: input, shape index: {}]
  %s6 = inlined_call_operand.vmem [shape: f32[1,128], index: 6, kind: input, shape index: {}]
  %s7 = inlined_call_operand.hbm [shape: f32[8,8,128], index: 7, kind: output, shape index: {0}]
  %s8 = inlined_call_operand.hbm [shape: f32[2,8,128], index: 8, kind: output, shape index: {1}]
  %s9 = inlined_call_operand.hbm [shape: f32[2,8,128], index: 9, kind: output, shape index: {2}]
  %10 = xla_tuple %s7, %s8, %s9
  %s11 = sld [smem:[#allocation0]]
  $region69: #{tpu_custom_call.1} parent=0
    _
  %s13 = ssub.s32 1, %s11
  %s14 = scalar_select 0, %s13, %s11
  $region1: #{tpu_custom_call.1} parent=0
    #allocation6 [shape = 'u8[524288]{0}', space=vmem, size = 0x80000, scoped, tag = 'input window, operand 3, single buffered']
    #allocation7 [shape = 's32[1]{0}', space=sflag, size = 0x4, scoped, tag = 'scoped memory for tpu_custom_call.1']
    #allocation8 [shape = 's32[1]{0}', space=sflag, size = 0x4, scoped, tag = 'scoped memory for tpu_custom_call.1']
    #allocation9 [shape = 'u8[32768]{0}', space=vmem, size = 0x8000, scoped, tag = 'output window, operand 0, single buffered']
    #allocation10 [shape = 'u8[8192]{0}', space=vmem, size = 0x2000, scoped, tag = 'output window, operand 1, single buffered']
    #allocation11 [shape = 's32[1]{0}', space=sflag, size = 0x4, scoped, tag = 'scoped memory for tpu_custom_call.1']
    #allocation12 [shape = 'u8[8192]{0}', space=vmem, size = 0x2000, scoped, tag = 'output window, operand 2, single buffered']
    %15 = vsyncpa [#allocation7], 0
    %16 = vsyncpa [#allocation8], 0
    %17 = vsyncpa [#allocation11], 0
    // Predicated region
    $region2: #{tpu_custom_call.1} parent=1 // pred_check
      _
    $region3: #{tpu_custom_call.1} parent=1 // pred_check_branch
      %19 = sbr.rel (0) target = $region5
    $region4: #{tpu_custom_call.1} parent=1 // pred_region
      _
    $region5: #{tpu_custom_call.1} parent=1 // pred_fallthru
      _
    // Predicated region
    $region6: #{tpu_custom_call.1} parent=1 // pred_check
      _
    $region7: #{tpu_custom_call.1} parent=1 // pred_check_branch
      %21 = sbr.rel (0) target = $region9
    $region8: #{tpu_custom_call.1} parent=1 // pred_region
      _
    $region9: #{tpu_custom_call.1} parent=1 // pred_fallthru
      _
    // Predicated region
    $region10: #{tpu_custom_call.1} parent=1 // pred_check
      _
    $region11: #{tpu_custom_call.1} parent=1 // pred_check_branch
      %23 = sbr.rel (0) target = $region13
    $region12: #{tpu_custom_call.1} parent=1 // pred_region
      _
    $region13: #{tpu_custom_call.1} parent=1 // pred_fallthru
      _
    // Predicated region
    $region14: #{tpu_custom_call.1} parent=1 // pred_check
      _
    $region15: #{tpu_custom_call.1} parent=1 // pred_check_branch
      %25 = sbr.rel (0) target = $region17
    $region16: #{tpu_custom_call.1} parent=1 // pred_region
      %s27 = ssub.s32 16384, 16384
      %28 = vsyncadd [#allocation7], %s27
      %s29 = sshll.u32 [#allocation6], 4
      %s30 = int_to_ptr.vmem [resolvable:$true] %s29
      %35 = dma.hbm_to_vmem [thread:$0]  %s3, 16384, %s30, [#allocation7], 256, 256, 16
    $region17: #{tpu_custom_call.1} parent=1 // pred_fallthru
      _
    // Predicated region
    $region18: #{tpu_custom_call.1} parent=1 // pred_check
      _
    $region19: #{tpu_custom_call.1} parent=1 // pred_check_branch
      %37 = sbr.rel (0) target = $region21
    $region20: #{tpu_custom_call.1} parent=1 // pred_region
      _
    $region21: #{tpu_custom_call.1} parent=1 // pred_fallthru
      _
    // Predicated region
    $region22: #{tpu_custom_call.1} parent=1 // pred_check
      _
    $region23: #{tpu_custom_call.1} parent=1 // pred_check_branch
      %39 = sbr.rel (0) target = $region25
    $region24: #{tpu_custom_call.1} parent=1 // pred_region
      _
    $region25: #{tpu_custom_call.1} parent=1 // pred_fallthru
      _
    // Predicated region
    $region26: #{tpu_custom_call.1} parent=1 // pred_check
      _
    $region27: #{tpu_custom_call.1} parent=1 // pred_check_branch
      %41 = sbr.rel (0) target = $region29
    $region28: #{tpu_custom_call.1} parent=1 // pred_region
      _
    $region29: #{tpu_custom_call.1} parent=1 // pred_fallthru
      _
    // Predicated region
    $region30: #{tpu_custom_call.1} parent=1 // pred_check
      _
    $region31: #{tpu_custom_call.1} parent=1 // pred_check_branch
      %43 = sbr.rel (0) target = $region33
    $region32: #{tpu_custom_call.1} parent=1 // pred_region
      %44 = dma.done [#allocation7], 16384
    $region33: #{tpu_custom_call.1} parent=1 // pred_fallthru
      _
    %p46 = scmp.eq.s32.totalorder 0, 0
    // Predicated region
    $region34: #{tpu_custom_call.1} parent=1 // pred_check
      %p47 = pneg %p46
    $region35: #{tpu_custom_call.1} parent=1 // pred_check_branch
      %49 = sbr.rel (%p47) target = $region37
    $region36: #{tpu_custom_call.1} parent=1 // pred_region
      %50 = vst [vmem:[#allocation4] sm:$0xff] 0.0
      %51 = vst [vmem:[#allocation4 + $0x8] sm:$0xff] 0.0
      %52 = vst [vmem:[#allocation5] sm:$0xff] 0.0
      %53 = vst [vmem:[#allocation5 + $0x8] sm:$0xff] 0.0
    $region37: #{tpu_custom_call.1} parent=1 // pred_fallthru
      _
    %v54 = vld [vmem:[%s1] sm:$0xff]
    %v55 = vld [vmem:[%s1 + $0x8] sm:$0xff]
    %v56 = vld [vmem:[%s1 + $0x10] sm:$0xff]
    %v57 = vld [vmem:[%s1 + $0x18] sm:$0xff]
    %v58 = vld [vmem:[%s1 + $0x20] sm:$0xff]
    %v59 = vld [vmem:[%s1 + $0x28] sm:$0xff]
    %v60 = vld [vmem:[%s1 + $0x30] sm:$0xff]
    %v61 = vld [vmem:[%s1 + $0x38] sm:$0xff]
    %v62 = vpack.c.bf16 %v55, %v54
    %v63 = vpack.c.bf16 %v57, %v56
    %v64 = vpack.c.bf16 %v59, %v58
    %v65 = vpack.c.bf16 %v61, %v60
    %v66 = vld [vmem:[%s2] sm:$0xff]
    %v67 = vld [vmem:[%s4] sm:$0xf]
    %v69 = vlaneseq
    %v70 = vshrl.u32 %v69, 7
    %v71 = vsub.s32 0, %v70
    %v72 = vrot.slane %v67, %v71
    %v73 = vlaneseq
    %v74 = vshrl.u32 %v73, 7
    %v75 = vsub.s32 1, %v74
    %v76 = vrot.slane %v67, %v75
    %v77 = vlaneseq
    %v78 = vshrl.u32 %v77, 7
    %v79 = vsub.s32 2, %v78
    %v80 = vrot.slane %v67, %v79
    %v81 = vlaneseq
    %v82 = vshrl.u32 %v81, 7
    %v83 = vsub.s32 3, %v82
    %v84 = vrot.slane %v67, %v83
    %v90 = vcombine.high %v66, %v66
    %v92 = vunpack.c.l.s4 1983009808
    %v93 = vunpack.c.0.s8 %v92
    %v94 = vlaneseq
    %v95 = vshrl.u32 %v94, 7
    %v96 = vsub.s32 %v93, %v95
    %v97 = vrot.slane %v66, %v96
    %v99 = vunpack.c.l.s4 1983009808
    %v100 = vunpack.c.0.s8 %v99
    %v101 = vlaneseq
    %v102 = vshrl.u32 %v101, 7
    %v103 = vsub.s32 %v100, %v102
    %v104 = vrot.slane %v90, %v103
    %v105 = vcombine.high %v97, %v97
    %v106 = vcombine.high %v104, %v104
    %vm107 = vcmask 23552
    %v109 = vsel %vm107, %v62, 0
    %v112 = vsel %vm107, %v63, 0
    %v115 = vsel %vm107, %v64, 0
    %v118 = vsel %vm107, %v65, 0
    %vm120 = vcmask 1040384
    %vm121 = vcmask 1041408
    %v122 = vsel %vm120, 4294967295, 65535
    %v123 = vsel %vm121, %v122, 0
    %v125 = vand.u32 %v97, %v123
    %v128 = vand.u32 %v105, %v123
    %v131 = vand.u32 %v104, %v123
    %v134 = vand.u32 %v106, %v123
    %136 = vmatprep.subr.bf16.mxu0 %v128
    %137 = vmatpush1.bf16.msra.mxu0 %v125
    %138 = vmatprep.subr.bf16.mxu0 0
    %139 = vmatpush1.bf16.msra.mxu0 0
    %140 = vmatprep.subr.bf16.mxu0 0
    %141 = vmatpush1.bf16.msra.mxu0 0
    %142 = vmatprep.subr.bf16.mxu0 0
    %143 = vmatpush1.bf16.msra.mxu0 0
    %144 = vmatprep.subr.bf16.mxu0 0
    %145 = vmatpush1.bf16.msra.mxu0 0
    %146 = vmatprep.subr.bf16.mxu0 0
    %147 = vmatpush1.bf16.msra.mxu0 0
    %148 = vmatprep.subr.bf16.mxu0 0
    %149 = vmatpush1.bf16.msra.mxu0 0
    %150 = vmatprep.subr.bf16.mxu0 0
    %151 = vmatpush1.bf16.msra.mxu0 0
    %152 = vmatprep.subr.bf16.mxu0 0
    %153 = vmatpush1.bf16.msra.mxu0 0
    %154 = vmatprep.subr.bf16.mxu0 0
    %155 = vmatpush1.bf16.msra.mxu0 0
    %156 = vmatprep.subr.bf16.mxu0 0
    %157 = vmatpush1.bf16.msra.mxu0 0
    %158 = vmatprep.subr.bf16.mxu0 0
    %159 = vmatpush1.bf16.msra.mxu0 0
    %160 = vmatprep.subr.bf16.mxu0 0
    %161 = vmatpush1.bf16.msra.mxu0 0
    %162 = vmatprep.subr.bf16.mxu0 0
    %163 = vmatpush1.bf16.msra.mxu0 0
    %164 = vmatprep.subr.bf16.mxu0 0
    %165 = vmatpush1.bf16.msra.mxu0 0
    %166 = vmatprep.subr.bf16.mxu0 0
    %167 = vmatpush1.bf16.msra.mxu0 0
    %168 = vmatprep.mubr.bf16.mxu0 0
    %169 = vmatmul.mubr.bf16.gmra.mrb[0].mxu0 %v109
    %v170 = vpop.f32.mrb[0].mxu0
    %v171 = vadd.f32 %v72, %v170
    %v172 = vpop.f32.mrb[0].mxu0
    %v173 = vadd.f32 %v76, %v172
    %v174 = vpop.f32.mrb[0].mxu0
    %v175 = vadd.f32 %v72, %v174
    %v176 = vpop.f32.mrb[0].mxu0
    %v177 = vadd.f32 %v76, %v176
    %178 = vmatprep.mubr.bf16.mxu0 0
    %179 = vmatmul.mubr.bf16.gmra.mrb[0].mxu0 %v112
    %v180 = vpop.f32.mrb[0].mxu0
    %v181 = vadd.f32 %v72, %v180
    %v182 = vpop.f32.mrb[0].mxu0
    %v183 = vadd.f32 %v76, %v182
    %v184 = vpop.f32.mrb[0].mxu0
    %v185 = vadd.f32 %v72, %v184
    %v186 = vpop.f32.mrb[0].mxu0
    %v187 = vadd.f32 %v76, %v186
    %188 = vmatprep.mubr.bf16.mxu0 0
    %189 = vmatmul.mubr.bf16.gmra.mrb[0].mxu0 %v115
    %v190 = vpop.f32.mrb[0].mxu0
    %v191 = vadd.f32 %v72, %v190
    %v192 = vpop.f32.mrb[0].mxu0
    %v193 = vadd.f32 %v76, %v192
    %v194 = vpop.f32.mrb[0].mxu0
    %v195 = vadd.f32 %v72, %v194
    %v196 = vpop.f32.mrb[0].mxu0
    %v197 = vadd.f32 %v76, %v196
    %198 = vmatprep.mubr.bf16.mxu0 0
    %199 = vmatmul.mubr.bf16.gmra.mrb[0].mxu0 %v118
    %v200 = vpop.f32.mrb[0].mxu0
    %v201 = vadd.f32 %v72, %v200
    %v202 = vpop.f32.mrb[0].mxu0
    %v203 = vadd.f32 %v76, %v202
    %v204 = vpop.f32.mrb[0].mxu0
    %v205 = vadd.f32 %v72, %v204
    %v206 = vpop.f32.mrb[0].mxu0
    %v207 = vadd.f32 %v76, %v206
    %208 = vdwg.mxu0
    %209 = vmatprep.subr.bf16.mxu0 %v134
    %210 = vmatpush1.bf16.msra.mxu0 %v131
    %211 = vmatprep.subr.bf16.mxu0 0
    %212 = vmatpush1.bf16.msra.mxu0 0
    %213 = vmatprep.subr.bf16.mxu0 0
    %214 = vmatpush1.bf16.msra.mxu0 0
    %215 = vmatprep.subr.bf16.mxu0 0
    %216 = vmatpush1.bf16.msra.mxu0 0
    %217 = vmatprep.subr.bf16.mxu0 0
    %218 = vmatpush1.bf16.msra.mxu0 0
    %219 = vmatprep.subr.bf16.mxu0 0
    %220 = vmatpush1.bf16.msra.mxu0 0
    %221 = vmatprep.subr.bf16.mxu0 0
    %222 = vmatpush1.bf16.msra.mxu0 0
    %223 = vmatprep.subr.bf16.mxu0 0
    %224 = vmatpush1.bf16.msra.mxu0 0
    %225 = vmatprep.subr.bf16.mxu0 0
    %226 = vmatpush1.bf16.msra.mxu0 0
    %227 = vmatprep.subr.bf16.mxu0 0
    %228 = vmatpush1.bf16.msra.mxu0 0
    %229 = vmatprep.subr.bf16.mxu0 0
    %230 = vmatpush1.bf16.msra.mxu0 0
    %231 = vmatprep.subr.bf16.mxu0 0
    %232 = vmatpush1.bf16.msra.mxu0 0
    %233 = vmatprep.subr.bf16.mxu0 0
    %234 = vmatpush1.bf16.msra.mxu0 0
    %235 = vmatprep.subr.bf16.mxu0 0
    %236 = vmatpush1.bf16.msra.mxu0 0
    %237 = vmatprep.subr.bf16.mxu0 0
    %238 = vmatpush1.bf16.msra.mxu0 0
    %239 = vmatprep.subr.bf16.mxu0 0
    %240 = vmatpush1.bf16.msra.mxu0 0
    %241 = vmatprep.mubr.bf16.mxu0 0
    %242 = vmatmul.mubr.bf16.gmra.mrb[0].mxu0 %v109
    %v243 = vpop.f32.mrb[0].mxu0
    %v244 = vadd.f32 %v80, %v243
    %v245 = vpop.f32.mrb[0].mxu0
    %v246 = vadd.f32 %v84, %v245
    %v247 = vpop.f32.mrb[0].mxu0
    %v248 = vadd.f32 %v80, %v247
    %v249 = vpop.f32.mrb[0].mxu0
    %v250 = vadd.f32 %v84, %v249
    %251 = vmatprep.mubr.bf16.mxu0 0
    %252 = vmatmul.mubr.bf16.gmra.mrb[0].mxu0 %v112
    %v253 = vpop.f32.mrb[0].mxu0
    %v254 = vadd.f32 %v80, %v253
    %v255 = vpop.f32.mrb[0].mxu0
    %v256 = vadd.f32 %v84, %v255
    %v257 = vpop.f32.mrb[0].mxu0
    %v258 = vadd.f32 %v80, %v257
    %v259 = vpop.f32.mrb[0].mxu0
    %v260 = vadd.f32 %v84, %v259
    %261 = vmatprep.mubr.bf16.mxu0 0
    %262 = vmatmul.mubr.bf16.gmra.mrb[0].mxu0 %v115
    %v263 = vpop.f32.mrb[0].mxu0
    %v264 = vadd.f32 %v80, %v263
    %v265 = vpop.f32.mrb[0].mxu0
    %v266 = vadd.f32 %v84, %v265
    %v267 = vpop.f32.mrb[0].mxu0
    %v268 = vadd.f32 %v80, %v267
    %v269 = vpop.f32.mrb[0].mxu0
    %v270 = vadd.f32 %v84, %v269
    %271 = vmatprep.mubr.bf16.mxu0 0
    %272 = vmatmul.mubr.bf16.gmra.mrb[0].mxu0 %v118
    %v273 = vpop.f32.mrb[0].mxu0
    %v274 = vadd.f32 %v80, %v273
    %v275 = vpop.f32.mrb[0].mxu0
    %v276 = vadd.f32 %v84, %v275
    %v277 = vpop.f32.mrb[0].mxu0
    %v278 = vadd.f32 %v80, %v277
    %v279 = vpop.f32.mrb[0].mxu0
    %v280 = vadd.f32 %v84, %v279
    %281 = vdwg.mxu0
    %282 = vst [vmem:[#allocation2] sm:$0xff] %v171
    %283 = vst [vmem:[#allocation2 + $0x8] sm:$0xff] %v173
    %284 = vst [vmem:[#allocation2 + $0x10] sm:$0xff] %v244
    %285 = vst [vmem:[#allocation2 + $0x18] sm:$0xff] %v246
    %286 = vst [vmem:[#allocation2 + $0x20] sm:$0xff] %v175
    %287 = vst [vmem:[#allocation2 + $0x28] sm:$0xff] %v177
    %288 = vst [vmem:[#allocation2 + $0x30] sm:$0xff] %v248
    %289 = vst [vmem:[#allocation2 + $0x38] sm:$0xff] %v250
    %290 = vst [vmem:[#allocation2 + $0x40] sm:$0xff] %v181
    %291 = vst [vmem:[#allocation2 + $0x48] sm:$0xff] %v183
    %292 = vst [vmem:[#allocation2 + $0x50] sm:$0xff] %v254
    %293 = vst [vmem:[#allocation2 + $0x58] sm:$0xff] %v256
    %294 = vst [vmem:[#allocation2 + $0x60] sm:$0xff] %v185
    %295 = vst [vmem:[#allocation2 + $0x68] sm:$0xff] %v187
    %296 = vst [vmem:[#allocation2 + $0x70] sm:$0xff] %v258
    %297 = vst [vmem:[#allocation2 + $0x78] sm:$0xff] %v260
    %298 = vst [vmem:[#allocation2 + $0x80] sm:$0xff] %v191
    %299 = vst [vmem:[#allocation2 + $0x88] sm:$0xff] %v193
    %300 = vst [vmem:[#allocation2 + $0x90] sm:$0xff] %v264
    %301 = vst [vmem:[#allocation2 + $0x98] sm:$0xff] %v266
    %302 = vst [vmem:[#allocation2 + $0xa0] sm:$0xff] %v195
    %303 = vst [vmem:[#allocation2 + $0xa8] sm:$0xff] %v197
    %304 = vst [vmem:[#allocation2 + $0xb0] sm:$0xff] %v268
    %305 = vst [vmem:[#allocation2 + $0xb8] sm:$0xff] %v270
    %306 = vst [vmem:[#allocation2 + $0xc0] sm:$0xff] %v201
    %307 = vst [vmem:[#allocation2 + $0xc8] sm:$0xff] %v203
    %308 = vst [vmem:[#allocation2 + $0xd0] sm:$0xff] %v274
    %309 = vst [vmem:[#allocation2 + $0xd8] sm:$0xff] %v276
    %310 = vst [vmem:[#allocation2 + $0xe0] sm:$0xff] %v205
    %311 = vst [vmem:[#allocation2 + $0xe8] sm:$0xff] %v207
    %312 = vst [vmem:[#allocation2 + $0xf0] sm:$0xff] %v278
    %313 = vst [vmem:[#allocation2 + $0xf8] sm:$0xff] %v280
    %s314 = scalar_lea.vmem %s2, 8
    %v315 = vld [vmem:[%s314] sm:$0xff]
    %s316 = scalar_lea.vmem %s4, 4
    %v317 = vld [vmem:[%s316] sm:$0xf]
    %v319 = vlaneseq
    %v320 = vshrl.u32 %v319, 7
    %v321 = vsub.s32 0, %v320
    %v322 = vrot.slane %v317, %v321
    %v323 = vlaneseq
    %v324 = vshrl.u32 %v323, 7
    %v325 = vsub.s32 1, %v324
    %v326 = vrot.slane %v317, %v325
    %v327 = vlaneseq
    %v328 = vshrl.u32 %v327, 7
    %v329 = vsub.s32 2, %v328
    %v330 = vrot.slane %v317, %v329
    %v331 = vlaneseq
    %v332 = vshrl.u32 %v331, 7
    %v333 = vsub.s32 3, %v332
    %v334 = vrot.slane %v317, %v333
    %v340 = vcombine.high %v315, %v315
    %v342 = vunpack.c.l.s4 1983009808
    %v343 = vunpack.c.0.s8 %v342
    %v344 = vlaneseq
    %v345 = vshrl.u32 %v344, 7
    %v346 = vsub.s32 %v343, %v345
    %v347 = vrot.slane %v315, %v346
    %v349 = vunpack.c.l.s4 1983009808
    %v350 = vunpack.c.0.s8 %v349
    %v351 = vlaneseq
    %v352 = vshrl.u32 %v351, 7
    %v353 = vsub.s32 %v350, %v352
    %v354 = vrot.slane %v340, %v353
    %v355 = vcombine.high %v347, %v347
    %v356 = vcombine.high %v354, %v354
    %v358 = vand.u32 %v347, %v123
    %v361 = vand.u32 %v355, %v123
    %v364 = vand.u32 %v354, %v123
    %v367 = vand.u32 %v356, %v123
    %369 = vmatprep.subr.bf16.mxu0 %v361
    %370 = vmatpush1.bf16.msra.mxu0 %v358
    %371 = vmatprep.subr.bf16.mxu0 0
    %372 = vmatpush1.bf16.msra.mxu0 0
    %373 = vmatprep.subr.bf16.mxu0 0
    %374 = vmatpush1.bf16.msra.mxu0 0
    %375 = vmatprep.subr.bf16.mxu0 0
    %376 = vmatpush1.bf16.msra.mxu0 0
    %377 = vmatprep.subr.bf16.mxu0 0
    %378 = vmatpush1.bf16.msra.mxu0 0
    %379 = vmatprep.subr.bf16.mxu0 0
    %380 = vmatpush1.bf16.msra.mxu0 0
    %381 = vmatprep.subr.bf16.mxu0 0
    %382 = vmatpush1.bf16.msra.mxu0 0
    %383 = vmatprep.subr.bf16.mxu0 0
    %384 = vmatpush1.bf16.msra.mxu0 0
    %385 = vmatprep.subr.bf16.mxu0 0
    %386 = vmatpush1.bf16.msra.mxu0 0
    %387 = vmatprep.subr.bf16.mxu0 0
    %388 = vmatpush1.bf16.msra.mxu0 0
    %389 = vmatprep.subr.bf16.mxu0 0
    %390 = vmatpush1.bf16.msra.mxu0 0
    %391 = vmatprep.subr.bf16.mxu0 0
    %392 = vmatpush1.bf16.msra.mxu0 0
    %393 = vmatprep.subr.bf16.mxu0 0
    %394 = vmatpush1.bf16.msra.mxu0 0
    %395 = vmatprep.subr.bf16.mxu0 0
    %396 = vmatpush1.bf16.msra.mxu0 0
    %397 = vmatprep.subr.bf16.mxu0 0
    %398 = vmatpush1.bf16.msra.mxu0 0
    %399 = vmatprep.subr.bf16.mxu0 0
    %400 = vmatpush1.bf16.msra.mxu0 0
    %401 = vmatprep.mubr.bf16.mxu0 0
    %402 = vmatmul.mubr.bf16.gmra.mrb[0].mxu0 %v109
    %v403 = vpop.f32.mrb[0].mxu0
    %v404 = vadd.f32 %v322, %v403
    %v405 = vpop.f32.mrb[0].mxu0
    %v406 = vadd.f32 %v326, %v405
    %v407 = vpop.f32.mrb[0].mxu0
    %v408 = vadd.f32 %v322, %v407
    %v409 = vpop.f32.mrb[0].mxu0
    %v410 = vadd.f32 %v326, %v409
    %411 = vmatprep.mubr.bf16.mxu0 0
    %412 = vmatmul.mubr.bf16.gmra.mrb[0].mxu0 %v112
    %v413 = vpop.f32.mrb[0].mxu0
    %v414 = vadd.f32 %v322, %v413
    %v415 = vpop.f32.mrb[0].mxu0
    %v416 = vadd.f32 %v326, %v415
    %v417 = vpop.f32.mrb[0].mxu0
    %v418 = vadd.f32 %v322, %v417
    %v419 = vpop.f32.mrb[0].mxu0
    %v420 = vadd.f32 %v326, %v419
    %421 = vmatprep.mubr.bf16.mxu0 0
    %422 = vmatmul.mubr.bf16.gmra.mrb[0].mxu0 %v115
    %v423 = vpop.f32.mrb[0].mxu0
    %v424 = vadd.f32 %v322, %v423
    %v425 = vpop.f32.mrb[0].mxu0
    %v426 = vadd.f32 %v326, %v425
    %v427 = vpop.f32.mrb[0].mxu0
    %v428 = vadd.f32 %v322, %v427
    %v429 = vpop.f32.mrb[0].mxu0
    %v430 = vadd.f32 %v326, %v429
    %431 = vmatprep.mubr.bf16.mxu0 0
    %432 = vmatmul.mubr.bf16.gmra.mrb[0].mxu0 %v118
    %v433 = vpop.f32.mrb[0].mxu0
    %v434 = vadd.f32 %v322, %v433
    %v435 = vpop.f32.mrb[0].mxu0
    %v436 = vadd.f32 %v326, %v435
    %v437 = vpop.f32.mrb[0].mxu0
    %v438 = vadd.f32 %v322, %v437
    %v439 = vpop.f32.mrb[0].mxu0
    %v440 = vadd.f32 %v326, %v439
    %441 = vdwg.mxu0
    %442 = vmatprep.subr.bf16.mxu0 %v367
    %443 = vmatpush1.bf16.msra.mxu0 %v364
    %444 = vmatprep.subr.bf16.mxu0 0
    %445 = vmatpush1.bf16.msra.mxu0 0
    %446 = vmatprep.subr.bf16.mxu0 0
    %447 = vmatpush1.bf16.msra.mxu0 0
    %448 = vmatprep.subr.bf16.mxu0 0
    %449 = vmatpush1.bf16.msra.mxu0 0
    %450 = vmatprep.subr.bf16.mxu0 0
    %451 = vmatpush1.bf16.msra.mxu0 0
    %452 = vmatprep.subr.bf16.mxu0 0
    %453 = vmatpush1.bf16.msra.mxu0 0
    %454 = vmatprep.subr.bf16.mxu0 0
    %455 = vmatpush1.bf16.msra.mxu0 0
    %456 = vmatprep.subr.bf16.mxu0 0
    %457 = vmatpush1.bf16.msra.mxu0 0
    %458 = vmatprep.subr.bf16.mxu0 0
    %459 = vmatpush1.bf16.msra.mxu0 0
    %460 = vmatprep.subr.bf16.mxu0 0
    %461 = vmatpush1.bf16.msra.mxu0 0
    %462 = vmatprep.subr.bf16.mxu0 0
    %463 = vmatpush1.bf16.msra.mxu0 0
    %464 = vmatprep.subr.bf16.mxu0 0
    %465 = vmatpush1.bf16.msra.mxu0 0
    %466 = vmatprep.subr.bf16.mxu0 0
    %467 = vmatpush1.bf16.msra.mxu0 0
    %468 = vmatprep.subr.bf16.mxu0 0
    %469 = vmatpush1.bf16.msra.mxu0 0
    %470 = vmatprep.subr.bf16.mxu0 0
    %471 = vmatpush1.bf16.msra.mxu0 0
    %472 = vmatprep.subr.bf16.mxu0 0
    %473 = vmatpush1.bf16.msra.mxu0 0
    %474 = vmatprep.mubr.bf16.mxu0 0
    %475 = vmatmul.mubr.bf16.gmra.mrb[0].mxu0 %v109
    %v476 = vpop.f32.mrb[0].mxu0
    %v477 = vadd.f32 %v330, %v476
    %v478 = vpop.f32.mrb[0].mxu0
    %v479 = vadd.f32 %v334, %v478
    %v480 = vpop.f32.mrb[0].mxu0
    %v481 = vadd.f32 %v330, %v480
    %v482 = vpop.f32.mrb[0].mxu0
    %v483 = vadd.f32 %v334, %v482
    %484 = vmatprep.mubr.bf16.mxu0 0
    %485 = vmatmul.mubr.bf16.gmra.mrb[0].mxu0 %v112
    %v486 = vpop.f32.mrb[0].mxu0
    %v487 = vadd.f32 %v330, %v486
    %v488 = vpop.f32.mrb[0].mxu0
    %v489 = vadd.f32 %v334, %v488
    %v490 = vpop.f32.mrb[0].mxu0
    %v491 = vadd.f32 %v330, %v490
    %v492 = vpop.f32.mrb[0].mxu0
    %v493 = vadd.f32 %v334, %v492
    %494 = vmatprep.mubr.bf16.mxu0 0
    %495 = vmatmul.mubr.bf16.gmra.mrb[0].mxu0 %v115
    %v496 = vpop.f32.mrb[0].mxu0
    %v497 = vadd.f32 %v330, %v496
    %v498 = vpop.f32.mrb[0].mxu0
    %v499 = vadd.f32 %v334, %v498
    %v500 = vpop.f32.mrb[0].mxu0
    %v501 = vadd.f32 %v330, %v500
    %v502 = vpop.f32.mrb[0].mxu0
    %v503 = vadd.f32 %v334, %v502
    %504 = vmatprep.mubr.bf16.mxu0 0
    %505 = vmatmul.mubr.bf16.gmra.mrb[0].mxu0 %v118
    %v506 = vpop.f32.mrb[0].mxu0
    %v507 = vadd.f32 %v330, %v506
    %v508 = vpop.f32.mrb[0].mxu0
    %v509 = vadd.f32 %v334, %v508
    %v510 = vpop.f32.mrb[0].mxu0
    %v511 = vadd.f32 %v330, %v510
    %v512 = vpop.f32.mrb[0].mxu0
    %v513 = vadd.f32 %v334, %v512
    %514 = vdwg.mxu0
    %s515 = scalar_lea.vmem [#allocation2], 256
    %516 = vst [vmem:[%s515] sm:$0xff] %v404
    %517 = vst [vmem:[%s515 + $0x8] sm:$0xff] %v406
    %518 = vst [vmem:[%s515 + $0x10] sm:$0xff] %v477
    %519 = vst [vmem:[%s515 + $0x18] sm:$0xff] %v479
    %520 = vst [vmem:[%s515 + $0x20] sm:$0xff] %v408
    %521 = vst [vmem:[%s515 + $0x28] sm:$0xff] %v410
    %522 = vst [vmem:[%s515 + $0x30] sm:$0xff] %v481
    %523 = vst [vmem:[%s515 + $0x38] sm:$0xff] %v483
    %524 = vst [vmem:[%s515 + $0x40] sm:$0xff] %v414
    %525 = vst [vmem:[%s515 + $0x48] sm:$0xff] %v416
    %526 = vst [vmem:[%s515 + $0x50] sm:$0xff] %v487
    %527 = vst [vmem:[%s515 + $0x58] sm:$0xff] %v489
    %528 = vst [vmem:[%s515 + $0x60] sm:$0xff] %v418
    %529 = vst [vmem:[%s515 + $0x68] sm:$0xff] %v420
    %530 = vst [vmem:[%s515 + $0x70] sm:$0xff] %v491
    %531 = vst [vmem:[%s515 + $0x78] sm:$0xff] %v493
    %532 = vst [vmem:[%s515 + $0x80] sm:$0xff] %v424
    %533 = vst [vmem:[%s515 + $0x88] sm:$0xff] %v426
    %534 = vst [vmem:[%s515 + $0x90] sm:$0xff] %v497
    %535 = vst [vmem:[%s515 + $0x98] sm:$0xff] %v499
    %536 = vst [vmem:[%s515 + $0xa0] sm:$0xff] %v428
    %537 = vst [vmem:[%s515 + $0xa8] sm:$0xff] %v430
    %538 = vst [vmem:[%s515 + $0xb0] sm:$0xff] %v501
    %539 = vst [vmem:[%s515 + $0xb8] sm:$0xff] %v503
    %540 = vst [vmem:[%s515 + $0xc0] sm:$0xff] %v434
    %541 = vst [vmem:[%s515 + $0xc8] sm:$0xff] %v436
    %542 = vst [vmem:[%s515 + $0xd0] sm:$0xff] %v507
    %543 = vst [vmem:[%s515 + $0xd8] sm:$0xff] %v509
    %544 = vst [vmem:[%s515 + $0xe0] sm:$0xff] %v438
    %545 = vst [vmem:[%s515 + $0xe8] sm:$0xff] %v440
    %546 = vst [vmem:[%s515 + $0xf0] sm:$0xff] %v511
    %547 = vst [vmem:[%s515 + $0xf8] sm:$0xff] %v513
    %v548 = vld [vmem:[%s0] sm:$0xff]
    %s549 = smul.u32 0, 8
    loop: start=0, step=1, limit=8
    $region38: #{tpu_custom_call.1} parent=1 // loop_pre_header
      _
    $region39: #{tpu_custom_call.1} parent=1 // loop_header
      %s551 = sphi 0, %s555
      %p552 = scmp.ge.s32.totalorder %s551, 8
    $region40: #{tpu_custom_call.1} parent=1 // loop_header_branch
      %554 = sbr.rel (%p552) target = $region44
    $region41: #{tpu_custom_call.1} parent=1 // loop_body
      %s556 = sadd.s32 %s549, %s551
      %v557 = vstv %s556
      %vm558 = vcmp.gt.s32.totalorder %v548, %v557
      %s559 = smul.u32 %s551, 8
      %v560 = vld [vmem:[#allocation4] sm:$0xff]
      %v561 = vld [vmem:[#allocation5] sm:$0xff]
      %s562 = sshra.s32 %s559, 3
      %s563 = sand.u32 %s559, 7
      %s564 = smul.u32 %s562, 4
      %s565 = smul.addr %s564, 8
      %s566 = scalar_lea.vmem [#allocation2], %s565
      %v567 = vld [vmem:[%s566] sm:$0xff]
      %v568 = vld [vmem:[%s566 + $0x8] sm:$0xff]
      %v569 = vld [vmem:[%s566 + $0x10] sm:$0xff]
      %v570 = vld [vmem:[%s566 + $0x18] sm:$0xff]
      %v571 = vpack.c.bf16 %v560, %v560
      %v572 = vld [vmem:[#allocation6] sm:$0xff]
      %v573 = vld [vmem:[#allocation6 + $0x8] sm:$0xff]
      %v574 = vld [vmem:[#allocation6 + $0x10] sm:$0xff]
      %v575 = vld [vmem:[#allocation6 + $0x18] sm:$0xff]
      %v576 = vld [vmem:[#allocation6 + $0x20] sm:$0xff]
      %v577 = vld [vmem:[#allocation6 + $0x28] sm:$0xff]
      %v578 = vld [vmem:[#allocation6 + $0x30] sm:$0xff]
      %v579 = vld [vmem:[#allocation6 + $0x38] sm:$0xff]
      %v580 = vld [vmem:[#allocation6 + $0x40] sm:$0xff]
      %v581 = vld [vmem:[#allocation6 + $0x48] sm:$0xff]
      %v582 = vld [vmem:[#allocation6 + $0x50] sm:$0xff]
      %v583 = vld [vmem:[#allocation6 + $0x58] sm:$0xff]
      %v584 = vld [vmem:[#allocation6 + $0x60] sm:$0xff]
      %v585 = vld [vmem:[#allocation6 + $0x68] sm:$0xff]
      %v586 = vld [vmem:[#allocation6 + $0x70] sm:$0xff]
      %v587 = vld [vmem:[#allocation6 + $0x78] sm:$0xff]
      %v588 = vld [vmem:[#allocation6 + $0x80] sm:$0xff]
      %v589 = vld [vmem:[#allocation6 + $0x88] sm:$0xff]
      %v590 = vld [vmem:[#allocation6 + $0x90] sm:$0xff]
      %v591 = vld [vmem:[#allocation6 + $0x98] sm:$0xff]
      %v592 = vld [vmem:[#allocation6 + $0xa0] sm:$0xff]
      %v593 = vld [vmem:[#allocation6 + $0xa8] sm:$0xff]
      %v594 = vld [vmem:[#allocation6 + $0xb0] sm:$0xff]
      %v595 = vld [vmem:[#allocation6 + $0xb8] sm:$0xff]
      %v596 = vld [vmem:[#allocation6 + $0xc0] sm:$0xff]
      %v597 = vld [vmem:[#allocation6 + $0xc8] sm:$0xff]
      %v598 = vld [vmem:[#allocation6 + $0xd0] sm:$0xff]
      %v599 = vld [vmem:[#allocation6 + $0xd8] sm:$0xff]
      %v600 = vld [vmem:[#allocation6 + $0xe0] sm:$0xff]
      %v601 = vld [vmem:[#allocation6 + $0xe8] sm:$0xff]
      %v602 = vld [vmem:[#allocation6 + $0xf0] sm:$0xff]
      %v603 = vld [vmem:[#allocation6 + $0xf8] sm:$0xff]
      %v636 = vunpack.c.l.b16 %v572
      %v637 = vunpack.c.h.b16 %v572
      %v638 = vunpack.c.l.b16 %v573
      %v639 = vunpack.c.h.b16 %v573
      %v640 = vunpack.c.l.b16 %v574
      %v641 = vunpack.c.h.b16 %v574
      %v642 = vunpack.c.l.b16 %v575
      %v643 = vunpack.c.h.b16 %v575
      %v644 = vunpack.c.l.b16 %v576
      %v645 = vunpack.c.h.b16 %v576
      %v646 = vunpack.c.l.b16 %v577
      %v647 = vunpack.c.h.b16 %v577
      %v648 = vunpack.c.l.b16 %v578
      %v649 = vunpack.c.h.b16 %v578
      %v650 = vunpack.c.l.b16 %v579
      %v651 = vunpack.c.h.b16 %v579
      %v652 = vunpack.c.l.b16 %v580
      %v653 = vunpack.c.h.b16 %v580
      %v654 = vunpack.c.l.b16 %v581
      %v655 = vunpack.c.h.b16 %v581
      %v656 = vunpack.c.l.b16 %v582
      %v657 = vunpack.c.h.b16 %v582
      %v658 = vunpack.c.l.b16 %v583
      %v659 = vunpack.c.h.b16 %v583
      %v660 = vunpack.c.l.b16 %v584
      %v661 = vunpack.c.h.b16 %v584
      %v662 = vunpack.c.l.b16 %v585
      %v663 = vunpack.c.h.b16 %v585
      %v664 = vunpack.c.l.b16 %v586
      %v665 = vunpack.c.h.b16 %v586
      %v666 = vunpack.c.l.b16 %v587
      %v667 = vunpack.c.h.b16 %v587
      %v668 = vunpack.c.l.b16 %v588
      %v669 = vunpack.c.h.b16 %v588
      %v670 = vunpack.c.l.b16 %v589
      %v671 = vunpack.c.h.b16 %v589
      %v672 = vunpack.c.l.b16 %v590
      %v673 = vunpack.c.h.b16 %v590
      %v674 = vunpack.c.l.b16 %v591
      %v675 = vunpack.c.h.b16 %v591
      %v676 = vunpack.c.l.b16 %v592
      %v677 = vunpack.c.h.b16 %v592
      %v678 = vunpack.c.l.b16 %v593
      %v679 = vunpack.c.h.b16 %v593
      %v680 = vunpack.c.l.b16 %v594
      %v681 = vunpack.c.h.b16 %v594
      %v682 = vunpack.c.l.b16 %v595
      %v683 = vunpack.c.h.b16 %v595
      %v684 = vunpack.c.l.b16 %v596
      %v685 = vunpack.c.h.b16 %v596
      %v686 = vunpack.c.l.b16 %v597
      %v687 = vunpack.c.h.b16 %v597
      %v688 = vunpack.c.l.b16 %v598
      %v689 = vunpack.c.h.b16 %v598
      %v690 = vunpack.c.l.b16 %v599
      %v691 = vunpack.c.h.b16 %v599
      %v692 = vunpack.c.l.b16 %v600
      %v693 = vunpack.c.h.b16 %v600
      %v694 = vunpack.c.l.b16 %v601
      %v695 = vunpack.c.h.b16 %v601
      %v696 = vunpack.c.l.b16 %v602
      %v697 = vunpack.c.h.b16 %v602
      %v698 = vunpack.c.l.b16 %v603
      %v699 = vunpack.c.h.b16 %v603
      %v700 = vpack.c.b16 %v640, %v636
      %v701 = vpack.c.b16 %v641, %v637
      %v702 = vpack.c.b16 %v642, %v638
      %v703 = vpack.c.b16 %v643, %v639
      %v704 = vpack.c.b16 %v648, %v644
      %v705 = vpack.c.b16 %v649, %v645
      %v706 = vpack.c.b16 %v650, %v646
      %v707 = vpack.c.b16 %v651, %v647
      %v708 = vpack.c.b16 %v656, %v652
      %v709 = vpack.c.b16 %v657, %v653
      %v710 = vpack.c.b16 %v658, %v654
      %v711 = vpack.c.b16 %v659, %v655
      %v712 = vpack.c.b16 %v664, %v660
      %v713 = vpack.c.b16 %v665, %v661
      %v714 = vpack.c.b16 %v666, %v662
      %v715 = vpack.c.b16 %v667, %v663
      %v716 = vpack.c.b16 %v672, %v668
      %v717 = vpack.c.b16 %v673, %v669
      %v718 = vpack.c.b16 %v674, %v670
      %v719 = vpack.c.b16 %v675, %v671
      %v720 = vpack.c.b16 %v680, %v676
      %v721 = vpack.c.b16 %v681, %v677
      %v722 = vpack.c.b16 %v682, %v678
      %v723 = vpack.c.b16 %v683, %v679
      %v724 = vpack.c.b16 %v688, %v684
      %v725 = vpack.c.b16 %v689, %v685
      %v726 = vpack.c.b16 %v690, %v686
      %v727 = vpack.c.b16 %v691, %v687
      %v728 = vpack.c.b16 %v696, %v692
      %v729 = vpack.c.b16 %v697, %v693
      %v730 = vpack.c.b16 %v698, %v694
      %v731 = vpack.c.b16 %v699, %v695
      %764 = vmatprep.subr.bf16.mxu0 %v701
      %765 = vmatpush1.bf16.msra.mxu0 %v700
      %766 = vmatprep.subr.bf16.mxu0 %v705
      %767 = vmatpush1.bf16.msra.mxu0 %v704
      %768 = vmatprep.subr.bf16.mxu0 %v709
      %769 = vmatpush1.bf16.msra.mxu0 %v708
      %770 = vmatprep.subr.bf16.mxu0 %v713
      %771 = vmatpush1.bf16.msra.mxu0 %v712
      %772 = vmatprep.subr.bf16.mxu0 %v717
      %773 = vmatpush1.bf16.msra.mxu0 %v716
      %774 = vmatprep.subr.bf16.mxu0 %v721
      %775 = vmatpush1.bf16.msra.mxu0 %v720
      %776 = vmatprep.subr.bf16.mxu0 %v725
      %777 = vmatpush1.bf16.msra.mxu0 %v724
      %778 = vmatprep.subr.bf16.mxu0 %v729
      %779 = vmatpush1.bf16.msra.mxu0 %v728
      %780 = vmatprep.subr.bf16.mxu0 0
      %781 = vmatpush1.bf16.msra.mxu0 0
      %782 = vmatprep.subr.bf16.mxu0 0
      %783 = vmatpush1.bf16.msra.mxu0 0
      %784 = vmatprep.subr.bf16.mxu0 0
      %785 = vmatpush1.bf16.msra.mxu0 0
      %786 = vmatprep.subr.bf16.mxu0 0
      %787 = vmatpush1.bf16.msra.mxu0 0
      %788 = vmatprep.subr.bf16.mxu0 0
      %789 = vmatpush1.bf16.msra.mxu0 0
      %790 = vmatprep.subr.bf16.mxu0 0
      %791 = vmatpush1.bf16.msra.mxu0 0
      %792 = vmatprep.subr.bf16.mxu0 0
      %793 = vmatpush1.bf16.msra.mxu0 0
      %794 = vmatprep.subr.bf16.mxu0 0
      %795 = vmatpush1.bf16.msra.mxu0 0
      %796 = vmatprep.mubr.bf16.mxu0 0
      %797 = vmatmul.mubr.bf16.gmra.mrb[0].mxu0 %v571
      %v798 = vpop.f32.mrb[0].mxu0
      %v799 = vadd.f32 0.0, %v798
      %v800 = vpop.f32.mrb[0].mxu0
      %v801 = vadd.f32 0.0, %v800
      %v802 = vpop.f32.mrb[0].mxu0
      %v803 = vpop.f32.mrb[0].mxu0
      %804 = vdwg.mxu0
      %805 = vmatprep.subr.bf16.mxu0 %v703
      %806 = vmatpush1.bf16.msra.mxu0 %v702
      %807 = vmatprep.subr.bf16.mxu0 %v707
      %808 = vmatpush1.bf16.msra.mxu0 %v706
      %809 = vmatprep.subr.bf16.mxu0 %v711
      %810 = vmatpush1.bf16.msra.mxu0 %v710
      %811 = vmatprep.subr.bf16.mxu0 %v715
      %812 = vmatpush1.bf16.msra.mxu0 %v714
      %813 = vmatprep.subr.bf16.mxu0 %v719
      %814 = vmatpush1.bf16.msra.mxu0 %v718
      %815 = vmatprep.subr.bf16.mxu0 %v723
      %816 = vmatpush1.bf16.msra.mxu0 %v722
      %817 = vmatprep.subr.bf16.mxu0 %v727
      %818 = vmatpush1.bf16.msra.mxu0 %v726
      %819 = vmatprep.subr.bf16.mxu0 %v731
      %820 = vmatpush1.bf16.msra.mxu0 %v730
      %821 = vmatprep.subr.bf16.mxu0 0
      %822 = vmatpush1.bf16.msra.mxu0 0
      %823 = vmatprep.subr.bf16.mxu0 0
      %824 = vmatpush1.bf16.msra.mxu0 0
      %825 = vmatprep.subr.bf16.mxu0 0
      %826 = vmatpush1.bf16.msra.mxu0 0
      %827 = vmatprep.subr.bf16.mxu0 0
      %828 = vmatpush1.bf16.msra.mxu0 0
      %829 = vmatprep.subr.bf16.mxu0 0
      %830 = vmatpush1.bf16.msra.mxu0 0
      %831 = vmatprep.subr.bf16.mxu0 0
      %832 = vmatpush1.bf16.msra.mxu0 0
      %833 = vmatprep.subr.bf16.mxu0 0
      %834 = vmatpush1.bf16.msra.mxu0 0
      %835 = vmatprep.subr.bf16.mxu0 0
      %836 = vmatpush1.bf16.msra.mxu0 0
      %837 = vmatprep.mubr.bf16.mxu0 0
      %838 = vmatmul.mubr.bf16.gmra.mrb[0].mxu0 %v571
      %v839 = vpop.f32.mrb[0].mxu0
      %v840 = vadd.f32 0.0, %v839
      %v841 = vpop.f32.mrb[0].mxu0
      %v842 = vadd.f32 0.0, %v841
      %v843 = vpop.f32.mrb[0].mxu0
      %v844 = vpop.f32.mrb[0].mxu0
      %845 = vdwg.mxu0
      %v846 = vadd.f32 %v567, %v799
      %v847 = vadd.f32 %v568, %v801
      %v848 = vadd.f32 %v569, %v840
      %v849 = vadd.f32 %v570, %v842
      %v850 = vxor.u32 %v846, 2147483648
      %v851 = vmul.f32 %v850, 1.442695
      %v852 = vpow.pop %v851
      %v853 = vadd.f32 %v852, 1.0
      %v854 = vrcp.pop %v853
      %v855 = vmul.f32 1.0, %v854
      %v856 = vxor.u32 %v847, 2147483648
      %v857 = vmul.f32 %v856, 1.442695
      %v858 = vpow.pop %v857
      %v859 = vadd.f32 %v858, 1.0
      %v860 = vrcp.pop %v859
      %v861 = vmul.f32 1.0, %v860
      %v862 = vtanh.pop %v848
      %v863 = vxor.u32 %v849, 2147483648
      %v864 = vmul.f32 %v863, 1.442695
      %v865 = vpow.pop %v864
      %v866 = vadd.f32 %v865, 1.0
      %v867 = vrcp.pop %v866
      %v868 = vmul.f32 1.0, %v867
      %v869 = vmul.f32 %v861, %v561
      %v870 = vmul.f32 %v855, %v862
      %v871 = vadd.f32 %v869, %v870
      %v872 = vtanh.pop %v871
      %v873 = vmul.f32 %v868, %v872
      %v874 = vsel %vm558, 1, 0
      %875 = vset.pattern.permute.xlu0 0
      %876 = vperm.xlu0 %875, %v874
      %v877 = vpop.permute.xlu0 %876
      %vm878 = vcmp.eq.s32.totalorder %v877, 1
      %v879 = vsel %vm878, %v873, %v560
      %880 = vst [vmem:[#allocation4] sm:$0xff] %v879
      %v881 = vsel %vm878, %v871, %v561
      %882 = vst [vmem:[#allocation5] sm:$0xff] %v881
      %v883 = vsel %vm878, %v873, 0.0
      %s884 = scalar_lea.vmem [#allocation3], %s559
      %885 = vst [vmem:[%s884] sm:$0xff] %v883
      %s886 = scalar_lea.vmem [#allocation4], 8
      %v887 = vld [vmem:[%s886] sm:$0xff]
      %s888 = scalar_lea.vmem [#allocation5], 8
      %v889 = vld [vmem:[%s888] sm:$0xff]
      %s890 = smul.addr %s564, 8
      %s891 = scalar_lea.vmem %s515, %s890 [#allocation2]
      %v892 = vld [vmem:[%s891] sm:$0xff]
      %v893 = vld [vmem:[%s891 + $0x8] sm:$0xff]
      %v894 = vld [vmem:[%s891 + $0x10] sm:$0xff]
      %v895 = vld [vmem:[%s891 + $0x18] sm:$0xff]
      %v896 = vpack.c.bf16 %v887, %v887
      %v897 = vpack.c.bf16 %v883, %v883
      %s898 = scalar_lea.vmem [#allocation6], 512
      %v899 = vld [vmem:[%s898] sm:$0xff]
      %v900 = vld [vmem:[%s898 + $0x8] sm:$0xff]
      %v901 = vld [vmem:[%s898 + $0x10] sm:$0xff]
      %v902 = vld [vmem:[%s898 + $0x18] sm:$0xff]
      %v903 = vld [vmem:[%s898 + $0x20] sm:$0xff]
      %v904 = vld [vmem:[%s898 + $0x28] sm:$0xff]
      %v905 = vld [vmem:[%s898 + $0x30] sm:$0xff]
      %v906 = vld [vmem:[%s898 + $0x38] sm:$0xff]
      %v907 = vld [vmem:[%s898 + $0x40] sm:$0xff]
      %v908 = vld [vmem:[%s898 + $0x48] sm:$0xff]
      %v909 = vld [vmem:[%s898 + $0x50] sm:$0xff]
      %v910 = vld [vmem:[%s898 + $0x58] sm:$0xff]
      %v911 = vld [vmem:[%s898 + $0x60] sm:$0xff]
      %v912 = vld [vmem:[%s898 + $0x68] sm:$0xff]
      %v913 = vld [vmem:[%s898 + $0x70] sm:$0xff]
      %v914 = vld [vmem:[%s898 + $0x78] sm:$0xff]
      %v915 = vld [vmem:[%s898 + $0x80] sm:$0xff]
      %v916 = vld [vmem:[%s898 + $0x88] sm:$0xff]
      %v917 = vld [vmem:[%s898 + $0x90] sm:$0xff]
      %v918 = vld [vmem:[%s898 + $0x98] sm:$0xff]
      %v919 = vld [vmem:[%s898 + $0xa0] sm:$0xff]
      %v920 = vld [vmem:[%s898 + $0xa8] sm:$0xff]
      %v921 = vld [vmem:[%s898 + $0xb0] sm:$0xff]
      %v922 = vld [vmem:[%s898 + $0xb8] sm:$0xff]
      %v923 = vld [vmem:[%s898 + $0xc0] sm:$0xff]
      %v924 = vld [vmem:[%s898 + $0xc8] sm:$0xff]
      %v925 = vld [vmem:[%s898 + $0xd0] sm:$0xff]
      %v926 = vld [vmem:[%s898 + $0xd8] sm:$0xff]
      %v927 = vld [vmem:[%s898 + $0xe0] sm:$0xff]
      %v928 = vld [vmem:[%s898 + $0xe8] sm:$0xff]
      %v929 = vld [vmem:[%s898 + $0xf0] sm:$0xff]
      %v930 = vld [vmem:[%s898 + $0xf8] sm:$0xff]
      %v931 = vld [vmem:[%s898 + $0x100] sm:$0xff]
      %v932 = vld [vmem:[%s898 + $0x108] sm:$0xff]
      %v933 = vld [vmem:[%s898 + $0x110] sm:$0xff]
      %v934 = vld [vmem:[%s898 + $0x118] sm:$0xff]
      %v935 = vld [vmem:[%s898 + $0x120] sm:$0xff]
      %v936 = vld [vmem:[%s898 + $0x128] sm:$0xff]
      %v937 = vld [vmem:[%s898 + $0x130] sm:$0xff]
      %v938 = vld [vmem:[%s898 + $0x138] sm:$0xff]
      %v939 = vld [vmem:[%s898 + $0x140] sm:$0xff]
      %v940 = vld [vmem:[%s898 + $0x148] sm:$0xff]
      %v941 = vld [vmem:[%s898 + $0x150] sm:$0xff]
      %v942 = vld [vmem:[%s898 + $0x158] sm:$0xff]
      %v943 = vld [vmem:[%s898 + $0x160] sm:$0xff]
      %v944 = vld [vmem:[%s898 + $0x168] sm:$0xff]
      %v945 = vld [vmem:[%s898 + $0x170] sm:$0xff]
      %v946 = vld [vmem:[%s898 + $0x178] sm:$0xff]
      %v947 = vld [vmem:[%s898 + $0x180] sm:$0xff]
      %v948 = vld [vmem:[%s898 + $0x188] sm:$0xff]
      %v949 = vld [vmem:[%s898 + $0x190] sm:$0xff]
      %v950 = vld [vmem:[%s898 + $0x198] sm:$0xff]
      %v951 = vld [vmem:[%s898 + $0x1a0] sm:$0xff]
      %v952 = vld [vmem:[%s898 + $0x1a8] sm:$0xff]
      %v953 = vld [vmem:[%s898 + $0x1b0] sm:$0xff]
      %v954 = vld [vmem:[%s898 + $0x1b8] sm:$0xff]
      %v955 = vld [vmem:[%s898 + $0x1c0] sm:$0xff]
      %v956 = vld [vmem:[%s898 + $0x1c8] sm:$0xff]
      %v957 = vld [vmem:[%s898 + $0x1d0] sm:$0xff]
      %v958 = vld [vmem:[%s898 + $0x1d8] sm:$0xff]
      %v959 = vld [vmem:[%s898 + $0x1e0] sm:$0xff]
      %v960 = vld [vmem:[%s898 + $0x1e8] sm:$0xff]
      %v961 = vld [vmem:[%s898 + $0x1f0] sm:$0xff]
      %v962 = vld [vmem:[%s898 + $0x1f8] sm:$0xff]
      %v1027 = vunpack.c.l.b16 %v899
      %v1028 = vunpack.c.h.b16 %v899
      %v1029 = vunpack.c.l.b16 %v900
      %v1030 = vunpack.c.h.b16 %v900
      %v1031 = vunpack.c.l.b16 %v901
      %v1032 = vunpack.c.h.b16 %v901
      %v1033 = vunpack.c.l.b16 %v902
      %v1034 = vunpack.c.h.b16 %v902
      %v1035 = vunpack.c.l.b16 %v903
      %v1036 = vunpack.c.h.b16 %v903
      %v1037 = vunpack.c.l.b16 %v904
      %v1038 = vunpack.c.h.b16 %v904
      %v1039 = vunpack.c.l.b16 %v905
      %v1040 = vunpack.c.h.b16 %v905
      %v1041 = vunpack.c.l.b16 %v906
      %v1042 = vunpack.c.h.b16 %v906
      %v1043 = vunpack.c.l.b16 %v907
      %v1044 = vunpack.c.h.b16 %v907
      %v1045 = vunpack.c.l.b16 %v908
      %v1046 = vunpack.c.h.b16 %v908
      %v1047 = vunpack.c.l.b16 %v909
      %v1048 = vunpack.c.h.b16 %v909
      %v1049 = vunpack.c.l.b16 %v910
      %v1050 = vunpack.c.h.b16 %v910
      %v1051 = vunpack.c.l.b16 %v911
      %v1052 = vunpack.c.h.b16 %v911
      %v1053 = vunpack.c.l.b16 %v912
      %v1054 = vunpack.c.h.b16 %v912
      %v1055 = vunpack.c.l.b16 %v913
      %v1056 = vunpack.c.h.b16 %v913
      %v1057 = vunpack.c.l.b16 %v914
      %v1058 = vunpack.c.h.b16 %v914
      %v1059 = vunpack.c.l.b16 %v915
      %v1060 = vunpack.c.h.b16 %v915
      %v1061 = vunpack.c.l.b16 %v916
      %v1062 = vunpack.c.h.b16 %v916
      %v1063 = vunpack.c.l.b16 %v917
      %v1064 = vunpack.c.h.b16 %v917
      %v1065 = vunpack.c.l.b16 %v918
      %v1066 = vunpack.c.h.b16 %v918
      %v1067 = vunpack.c.l.b16 %v919
      %v1068 = vunpack.c.h.b16 %v919
      %v1069 = vunpack.c.l.b16 %v920
      %v1070 = vunpack.c.h.b16 %v920
      %v1071 = vunpack.c.l.b16 %v921
      %v1072 = vunpack.c.h.b16 %v921
      %v1073 = vunpack.c.l.b16 %v922
      %v1074 = vunpack.c.h.b16 %v922
      %v1075 = vunpack.c.l.b16 %v923
      %v1076 = vunpack.c.h.b16 %v923
      %v1077 = vunpack.c.l.b16 %v924
      %v1078 = vunpack.c.h.b16 %v924
      %v1079 = vunpack.c.l.b16 %v925
      %v1080 = vunpack.c.h.b16 %v925
      %v1081 = vunpack.c.l.b16 %v926
      %v1082 = vunpack.c.h.b16 %v926
      %v1083 = vunpack.c.l.b16 %v927
      %v1084 = vunpack.c.h.b16 %v927
      %v1085 = vunpack.c.l.b16 %v928
      %v1086 = vunpack.c.h.b16 %v928
      %v1087 = vunpack.c.l.b16 %v929
      %v1088 = vunpack.c.h.b16 %v929
      %v1089 = vunpack.c.l.b16 %v930
      %v1090 = vunpack.c.h.b16 %v930
      %v1091 = vunpack.c.l.b16 %v931
      %v1092 = vunpack.c.h.b16 %v931
      %v1093 = vunpack.c.l.b16 %v932
      %v1094 = vunpack.c.h.b16 %v932
      %v1095 = vunpack.c.l.b16 %v933
      %v1096 = vunpack.c.h.b16 %v933
      %v1097 = vunpack.c.l.b16 %v934
      %v1098 = vunpack.c.h.b16 %v934
      %v1099 = vunpack.c.l.b16 %v935
      %v1100 = vunpack.c.h.b16 %v935
      %v1101 = vunpack.c.l.b16 %v936
      %v1102 = vunpack.c.h.b16 %v936
      %v1103 = vunpack.c.l.b16 %v937
      %v1104 = vunpack.c.h.b16 %v937
      %v1105 = vunpack.c.l.b16 %v938
      %v1106 = vunpack.c.h.b16 %v938
      %v1107 = vunpack.c.l.b16 %v939
      %v1108 = vunpack.c.h.b16 %v939
      %v1109 = vunpack.c.l.b16 %v940
      %v1110 = vunpack.c.h.b16 %v940
      %v1111 = vunpack.c.l.b16 %v941
      %v1112 = vunpack.c.h.b16 %v941
      %v1113 = vunpack.c.l.b16 %v942
      %v1114 = vunpack.c.h.b16 %v942
      %v1115 = vunpack.c.l.b16 %v943
      %v1116 = vunpack.c.h.b16 %v943
      %v1117 = vunpack.c.l.b16 %v944
      %v1118 = vunpack.c.h.b16 %v944
      %v1119 = vunpack.c.l.b16 %v945
      %v1120 = vunpack.c.h.b16 %v945
      %v1121 = vunpack.c.l.b16 %v946
      %v1122 = vunpack.c.h.b16 %v946
      %v1123 = vunpack.c.l.b16 %v947
      %v1124 = vunpack.c.h.b16 %v947
      %v1125 = vunpack.c.l.b16 %v948
      %v1126 = vunpack.c.h.b16 %v948
      %v1127 = vunpack.c.l.b16 %v949
      %v1128 = vunpack.c.h.b16 %v949
      %v1129 = vunpack.c.l.b16 %v950
      %v1130 = vunpack.c.h.b16 %v950
      %v1131 = vunpack.c.l.b16 %v951
      %v1132 = vunpack.c.h.b16 %v951
      %v1133 = vunpack.c.l.b16 %v952
      %v1134 = vunpack.c.h.b16 %v952
      %v1135 = vunpack.c.l.b16 %v953
      %v1136 = vunpack.c.h.b16 %v953
      %v1137 = vunpack.c.l.b16 %v954
      %v1138 = vunpack.c.h.b16 %v954
      %v1139 = vunpack.c.l.b16 %v955
      %v1140 = vunpack.c.h.b16 %v955
      %v1141 = vunpack.c.l.b16 %v956
      %v1142 = vunpack.c.h.b16 %v956
      %v1143 = vunpack.c.l.b16 %v957
      %v1144 = vunpack.c.h.b16 %v957
      %v1145 = vunpack.c.l.b16 %v958
      %v1146 = vunpack.c.h.b16 %v958
      %v1147 = vunpack.c.l.b16 %v959
      %v1148 = vunpack.c.h.b16 %v959
      %v1149 = vunpack.c.l.b16 %v960
      %v1150 = vunpack.c.h.b16 %v960
      %v1151 = vunpack.c.l.b16 %v961
      %v1152 = vunpack.c.h.b16 %v961
      %v1153 = vunpack.c.l.b16 %v962
      %v1154 = vunpack.c.h.b16 %v962
      %v1155 = vpack.c.b16 %v1031, %v1027
      %v1156 = vpack.c.b16 %v1032, %v1028
      %v1157 = vpack.c.b16 %v1033, %v1029
      %v1158 = vpack.c.b16 %v1034, %v1030
      %v1159 = vpack.c.b16 %v1039, %v1035
      %v1160 = vpack.c.b16 %v1040, %v1036
      %v1161 = vpack.c.b16 %v1041, %v1037
      %v1162 = vpack.c.b16 %v1042, %v1038
      %v1163 = vpack.c.b16 %v1047, %v1043
      %v1164 = vpack.c.b16 %v1048, %v1044
      %v1165 = vpack.c.b16 %v1049, %v1045
      %v1166 = vpack.c.b16 %v1050, %v1046
      %v1167 = vpack.c.b16 %v1055, %v1051
      %v1168 = vpack.c.b16 %v1056, %v1052
      %v1169 = vpack.c.b16 %v1057, %v1053
      %v1170 = vpack.c.b16 %v1058, %v1054
      %v1171 = vpack.c.b16 %v1063, %v1059
      %v1172 = vpack.c.b16 %v1064, %v1060
      %v1173 = vpack.c.b16 %v1065, %v1061
      %v1174 = vpack.c.b16 %v1066, %v1062
      %v1175 = vpack.c.b16 %v1071, %v1067
      %v1176 = vpack.c.b16 %v1072, %v1068
      %v1177 = vpack.c.b16 %v1073, %v1069
      %v1178 = vpack.c.b16 %v1074, %v1070
      %v1179 = vpack.c.b16 %v1079, %v1075
      %v1180 = vpack.c.b16 %v1080, %v1076
      %v1181 = vpack.c.b16 %v1081, %v1077
      %v1182 = vpack.c.b16 %v1082, %v1078
      %v1183 = vpack.c.b16 %v1087, %v1083
      %v1184 = vpack.c.b16 %v1088, %v1084
      %v1185 = vpack.c.b16 %v1089, %v1085
      %v1186 = vpack.c.b16 %v1090, %v1086
      %v1187 = vpack.c.b16 %v1095, %v1091
      %v1188 = vpack.c.b16 %v1096, %v1092
      %v1189 = vpack.c.b16 %v1097, %v1093
      %v1190 = vpack.c.b16 %v1098, %v1094
      %v1191 = vpack.c.b16 %v1103, %v1099
      %v1192 = vpack.c.b16 %v1104, %v1100
      %v1193 = vpack.c.b16 %v1105, %v1101
      %v1194 = vpack.c.b16 %v1106, %v1102
      %v1195 = vpack.c.b16 %v1111, %v1107
      %v1196 = vpack.c.b16 %v1112, %v1108
      %v1197 = vpack.c.b16 %v1113, %v1109
      %v1198 = vpack.c.b16 %v1114, %v1110
      %v1199 = vpack.c.b16 %v1119, %v1115
      %v1200 = vpack.c.b16 %v1120, %v1116
      %v1201 = vpack.c.b16 %v1121, %v1117
      %v1202 = vpack.c.b16 %v1122, %v1118
      %v1203 = vpack.c.b16 %v1127, %v1123
      %v1204 = vpack.c.b16 %v1128, %v1124
      %v1205 = vpack.c.b16 %v1129, %v1125
      %v1206 = vpack.c.b16 %v1130, %v1126
      %v1207 = vpack.c.b16 %v1135, %v1131
      %v1208 = vpack.c.b16 %v1136, %v1132
      %v1209 = vpack.c.b16 %v1137, %v1133
      %v1210 = vpack.c.b16 %v1138, %v1134
      %v1211 = vpack.c.b16 %v1143, %v1139
      %v1212 = vpack.c.b16 %v1144, %v1140
      %v1213 = vpack.c.b16 %v1145, %v1141
      %v1214 = vpack.c.b16 %v1146, %v1142
      %v1215 = vpack.c.b16 %v1151, %v1147
      %v1216 = vpack.c.b16 %v1152, %v1148
      %v1217 = vpack.c.b16 %v1153, %v1149
      %v1218 = vpack.c.b16 %v1154, %v1150
      %1283 = vmatprep.subr.bf16.mxu0 %v1156
      %1284 = vmatpush1.bf16.msra.mxu0 %v1155
      %1285 = vmatprep.subr.bf16.mxu0 %v1160
      %1286 = vmatpush1.bf16.msra.mxu0 %v1159
      %1287 = vmatprep.subr.bf16.mxu0 %v1164
      %1288 = vmatpush1.bf16.msra.mxu0 %v1163
      %1289 = vmatprep.subr.bf16.mxu0 %v1168
      %1290 = vmatpush1.bf16.msra.mxu0 %v1167
      %1291 = vmatprep.subr.bf16.mxu0 %v1172
      %1292 = vmatpush1.bf16.msra.mxu0 %v1171
      %1293 = vmatprep.subr.bf16.mxu0 %v1176
      %1294 = vmatpush1.bf16.msra.mxu0 %v1175
      %1295 = vmatprep.subr.bf16.mxu0 %v1180
      %1296 = vmatpush1.bf16.msra.mxu0 %v1179
      %1297 = vmatprep.subr.bf16.mxu0 %v1184
      %1298 = vmatpush1.bf16.msra.mxu0 %v1183
      %1299 = vmatprep.subr.bf16.mxu0 %v1188
      %1300 = vmatpush1.bf16.msra.mxu0 %v1187
      %1301 = vmatprep.subr.bf16.mxu0 %v1192
      %1302 = vmatpush1.bf16.msra.mxu0 %v1191
      %1303 = vmatprep.subr.bf16.mxu0 %v1196
      %1304 = vmatpush1.bf16.msra.mxu0 %v1195
      %1305 = vmatprep.subr.bf16.mxu0 %v1200
      %1306 = vmatpush1.bf16.msra.mxu0 %v1199
      %1307 = vmatprep.subr.bf16.mxu0 %v1204
      %1308 = vmatpush1.bf16.msra.mxu0 %v1203
      %1309 = vmatprep.subr.bf16.mxu0 %v1208
      %1310 = vmatpush1.bf16.msra.mxu0 %v1207
      %1311 = vmatprep.subr.bf16.mxu0 %v1212
      %1312 = vmatpush1.bf16.msra.mxu0 %v1211
      %1313 = vmatprep.subr.bf16.mxu0 %v1216
      %1314 = vmatpush1.bf16.msra.mxu0 %v1215
      %1315 = vmatprep.mubr.bf16.mxu0 %v897
      %1316 = vmatmul.mubr.bf16.gmra.mrb[0].mxu0 %v896
      %v1317 = vpop.f32.mrb[0].mxu0
      %v1318 = vadd.f32 0.0, %v1317
      %v1319 = vpop.f32.mrb[0].mxu0
      %v1320 = vadd.f32 0.0, %v1319
      %v1321 = vpop.f32.mrb[0].mxu0
      %v1322 = vpop.f32.mrb[0].mxu0
      %1323 = vdwg.mxu0
      %1324 = vmatprep.subr.bf16.mxu0 %v1158
      %1325 = vmatpush1.bf16.msra.mxu0 %v1157
      %1326 = vmatprep.subr.bf16.mxu0 %v1162
      %1327 = vmatpush1.bf16.msra.mxu0 %v1161
      %1328 = vmatprep.subr.bf16.mxu0 %v1166
      %1329 = vmatpush1.bf16.msra.mxu0 %v1165
      %1330 = vmatprep.subr.bf16.mxu0 %v1170
      %1331 = vmatpush1.bf16.msra.mxu0 %v1169
      %1332 = vmatprep.subr.bf16.mxu0 %v1174
      %1333 = vmatpush1.bf16.msra.mxu0 %v1173
      %1334 = vmatprep.subr.bf16.mxu0 %v1178
      %1335 = vmatpush1.bf16.msra.mxu0 %v1177
      %1336 = vmatprep.subr.bf16.mxu0 %v1182
      %1337 = vmatpush1.bf16.msra.mxu0 %v1181
      %1338 = vmatprep.subr.bf16.mxu0 %v1186
      %1339 = vmatpush1.bf16.msra.mxu0 %v1185
      %1340 = vmatprep.subr.bf16.mxu0 %v1190
      %1341 = vmatpush1.bf16.msra.mxu0 %v1189
      %1342 = vmatprep.subr.bf16.mxu0 %v1194
      %1343 = vmatpush1.bf16.msra.mxu0 %v1193
      %1344 = vmatprep.subr.bf16.mxu0 %v1198
      %1345 = vmatpush1.bf16.msra.mxu0 %v1197
      %1346 = vmatprep.subr.bf16.mxu0 %v1202
      %1347 = vmatpush1.bf16.msra.mxu0 %v1201
      %1348 = vmatprep.subr.bf16.mxu0 %v1206
      %1349 = vmatpush1.bf16.msra.mxu0 %v1205
      %1350 = vmatprep.subr.bf16.mxu0 %v1210
      %1351 = vmatpush1.bf16.msra.mxu0 %v1209
      %1352 = vmatprep.subr.bf16.mxu0 %v1214
      %1353 = vmatpush1.bf16.msra.mxu0 %v1213
      %1354 = vmatprep.subr.bf16.mxu0 %v1218
      %1355 = vmatpush1.bf16.msra.mxu0 %v1217
      %1356 = vmatprep.mubr.bf16.mxu0 %v897
      %1357 = vmatmul.mubr.bf16.gmra.mrb[0].mxu0 %v896
      %v1358 = vpop.f32.mrb[0].mxu0
      %v1359 = vadd.f32 0.0, %v1358
      %v1360 = vpop.f32.mrb[0].mxu0
      %v1361 = vadd.f32 0.0, %v1360
      %v1362 = vpop.f32.mrb[0].mxu0
      %v1363 = vpop.f32.mrb[0].mxu0
      %1364 = vdwg.mxu0
      %v1365 = vadd.f32 %v892, %v1318
      %v1366 = vadd.f32 %v893, %v1320
      %v1367 = vadd.f32 %v894, %v1359
      %v1368 = vadd.f32 %v895, %v1361
      %v1369 = vxor.u32 %v1365, 2147483648
      %v1370 = vmul.f32 %v1369, 1.442695
      %v1371 = vpow.pop %v1370
      %v1372 = vadd.f32 %v1371, 1.0
      %v1373 = vrcp.pop %v1372
      %v1374 = vmul.f32 1.0, %v1373
      %v1375 = vxor.u32 %v1366, 2147483648
      %v1376 = vmul.f32 %v1375, 1.442695
      %v1377 = vpow.pop %v1376
      %v1378 = vadd.f32 %v1377, 1.0
      %v1379 = vrcp.pop %v1378
      %v1380 = vmul.f32 1.0, %v1379
      %v1381 = vtanh.pop %v1367
      %v1382 = vxor.u32 %v1368, 2147483648
      %v1383 = vmul.f32 %v1382, 1.442695
      %v1384 = vpow.pop %v1383
      %v1385 = vadd.f32 %v1384, 1.0
      %v1386 = vrcp.pop %v1385
      %v1387 = vmul.f32 1.0, %v1386
      %v1388 = vmul.f32 %v1380, %v889
      %v1389 = vmul.f32 %v1374, %v1381
      %v1390 = vadd.f32 %v1388, %v1389
      %v1391 = vtanh.pop %v1390
      %v1392 = vmul.f32 %v1387, %v1391
      %v1393 = vsel %vm878, %v1392, %v887
      %1394 = vst [vmem:[%s886] sm:$0xff] %v1393
      %v1395 = vsel %vm878, %v1390, %v889
      %1396 = vst [vmem:[%s888] sm:$0xff] %v1395
      %v1397 = vsel %vm878, %v1392, 0.0
      %s1398 = scalar_lea.vmem [#allocation3], 64
      %s1399 = scalar_lea.vmem %s1398, %s559 [#allocation3]
      %1400 = vst [vmem:[%s1399] sm:$0xff] %v1397
    $region42: #{tpu_custom_call.1} parent=1 // loop_footer
      %s555 = sadd.s32 1, %s551
    $region43: #{tpu_custom_call.1} parent=1 // loop_footer_branch
      %550 = sbr.rel target = $region39
    $region44: #{tpu_custom_call.1} parent=1 // loop_exit
      _
    %v1401 = vld [vmem:[#allocation3] sm:$0xff]
    %v1402 = vld [vmem:[#allocation3 + $0x8] sm:$0xff]
    %v1403 = vld [vmem:[#allocation3 + $0x10] sm:$0xff]
    %v1404 = vld [vmem:[#allocation3 + $0x18] sm:$0xff]
    %v1405 = vld [vmem:[#allocation3 + $0x20] sm:$0xff]
    %v1406 = vld [vmem:[#allocation3 + $0x28] sm:$0xff]
    %v1407 = vld [vmem:[#allocation3 + $0x30] sm:$0xff]
    %v1408 = vld [vmem:[#allocation3 + $0x38] sm:$0xff]
    %v1409 = vpack.c.bf16 %v1402, %v1401
    %v1410 = vpack.c.bf16 %v1404, %v1403
    %v1411 = vpack.c.bf16 %v1406, %v1405
    %v1412 = vpack.c.bf16 %v1408, %v1407
    %v1413 = vld [vmem:[%s5] sm:$0xf]
    %v1414 = vld [vmem:[%s5 + $0x4] sm:$0xf]
    %v1415 = vld [vmem:[%s5 + $0x8] sm:$0xf]
    %v1416 = vld [vmem:[%s5 + $0xc] sm:$0xf]
    %v1417 = vld [vmem:[%s5 + $0x10] sm:$0xf]
    %v1418 = vld [vmem:[%s5 + $0x14] sm:$0xf]
    %v1419 = vld [vmem:[%s5 + $0x18] sm:$0xf]
    %v1420 = vld [vmem:[%s5 + $0x1c] sm:$0xf]
    %v1421 = vld [vmem:[%s5 + $0x20] sm:$0xf]
    %v1422 = vld [vmem:[%s5 + $0x24] sm:$0xf]
    %v1423 = vld [vmem:[%s5 + $0x28] sm:$0xf]
    %v1424 = vld [vmem:[%s5 + $0x2c] sm:$0xf]
    %v1425 = vld [vmem:[%s5 + $0x30] sm:$0xf]
    %v1426 = vld [vmem:[%s5 + $0x34] sm:$0xf]
    %v1427 = vld [vmem:[%s5 + $0x38] sm:$0xf]
    %v1428 = vld [vmem:[%s5 + $0x3c] sm:$0xf]
    %s1429 = scalar_lea.vmem [#allocation3], 64
    %v1430 = vld [vmem:[%s1429] sm:$0xff]
    %v1431 = vld [vmem:[%s1429 + $0x8] sm:$0xff]
    %v1432 = vld [vmem:[%s1429 + $0x10] sm:$0xff]
    %v1433 = vld [vmem:[%s1429 + $0x18] sm:$0xff]
    %v1434 = vld [vmem:[%s1429 + $0x20] sm:$0xff]
    %v1435 = vld [vmem:[%s1429 + $0x28] sm:$0xff]
    %v1436 = vld [vmem:[%s1429 + $0x30] sm:$0xff]
    %v1437 = vld [vmem:[%s1429 + $0x38] sm:$0xff]
    %v1438 = vpack.c.bf16 %v1431, %v1430
    %v1439 = vpack.c.bf16 %v1433, %v1432
    %v1440 = vpack.c.bf16 %v1435, %v1434
    %v1441 = vpack.c.bf16 %v1437, %v1436
    %s1442 = scalar_lea.vmem %s5, 64
    %v1443 = vld [vmem:[%s1442] sm:$0xf]
    %v1444 = vld [vmem:[%s1442 + $0x4] sm:$0xf]
    %v1445 = vld [vmem:[%s1442 + $0x8] sm:$0xf]
    %v1446 = vld [vmem:[%s1442 + $0xc] sm:$0xf]
    %v1447 = vld [vmem:[%s1442 + $0x10] sm:$0xf]
    %v1448 = vld [vmem:[%s1442 + $0x14] sm:$0xf]
    %v1449 = vld [vmem:[%s1442 + $0x18] sm:$0xf]
    %v1450 = vld [vmem:[%s1442 + $0x1c] sm:$0xf]
    %v1451 = vld [vmem:[%s1442 + $0x20] sm:$0xf]
    %v1452 = vld [vmem:[%s1442 + $0x24] sm:$0xf]
    %v1453 = vld [vmem:[%s1442 + $0x28] sm:$0xf]
    %v1454 = vld [vmem:[%s1442 + $0x2c] sm:$0xf]
    %v1455 = vld [vmem:[%s1442 + $0x30] sm:$0xf]
    %v1456 = vld [vmem:[%s1442 + $0x34] sm:$0xf]
    %v1457 = vld [vmem:[%s1442 + $0x38] sm:$0xf]
    %v1458 = vld [vmem:[%s1442 + $0x3c] sm:$0xf]
    %v1475 = vunpack.c.l.b16 %v1443
    %v1476 = vunpack.c.l.b16 %v1444
    %v1477 = vunpack.c.l.b16 %v1445
    %v1478 = vunpack.c.l.b16 %v1446
    %v1479 = vunpack.c.l.b16 %v1447
    %v1480 = vunpack.c.l.b16 %v1448
    %v1481 = vunpack.c.l.b16 %v1449
    %v1482 = vunpack.c.l.b16 %v1450
    %v1483 = vunpack.c.l.b16 %v1451
    %v1484 = vunpack.c.l.b16 %v1452
    %v1485 = vunpack.c.l.b16 %v1453
    %v1486 = vunpack.c.l.b16 %v1454
    %v1487 = vunpack.c.l.b16 %v1455
    %v1488 = vunpack.c.l.b16 %v1456
    %v1489 = vunpack.c.l.b16 %v1457
    %v1490 = vunpack.c.l.b16 %v1458
    %v1491 = vpack.c.b16 %v1476, %v1475
    %v1492 = vpack.c.b16 %v1478, %v1477
    %v1493 = vpack.c.b16 %v1480, %v1479
    %v1494 = vpack.c.b16 %v1482, %v1481
    %v1495 = vpack.c.b16 %v1484, %v1483
    %v1496 = vpack.c.b16 %v1486, %v1485
    %v1497 = vpack.c.b16 %v1488, %v1487
    %v1498 = vpack.c.b16 %v1490, %v1489
    %1507 = vmatprep.subr.bf16.mxu0 0
    %1508 = vmatpush1.bf16.msra.mxu0 %v1491
    %1509 = vmatprep.subr.bf16.mxu0 0
    %1510 = vmatpush1.bf16.msra.mxu0 %v1492
    %1511 = vmatprep.subr.bf16.mxu0 0
    %1512 = vmatpush1.bf16.msra.mxu0 %v1493
    %1513 = vmatprep.subr.bf16.mxu0 0
    %1514 = vmatpush1.bf16.msra.mxu0 %v1494
    %1515 = vmatprep.subr.bf16.mxu0 0
    %1516 = vmatpush1.bf16.msra.mxu0 %v1495
    %1517 = vmatprep.subr.bf16.mxu0 0
    %1518 = vmatpush1.bf16.msra.mxu0 %v1496
    %1519 = vmatprep.subr.bf16.mxu0 0
    %1520 = vmatpush1.bf16.msra.mxu0 %v1497
    %1521 = vmatprep.subr.bf16.mxu0 0
    %1522 = vmatpush1.bf16.msra.mxu0 %v1498
    %1523 = vmatprep.subr.bf16.mxu0 0
    %1524 = vmatpush1.bf16.msra.mxu0 0
    %1525 = vmatprep.subr.bf16.mxu0 0
    %1526 = vmatpush1.bf16.msra.mxu0 0
    %1527 = vmatprep.subr.bf16.mxu0 0
    %1528 = vmatpush1.bf16.msra.mxu0 0
    %1529 = vmatprep.subr.bf16.mxu0 0
    %1530 = vmatpush1.bf16.msra.mxu0 0
    %1531 = vmatprep.subr.bf16.mxu0 0
    %1532 = vmatpush1.bf16.msra.mxu0 0
    %1533 = vmatprep.subr.bf16.mxu0 0
    %1534 = vmatpush1.bf16.msra.mxu0 0
    %1535 = vmatprep.subr.bf16.mxu0 0
    %1536 = vmatpush1.bf16.msra.mxu0 0
    %1537 = vmatprep.subr.bf16.mxu0 0
    %1538 = vmatpush1.bf16.msra.mxu0 0
    %1539 = vmatprep.mubr.bf16.mxu0 0
    %1540 = vmatmul.mubr.bf16.gmra.mrb[0].mxu0 %v1438
    %v1541 = vpop.f32.mrb[0].mxu0
    %v1542 = vadd.f32 0.0, %v1541
    %v1543 = vpop.f32.mrb[0].mxu0
    %v1544 = vpop.f32.mrb[0].mxu0
    %v1545 = vadd.f32 0.0, %v1544
    %v1546 = vpop.f32.mrb[0].mxu0
    %1547 = vmatprep.mubr.bf16.mxu0 0
    %1548 = vmatmul.mubr.bf16.gmra.mrb[0].mxu0 %v1439
    %v1549 = vpop.f32.mrb[0].mxu0
    %v1550 = vadd.f32 0.0, %v1549
    %v1551 = vpop.f32.mrb[0].mxu0
    %v1552 = vpop.f32.mrb[0].mxu0
    %v1553 = vadd.f32 0.0, %v1552
    %v1554 = vpop.f32.mrb[0].mxu0
    %1555 = vmatprep.mubr.bf16.mxu0 0
    %1556 = vmatmul.mubr.bf16.gmra.mrb[0].mxu0 %v1440
    %v1557 = vpop.f32.mrb[0].mxu0
    %v1558 = vadd.f32 0.0, %v1557
    %v1559 = vpop.f32.mrb[0].mxu0
    %v1560 = vpop.f32.mrb[0].mxu0
    %v1561 = vadd.f32 0.0, %v1560
    %v1562 = vpop.f32.mrb[0].mxu0
    %1563 = vmatprep.mubr.bf16.mxu0 0
    %1564 = vmatmul.mubr.bf16.gmra.mrb[0].mxu0 %v1441
    %v1565 = vpop.f32.mrb[0].mxu0
    %v1566 = vadd.f32 0.0, %v1565
    %v1567 = vpop.f32.mrb[0].mxu0
    %v1568 = vpop.f32.mrb[0].mxu0
    %v1569 = vadd.f32 0.0, %v1568
    %v1570 = vpop.f32.mrb[0].mxu0
    %1571 = vdwg.mxu0
    %v1588 = vunpack.c.l.b16 %v1413
    %v1589 = vunpack.c.l.b16 %v1414
    %v1590 = vunpack.c.l.b16 %v1415
    %v1591 = vunpack.c.l.b16 %v1416
    %v1592 = vunpack.c.l.b16 %v1417
    %v1593 = vunpack.c.l.b16 %v1418
    %v1594 = vunpack.c.l.b16 %v1419
    %v1595 = vunpack.c.l.b16 %v1420
    %v1596 = vunpack.c.l.b16 %v1421
    %v1597 = vunpack.c.l.b16 %v1422
    %v1598 = vunpack.c.l.b16 %v1423
    %v1599 = vunpack.c.l.b16 %v1424
    %v1600 = vunpack.c.l.b16 %v1425
    %v1601 = vunpack.c.l.b16 %v1426
    %v1602 = vunpack.c.l.b16 %v1427
    %v1603 = vunpack.c.l.b16 %v1428
    %v1604 = vpack.c.b16 %v1589, %v1588
    %v1605 = vpack.c.b16 %v1591, %v1590
    %v1606 = vpack.c.b16 %v1593, %v1592
    %v1607 = vpack.c.b16 %v1595, %v1594
    %v1608 = vpack.c.b16 %v1597, %v1596
    %v1609 = vpack.c.b16 %v1599, %v1598
    %v1610 = vpack.c.b16 %v1601, %v1600
    %v1611 = vpack.c.b16 %v1603, %v1602
    %1620 = vmatprep.subr.bf16.mxu0 0
    %1621 = vmatpush1.bf16.msra.mxu0 %v1604
    %1622 = vmatprep.subr.bf16.mxu0 0
    %1623 = vmatpush1.bf16.msra.mxu0 %v1605
    %1624 = vmatprep.subr.bf16.mxu0 0
    %1625 = vmatpush1.bf16.msra.mxu0 %v1606
    %1626 = vmatprep.subr.bf16.mxu0 0
    %1627 = vmatpush1.bf16.msra.mxu0 %v1607
    %1628 = vmatprep.subr.bf16.mxu0 0
    %1629 = vmatpush1.bf16.msra.mxu0 %v1608
    %1630 = vmatprep.subr.bf16.mxu0 0
    %1631 = vmatpush1.bf16.msra.mxu0 %v1609
    %1632 = vmatprep.subr.bf16.mxu0 0
    %1633 = vmatpush1.bf16.msra.mxu0 %v1610
    %1634 = vmatprep.subr.bf16.mxu0 0
    %1635 = vmatpush1.bf16.msra.mxu0 %v1611
    %1636 = vmatprep.subr.bf16.mxu0 0
    %1637 = vmatpush1.bf16.msra.mxu0 0
    %1638 = vmatprep.subr.bf16.mxu0 0
    %1639 = vmatpush1.bf16.msra.mxu0 0
    %1640 = vmatprep.subr.bf16.mxu0 0
    %1641 = vmatpush1.bf16.msra.mxu0 0
    %1642 = vmatprep.subr.bf16.mxu0 0
    %1643 = vmatpush1.bf16.msra.mxu0 0
    %1644 = vmatprep.subr.bf16.mxu0 0
    %1645 = vmatpush1.bf16.msra.mxu0 0
    %1646 = vmatprep.subr.bf16.mxu0 0
    %1647 = vmatpush1.bf16.msra.mxu0 0
    %1648 = vmatprep.subr.bf16.mxu0 0
    %1649 = vmatpush1.bf16.msra.mxu0 0
    %1650 = vmatprep.subr.bf16.mxu0 0
    %1651 = vmatpush1.bf16.msra.mxu0 0
    %1652 = vmatprep.mubr.bf16.mxu0 0
    %1653 = vmatmul.mubr.bf16.gmra.mrb[0].mxu0 %v1409
    %v1654 = vpop.f32.mrb[0].mxu0
    %v1655 = vadd.f32 %v1542, %v1654
    %v1656 = vpop.f32.mrb[0].mxu0
    %v1657 = vpop.f32.mrb[0].mxu0
    %v1658 = vadd.f32 %v1545, %v1657
    %v1659 = vpop.f32.mrb[0].mxu0
    %1660 = vmatprep.mubr.bf16.mxu0 0
    %1661 = vmatmul.mubr.bf16.gmra.mrb[0].mxu0 %v1410
    %v1662 = vpop.f32.mrb[0].mxu0
    %v1663 = vadd.f32 %v1550, %v1662
    %v1664 = vpop.f32.mrb[0].mxu0
    %v1665 = vpop.f32.mrb[0].mxu0
    %v1666 = vadd.f32 %v1553, %v1665
    %v1667 = vpop.f32.mrb[0].mxu0
    %1668 = vmatprep.mubr.bf16.mxu0 0
    %1669 = vmatmul.mubr.bf16.gmra.mrb[0].mxu0 %v1411
    %v1670 = vpop.f32.mrb[0].mxu0
    %v1671 = vadd.f32 %v1558, %v1670
    %v1672 = vpop.f32.mrb[0].mxu0
    %v1673 = vpop.f32.mrb[0].mxu0
    %v1674 = vadd.f32 %v1561, %v1673
    %v1675 = vpop.f32.mrb[0].mxu0
    %1676 = vmatprep.mubr.bf16.mxu0 0
    %1677 = vmatmul.mubr.bf16.gmra.mrb[0].mxu0 %v1412
    %v1678 = vpop.f32.mrb[0].mxu0
    %v1679 = vadd.f32 %v1566, %v1678
    %v1680 = vpop.f32.mrb[0].mxu0
    %v1681 = vpop.f32.mrb[0].mxu0
    %v1682 = vadd.f32 %v1569, %v1681
    %v1683 = vpop.f32.mrb[0].mxu0
    %1684 = vdwg.mxu0
    %v1685 = vld [vmem:[%s6] sm:$0x1]
    %v1687 = vlaneseq
    %v1688 = vshrl.u32 %v1687, 7
    %v1689 = vsub.s32 0, %v1688
    %v1690 = vrot.slane %v1685, %v1689
    %v1692 = vadd.f32 %v1655, %v1690
    %v1693 = vadd.f32 %v1658, %v1690
    %v1694 = vadd.f32 %v1663, %v1690
    %v1695 = vadd.f32 %v1666, %v1690
    %v1696 = vadd.f32 %v1671, %v1690
    %v1697 = vadd.f32 %v1674, %v1690
    %v1698 = vadd.f32 %v1679, %v1690
    %v1699 = vadd.f32 %v1682, %v1690
    %v1700 = vlaneseq
    %v1701 = vand.u32 %v1700, 127
    %vm1702 = vcmp.ge.s32.totalorder %v1701, 21
    %vm1703 = vcmp.lt.s32.totalorder %v1701, 41
    %vm1704 = vmand %vm1702, %vm1703
    %vm1705 = vcmp.ge.s32.totalorder %v1701, 81
    %vm1706 = vcmp.lt.s32.totalorder %v1701, 121
    %vm1707 = vmand %vm1705, %vm1706
    %v1708 = vsel %vm1704, %v1692, -1e+30
    %v1709 = vsel %vm1704, %v1693, -1e+30
    %v1710 = vsel %vm1704, %v1694, -1e+30
    %v1711 = vsel %vm1704, %v1695, -1e+30
    %v1712 = vsel %vm1704, %v1696, -1e+30
    %v1713 = vsel %vm1704, %v1697, -1e+30
    %v1714 = vsel %vm1704, %v1698, -1e+30
    %v1715 = vsel %vm1704, %v1699, -1e+30
    %1716 = vmax.xlane.f32.xlu0 %v1708
    %v1717 = vpop.xlane.xlu0 %1716
    %1718 = vmax.xlane.f32.xlu0 %v1709
    %v1719 = vpop.xlane.xlu0 %1718
    %1720 = vmax.xlane.f32.xlu0 %v1710
    %v1721 = vpop.xlane.xlu0 %1720
    %1722 = vmax.xlane.f32.xlu0 %v1711
    %v1723 = vpop.xlane.xlu0 %1722
    %1724 = vmax.xlane.f32.xlu0 %v1712
    %v1725 = vpop.xlane.xlu0 %1724
    %1726 = vmax.xlane.f32.xlu0 %v1713
    %v1727 = vpop.xlane.xlu0 %1726
    %1728 = vmax.xlane.f32.xlu0 %v1714
    %v1729 = vpop.xlane.xlu0 %1728
    %1730 = vmax.xlane.f32.xlu0 %v1715
    %v1731 = vpop.xlane.xlu0 %1730
    %v1732 = vsub.f32 %v1692, %v1717
    %v1733 = vsub.f32 %v1693, %v1719
    %v1734 = vsub.f32 %v1694, %v1721
    %v1735 = vsub.f32 %v1695, %v1723
    %v1736 = vsub.f32 %v1696, %v1725
    %v1737 = vsub.f32 %v1697, %v1727
    %v1738 = vsub.f32 %v1698, %v1729
    %v1739 = vsub.f32 %v1699, %v1731
    %v1740 = vsel %vm1707, %v1692, 0.0
    %v1741 = vsel %vm1707, %v1693, 0.0
    %v1742 = vsel %vm1707, %v1694, 0.0
    %v1743 = vsel %vm1707, %v1695, 0.0
    %v1744 = vsel %vm1707, %v1696, 0.0
    %v1745 = vsel %vm1707, %v1697, 0.0
    %v1746 = vsel %vm1707, %v1698, 0.0
    %v1747 = vsel %vm1707, %v1699, 0.0
    %v1748 = vsel %vm1704, %v1732, %v1740
    %v1749 = vsel %vm1704, %v1733, %v1741
    %v1750 = vsel %vm1704, %v1734, %v1742
    %v1751 = vsel %vm1704, %v1735, %v1743
    %v1752 = vsel %vm1704, %v1736, %v1744
    %v1753 = vsel %vm1704, %v1737, %v1745
    %v1754 = vsel %vm1704, %v1738, %v1746
    %v1755 = vsel %vm1704, %v1739, %v1747
    %v1756 = vmul.f32 %v1748, 1.442695
    %v1757 = vpow.pop %v1756
    %v1758 = vmul.f32 %v1749, 1.442695
    %v1759 = vpow.pop %v1758
    %v1760 = vmul.f32 %v1750, 1.442695
    %v1761 = vpow.pop %v1760
    %v1762 = vmul.f32 %v1751, 1.442695
    %v1763 = vpow.pop %v1762
    %v1764 = vmul.f32 %v1752, 1.442695
    %v1765 = vpow.pop %v1764
    %v1766 = vmul.f32 %v1753, 1.442695
    %v1767 = vpow.pop %v1766
    %v1768 = vmul.f32 %v1754, 1.442695
    %v1769 = vpow.pop %v1768
    %v1770 = vmul.f32 %v1755, 1.442695
    %v1771 = vpow.pop %v1770
    %v1772 = vsel %vm1704, %v1757, 0.0
    %v1773 = vsel %vm1704, %v1759, 0.0
    %v1774 = vsel %vm1704, %v1761, 0.0
    %v1775 = vsel %vm1704, %v1763, 0.0
    %v1776 = vsel %vm1704, %v1765, 0.0
    %v1777 = vsel %vm1704, %v1767, 0.0
    %v1778 = vsel %vm1704, %v1769, 0.0
    %v1779 = vsel %vm1704, %v1771, 0.0
    %1780 = vadd.xlane.f32.xlu0 %v1772
    %v1781 = vpop.xlane.xlu0 %1780
    %1782 = vadd.xlane.f32.xlu0 %v1773
    %v1783 = vpop.xlane.xlu0 %1782
    %1784 = vadd.xlane.f32.xlu0 %v1774
    %v1785 = vpop.xlane.xlu0 %1784
    %1786 = vadd.xlane.f32.xlu0 %v1775
    %v1787 = vpop.xlane.xlu0 %1786
    %1788 = vadd.xlane.f32.xlu0 %v1776
    %v1789 = vpop.xlane.xlu0 %1788
    %1790 = vadd.xlane.f32.xlu0 %v1777
    %v1791 = vpop.xlane.xlu0 %1790
    %1792 = vadd.xlane.f32.xlu0 %v1778
    %v1793 = vpop.xlane.xlu0 %1792
    %1794 = vadd.xlane.f32.xlu0 %v1779
    %v1795 = vpop.xlane.xlu0 %1794
    %v1796 = vrcp.pop %v1781
    %v1797 = vrcp.pop %v1783
    %v1798 = vrcp.pop %v1785
    %v1799 = vrcp.pop %v1787
    %v1800 = vrcp.pop %v1789
    %v1801 = vrcp.pop %v1791
    %v1802 = vrcp.pop %v1793
    %v1803 = vrcp.pop %v1795
    %vm1804 = vcmp.lt.s32.totalorder %v1701, 1
    %v1805 = vxor.u32 %v1692, 2147483648
    %v1806 = vxor.u32 %v1693, 2147483648
    %v1807 = vxor.u32 %v1694, 2147483648
    %v1808 = vxor.u32 %v1695, 2147483648
    %v1809 = vxor.u32 %v1696, 2147483648
    %v1810 = vxor.u32 %v1697, 2147483648
    %v1811 = vxor.u32 %v1698, 2147483648
    %v1812 = vxor.u32 %v1699, 2147483648
    %v1813 = vmul.f32 %v1805, 1.442695
    %v1814 = vpow.pop %v1813
    %v1815 = vmul.f32 %v1806, 1.442695
    %v1816 = vpow.pop %v1815
    %v1817 = vmul.f32 %v1807, 1.442695
    %v1818 = vpow.pop %v1817
    %v1819 = vmul.f32 %v1808, 1.442695
    %v1820 = vpow.pop %v1819
    %v1821 = vmul.f32 %v1809, 1.442695
    %v1822 = vpow.pop %v1821
    %v1823 = vmul.f32 %v1810, 1.442695
    %v1824 = vpow.pop %v1823
    %v1825 = vmul.f32 %v1811, 1.442695
    %v1826 = vpow.pop %v1825
    %v1827 = vmul.f32 %v1812, 1.442695
    %v1828 = vpow.pop %v1827
    %v1829 = vadd.f32 %v1814, 1.0
    %v1830 = vadd.f32 %v1816, 1.0
    %v1831 = vadd.f32 %v1818, 1.0
    %v1832 = vadd.f32 %v1820, 1.0
    %v1833 = vadd.f32 %v1822, 1.0
    %v1834 = vadd.f32 %v1824, 1.0
    %v1835 = vadd.f32 %v1826, 1.0
    %v1836 = vadd.f32 %v1828, 1.0
    %v1837 = vrcp.pop %v1829
    %v1838 = vmul.f32 1.0, %v1837
    %v1839 = vrcp.pop %v1830
    %v1840 = vmul.f32 1.0, %v1839
    %v1841 = vrcp.pop %v1831
    %v1842 = vmul.f32 1.0, %v1841
    %v1843 = vrcp.pop %v1832
    %v1844 = vmul.f32 1.0, %v1843
    %v1845 = vrcp.pop %v1833
    %v1846 = vmul.f32 1.0, %v1845
    %v1847 = vrcp.pop %v1834
    %v1848 = vmul.f32 1.0, %v1847
    %v1849 = vrcp.pop %v1835
    %v1850 = vmul.f32 1.0, %v1849
    %v1851 = vrcp.pop %v1836
    %v1852 = vmul.f32 1.0, %v1851
    %vm1853 = vcmp.lt.s32.totalorder %v1701, 21
    %v1854 = vtanh.pop %v1692
    %v1855 = vtanh.pop %v1693
    %v1856 = vtanh.pop %v1694
    %v1857 = vtanh.pop %v1695
    %v1858 = vtanh.pop %v1696
    %v1859 = vtanh.pop %v1697
    %v1860 = vtanh.pop %v1698
    %v1861 = vtanh.pop %v1699
    %v1862 = vmul.f32 %v1757, %v1796
    %v1863 = vmul.f32 %v1759, %v1797
    %v1864 = vmul.f32 %v1761, %v1798
    %v1865 = vmul.f32 %v1763, %v1799
    %v1866 = vmul.f32 %v1765, %v1800
    %v1867 = vmul.f32 %v1767, %v1801
    %v1868 = vmul.f32 %v1769, %v1802
    %v1869 = vmul.f32 %v1771, %v1803
    %vm1870 = vcmp.lt.s32.totalorder %v1701, 81
    %v1871 = vsel %vm1707, %v1757, 0.0
    %v1872 = vsel %vm1707, %v1759, 0.0
    %v1873 = vsel %vm1707, %v1761, 0.0
    %v1874 = vsel %vm1707, %v1763, 0.0
    %v1875 = vsel %vm1707, %v1765, 0.0
    %v1876 = vsel %vm1707, %v1767, 0.0
    %v1877 = vsel %vm1707, %v1769, 0.0
    %v1878 = vsel %vm1707, %v1771, 0.0
    %v1879 = vsel %vm1870, %v1692, %v1871
    %v1880 = vsel %vm1870, %v1693, %v1872
    %v1881 = vsel %vm1870, %v1694, %v1873
    %v1882 = vsel %vm1870, %v1695, %v1874
    %v1883 = vsel %vm1870, %v1696, %v1875
    %v1884 = vsel %vm1870, %v1697, %v1876
    %v1885 = vsel %vm1870, %v1698, %v1877
    %v1886 = vsel %vm1870, %v1699, %v1878
    %v1887 = vsel %vm1704, %v1862, %v1879
    %v1888 = vsel %vm1704, %v1863, %v1880
    %v1889 = vsel %vm1704, %v1864, %v1881
    %v1890 = vsel %vm1704, %v1865, %v1882
    %v1891 = vsel %vm1704, %v1866, %v1883
    %v1892 = vsel %vm1704, %v1867, %v1884
    %v1893 = vsel %vm1704, %v1868, %v1885
    %v1894 = vsel %vm1704, %v1869, %v1886
    %v1895 = vsel %vm1853, %v1854, %v1887
    %v1896 = vsel %vm1853, %v1855, %v1888
    %v1897 = vsel %vm1853, %v1856, %v1889
    %v1898 = vsel %vm1853, %v1857, %v1890
    %v1899 = vsel %vm1853, %v1858, %v1891
    %v1900 = vsel %vm1853, %v1859, %v1892
    %v1901 = vsel %vm1853, %v1860, %v1893
    %v1902 = vsel %vm1853, %v1861, %v1894
    %v1903 = vsel %vm1804, %v1838, %v1895
    %v1904 = vsel %vm1804, %v1840, %v1896
    %v1905 = vsel %vm1804, %v1842, %v1897
    %v1906 = vsel %vm1804, %v1844, %v1898
    %v1907 = vsel %vm1804, %v1846, %v1899
    %v1908 = vsel %vm1804, %v1848, %v1900
    %v1909 = vsel %vm1804, %v1850, %v1901
    %v1910 = vsel %vm1804, %v1852, %v1902
    %1911 = vst [vmem:[#allocation9] sm:$0xff] %v1903
    %1912 = vst [vmem:[#allocation9 + $0x8] sm:$0xff] %v1904
    %1913 = vst [vmem:[#allocation9 + $0x10] sm:$0xff] %v1905
    %1914 = vst [vmem:[#allocation9 + $0x18] sm:$0xff] %v1906
    %1915 = vst [vmem:[#allocation9 + $0x20] sm:$0xff] %v1907
    %1916 = vst [vmem:[#allocation9 + $0x28] sm:$0xff] %v1908
    %1917 = vst [vmem:[#allocation9 + $0x30] sm:$0xff] %v1909
    %1918 = vst [vmem:[#allocation9 + $0x38] sm:$0xff] %v1910
    %v1919 = vld [vmem:[#allocation4] sm:$0xff]
    %v1920 = vld [vmem:[#allocation4 + $0x8] sm:$0xff]
    %1921 = vst [vmem:[#allocation10] sm:$0xff] %v1919
    %1922 = vst [vmem:[#allocation10 + $0x8] sm:$0xff] %v1920
    %v1923 = vld [vmem:[#allocation5] sm:$0xff]
    %v1924 = vld [vmem:[#allocation5 + $0x8] sm:$0xff]
    %1925 = vst [vmem:[#allocation12] sm:$0xff] %v1923
    %1926 = vst [vmem:[#allocation12 + $0x8] sm:$0xff] %v1924
    // Predicated region
    $region45: #{tpu_custom_call.1} parent=1 // pred_check
      _
    $region46: #{tpu_custom_call.1} parent=1 // pred_check_branch
      %1928 = sbr.rel (0) target = $region48
    $region47: #{tpu_custom_call.1} parent=1 // pred_region
      %s1930 = ssub.s32 1024, 1024
      %1931 = vsyncadd [#allocation8], %s1930
      %s1932 = sshll.u32 [#allocation9], 4
      %s1933 = int_to_ptr.vmem [resolvable:$true] %s1932
      %1938 = dma.vmem_to_hbm [thread:$0]  %s1933, 1024, %s7, [#allocation8], 128, 128, 8
    $region48: #{tpu_custom_call.1} parent=1 // pred_fallthru
      _
    // Predicated region
    $region49: #{tpu_custom_call.1} parent=1 // pred_check
      _
    $region50: #{tpu_custom_call.1} parent=1 // pred_check_branch
      %1940 = sbr.rel (0) target = $region52
    $region51: #{tpu_custom_call.1} parent=1 // pred_region
      %s1942 = ssub.s32 256, 256
      %1943 = vsyncadd [#allocation11], %s1942
      %s1944 = sshll.u32 [#allocation10], 4
      %s1945 = int_to_ptr.vmem [resolvable:$true] %s1944
      %1950 = dma.vmem_to_hbm [thread:$0]  %s1945, 256, %s8, [#allocation11], 128, 128, 8
    $region52: #{tpu_custom_call.1} parent=1 // pred_fallthru
      _
    // Predicated region
    $region53: #{tpu_custom_call.1} parent=1 // pred_check
      _
    $region54: #{tpu_custom_call.1} parent=1 // pred_check_branch
      %1952 = sbr.rel (0) target = $region56
    $region55: #{tpu_custom_call.1} parent=1 // pred_region
      %s1954 = ssub.s32 256, 256
      %1955 = vsyncadd [#allocation11], %s1954
      %s1956 = sshll.u32 [#allocation12], 4
      %s1957 = int_to_ptr.vmem [resolvable:$true] %s1956
      %1962 = dma.vmem_to_hbm [thread:$0]  %s1957, 256, %s9, [#allocation11], 128, 128, 8
    $region56: #{tpu_custom_call.1} parent=1 // pred_fallthru
      _
    // Predicated region
    $region57: #{tpu_custom_call.1} parent=1 // pred_check
      _
    $region58: #{tpu_custom_call.1} parent=1 // pred_check_branch
      %1964 = sbr.rel (0) target = $region60
    $region59: #{tpu_custom_call.1} parent=1 // pred_region
      %1965 = dma.done [#allocation8], 1024
    $region60: #{tpu_custom_call.1} parent=1 // pred_fallthru
      _
    // Predicated region
    $region61: #{tpu_custom_call.1} parent=1 // pred_check
      _
    $region62: #{tpu_custom_call.1} parent=1 // pred_check_branch
      %1967 = sbr.rel (0) target = $region64
    $region63: #{tpu_custom_call.1} parent=1 // pred_region
      %1968 = dma.done [#allocation11], 256
    $region64: #{tpu_custom_call.1} parent=1 // pred_fallthru
      _
    // Predicated region
    $region65: #{tpu_custom_call.1} parent=1 // pred_check
      _
    $region66: #{tpu_custom_call.1} parent=1 // pred_check_branch
      %1970 = sbr.rel (0) target = $region68
    $region67: #{tpu_custom_call.1} parent=1 // pred_region
      %1971 = dma.done [#allocation11], 256
    $region68: #{tpu_custom_call.1} parent=1 // pred_fallthru
      _
    %1972 = vsyncpa [#allocation7], 1
    %1973 = vsyncpa [#allocation8], 1
    %1974 = vsyncpa [#allocation11], 1

// kernel: tpu_custom_call.1
$region0: #{tpu_custom_call.1}
  #allocation0 [shape = 'u32[]', space=smem, size = 0x4, offset = 0x4, fixed_abs, tag = 'smem constant byte address 0x4 - core index']
  #allocation1 [shape = 'u32[144,128]{1,0:T(1,128)}', space=vmem, size = 0x12000, scoped, tag = 'internal scratch']
  #allocation2 [shape = 'f32[2,64,512]{2,1,0:T(8,128)}', space=vmem, size = 0x40000, scoped, tag = 'scratch operand']
  #allocation3 [shape = 'f32[2,64,128]{2,1,0:T(8,128)}', space=vmem, size = 0x10000, scoped, tag = 'scratch operand']
  #allocation4 [shape = 'f32[2,8,128]{2,1,0:T(8,128)}', space=vmem, size = 0x2000, scoped, tag = 'scratch operand']
  #allocation5 [shape = 'f32[2,8,128]{2,1,0:T(8,128)}', space=vmem, size = 0x2000, scoped, tag = 'scratch operand']
  %s0 = inlined_call_operand.vmem [shape: s32[8,1], index: 0, kind: input, shape index: {}]
  %s1 = inlined_call_operand.vmem [shape: f32[8,8,3], index: 1, kind: input, shape index: {}]
  %s2 = inlined_call_operand.vmem [shape: bf16[2,3,512], index: 2, kind: input, shape index: {}]
  %s3 = inlined_call_operand.hbm [shape: bf16[2,256,512], index: 3, kind: input, shape index: {}]
  %s4 = inlined_call_operand.vmem [shape: f32[2,1,512], index: 4, kind: input, shape index: {}]
  %s5 = inlined_call_operand.vmem [shape: bf16[2,128,128], index: 5, kind: input, shape index: {}]
  %s6 = inlined_call_operand.vmem [shape: f32[1,128], index: 6, kind: input, shape index: {}]
  %s7 = inlined_call_operand.hbm [shape: f32[8,8,128], index: 7, kind: output, shape index: {0}]
  %s8 = inlined_call_operand.hbm [shape: f32[2,8,128], index: 8, kind: output, shape index: {1}]
  %s9 = inlined_call_operand.hbm [shape: f32[2,8,128], index: 9, kind: output, shape index: {2}]
  %10 = xla_tuple %s7, %s8, %s9
  %s11 = sld [smem:[#allocation0]]
  $region69: #{tpu_custom_call.1} parent=0
    _
  %s13 = ssub.s32 1, %s11
  %s14 = scalar_select 0, %s13, %s11
  $region1: #{tpu_custom_call.1} parent=0
    #allocation6 [shape = 'u8[524288]{0}', space=vmem, size = 0x80000, scoped, tag = 'input window, operand 3, single buffered']
    #allocation7 [shape = 's32[1]{0}', space=sflag, size = 0x4, scoped, tag = 'scoped memory for tpu_custom_call.1']
    #allocation8 [shape = 's32[1]{0}', space=sflag, size = 0x4, scoped, tag = 'scoped memory for tpu_custom_call.1']
    #allocation9 [shape = 'u8[32768]{0}', space=vmem, size = 0x8000, scoped, tag = 'output window, operand 0, single buffered']
    #allocation10 [shape = 'u8[8192]{0}', space=vmem, size = 0x2000, scoped, tag = 'output window, operand 1, single buffered']
    #allocation11 [shape = 's32[1]{0}', space=sflag, size = 0x4, scoped, tag = 'scoped memory for tpu_custom_call.1']
    #allocation12 [shape = 'u8[8192]{0}', space=vmem, size = 0x2000, scoped, tag = 'output window, operand 2, single buffered']
    %15 = vsyncpa [#allocation7], 0
    %16 = vsyncpa [#allocation8], 0
    %17 = vsyncpa [#allocation11], 0
    // Predicated region
    $region2: #{tpu_custom_call.1} parent=1 // pred_check
      _
    $region3: #{tpu_custom_call.1} parent=1 // pred_check_branch
      %19 = sbr.rel (0) target = $region5
    $region4: #{tpu_custom_call.1} parent=1 // pred_region
      _
    $region5: #{tpu_custom_call.1} parent=1 // pred_fallthru
      _
    // Predicated region
    $region6: #{tpu_custom_call.1} parent=1 // pred_check
      _
    $region7: #{tpu_custom_call.1} parent=1 // pred_check_branch
      %21 = sbr.rel (0) target = $region9
    $region8: #{tpu_custom_call.1} parent=1 // pred_region
      _
    $region9: #{tpu_custom_call.1} parent=1 // pred_fallthru
      _
    // Predicated region
    $region10: #{tpu_custom_call.1} parent=1 // pred_check
      _
    $region11: #{tpu_custom_call.1} parent=1 // pred_check_branch
      %23 = sbr.rel (0) target = $region13
    $region12: #{tpu_custom_call.1} parent=1 // pred_region
      _
    $region13: #{tpu_custom_call.1} parent=1 // pred_fallthru
      _
    // Predicated region
    $region14: #{tpu_custom_call.1} parent=1 // pred_check
      _
    $region15: #{tpu_custom_call.1} parent=1 // pred_check_branch
      %25 = sbr.rel (0) target = $region17
    $region16: #{tpu_custom_call.1} parent=1 // pred_region
      %s27 = ssub.s32 16384, 16384
      %28 = vsyncadd [#allocation7], %s27
      %s29 = sshll.u32 [#allocation6], 4
      %s30 = int_to_ptr.vmem [resolvable:$true] %s29
      %35 = dma.hbm_to_vmem [thread:$0]  %s3, 16384, %s30, [#allocation7], 256, 256, 16
    $region17: #{tpu_custom_call.1} parent=1 // pred_fallthru
      _
    // Predicated region
    $region18: #{tpu_custom_call.1} parent=1 // pred_check
      _
    $region19: #{tpu_custom_call.1} parent=1 // pred_check_branch
      %37 = sbr.rel (0) target = $region21
    $region20: #{tpu_custom_call.1} parent=1 // pred_region
      _
    $region21: #{tpu_custom_call.1} parent=1 // pred_fallthru
      _
    // Predicated region
    $region22: #{tpu_custom_call.1} parent=1 // pred_check
      _
    $region23: #{tpu_custom_call.1} parent=1 // pred_check_branch
      %39 = sbr.rel (0) target = $region25
    $region24: #{tpu_custom_call.1} parent=1 // pred_region
      _
    $region25: #{tpu_custom_call.1} parent=1 // pred_fallthru
      _
    // Predicated region
    $region26: #{tpu_custom_call.1} parent=1 // pred_check
      _
    $region27: #{tpu_custom_call.1} parent=1 // pred_check_branch
      %41 = sbr.rel (0) target = $region29
    $region28: #{tpu_custom_call.1} parent=1 // pred_region
      _
    $region29: #{tpu_custom_call.1} parent=1 // pred_fallthru
      _
    // Predicated region
    $region30: #{tpu_custom_call.1} parent=1 // pred_check
      _
    $region31: #{tpu_custom_call.1} parent=1 // pred_check_branch
      %43 = sbr.rel (0) target = $region33
    $region32: #{tpu_custom_call.1} parent=1 // pred_region
      %44 = dma.done [#allocation7], 16384
    $region33: #{tpu_custom_call.1} parent=1 // pred_fallthru
      _
    %p46 = scmp.eq.s32.totalorder 0, 0
    // Predicated region
    $region34: #{tpu_custom_call.1} parent=1 // pred_check
      %p47 = pneg %p46
    $region35: #{tpu_custom_call.1} parent=1 // pred_check_branch
      %49 = sbr.rel (%p47) target = $region37
    $region36: #{tpu_custom_call.1} parent=1 // pred_region
      %50 = vst [vmem:[#allocation4] sm:$0xff] 0.0
      %51 = vst [vmem:[#allocation4 + $0x8] sm:$0xff] 0.0
      %52 = vst [vmem:[#allocation5] sm:$0xff] 0.0
      %53 = vst [vmem:[#allocation5 + $0x8] sm:$0xff] 0.0
    $region37: #{tpu_custom_call.1} parent=1 // pred_fallthru
      _
    %v54 = vld [vmem:[%s1] sm:$0xff]
    %v55 = vld [vmem:[%s1 + $0x8] sm:$0xff]
    %v56 = vld [vmem:[%s1 + $0x10] sm:$0xff]
    %v57 = vld [vmem:[%s1 + $0x18] sm:$0xff]
    %v58 = vld [vmem:[%s1 + $0x20] sm:$0xff]
    %v59 = vld [vmem:[%s1 + $0x28] sm:$0xff]
    %v60 = vld [vmem:[%s1 + $0x30] sm:$0xff]
    %v61 = vld [vmem:[%s1 + $0x38] sm:$0xff]
    %v62 = vpack.c.bf16 %v55, %v54
    %v63 = vpack.c.bf16 %v57, %v56
    %v64 = vpack.c.bf16 %v59, %v58
    %v65 = vpack.c.bf16 %v61, %v60
    %v66 = vld [vmem:[%s2] sm:$0xff]
    %v67 = vld [vmem:[%s4] sm:$0xf]
    %v69 = vlaneseq
    %v70 = vshrl.u32 %v69, 7
    %v71 = vsub.s32 0, %v70
    %v72 = vrot.slane %v67, %v71
    %v73 = vlaneseq
    %v74 = vshrl.u32 %v73, 7
    %v75 = vsub.s32 1, %v74
    %v76 = vrot.slane %v67, %v75
    %v77 = vlaneseq
    %v78 = vshrl.u32 %v77, 7
    %v79 = vsub.s32 2, %v78
    %v80 = vrot.slane %v67, %v79
    %v81 = vlaneseq
    %v82 = vshrl.u32 %v81, 7
    %v83 = vsub.s32 3, %v82
    %v84 = vrot.slane %v67, %v83
    %v90 = vcombine.high %v66, %v66
    %v92 = vunpack.c.l.s4 1983009808
    %v93 = vunpack.c.0.s8 %v92
    %v94 = vlaneseq
    %v95 = vshrl.u32 %v94, 7
    %v96 = vsub.s32 %v93, %v95
    %v97 = vrot.slane %v66, %v96
    %v99 = vunpack.c.l.s4 1983009808
    %v100 = vunpack.c.0.s8 %v99
    %v101 = vlaneseq
    %v102 = vshrl.u32 %v101, 7
    %v103 = vsub.s32 %v100, %v102
    %v104 = vrot.slane %v90, %v103
    %v105 = vcombine.high %v97, %v97
    %v106 = vcombine.high %v104, %v104
    %vm107 = vcmask 23552
    %v109 = vsel %vm107, %v62, 0
    %v112 = vsel %vm107, %v63, 0
    %v115 = vsel %vm107, %v64, 0
    %v118 = vsel %vm107, %v65, 0
    %vm120 = vcmask 1040384
    %vm121 = vcmask 1041408
    %v122 = vsel %vm120, 4294967295, 65535
    %v123 = vsel %vm121, %v122, 0
    %v125 = vand.u32 %v97, %v123
    %v128 = vand.u32 %v105, %v123
    %v131 = vand.u32 %v104, %v123
    %v134 = vand.u32 %v106, %v123
    %136 = vmatprep.subr.bf16.mxu0 %v128
    %137 = vmatpush1.bf16.msra.mxu0 %v125
    %138 = vmatprep.subr.bf16.mxu0 0
    %139 = vmatpush1.bf16.msra.mxu0 0
    %140 = vmatprep.subr.bf16.mxu0 0
    %141 = vmatpush1.bf16.msra.mxu0 0
    %142 = vmatprep.subr.bf16.mxu0 0
    %143 = vmatpush1.bf16.msra.mxu0 0
    %144 = vmatprep.subr.bf16.mxu0 0
    %145 = vmatpush1.bf16.msra.mxu0 0
    %146 = vmatprep.subr.bf16.mxu0 0
    %147 = vmatpush1.bf16.msra.mxu0 0
    %148 = vmatprep.subr.bf16.mxu0 0
    %149 = vmatpush1.bf16.msra.mxu0 0
    %150 = vmatprep.subr.bf16.mxu0 0
    %151 = vmatpush1.bf16.msra.mxu0 0
    %152 = vmatprep.subr.bf16.mxu0 0
    %153 = vmatpush1.bf16.msra.mxu0 0
    %154 = vmatprep.subr.bf16.mxu0 0
    %155 = vmatpush1.bf16.msra.mxu0 0
    %156 = vmatprep.subr.bf16.mxu0 0
    %157 = vmatpush1.bf16.msra.mxu0 0
    %158 = vmatprep.subr.bf16.mxu0 0
    %159 = vmatpush1.bf16.msra.mxu0 0
    %160 = vmatprep.subr.bf16.mxu0 0
    %161 = vmatpush1.bf16.msra.mxu0 0
    %162 = vmatprep.subr.bf16.mxu0 0
    %163 = vmatpush1.bf16.msra.mxu0 0
    %164 = vmatprep.subr.bf16.mxu0 0
    %165 = vmatpush1.bf16.msra.mxu0 0
    %166 = vmatprep.subr.bf16.mxu0 0
    %167 = vmatpush1.bf16.msra.mxu0 0
    %168 = vmatprep.mubr.bf16.mxu0 0
    %169 = vmatmul.mubr.bf16.gmra.mrb[0].mxu0 %v109
    %v170 = vpop.f32.mrb[0].mxu0
    %v171 = vadd.f32 %v72, %v170
    %v172 = vpop.f32.mrb[0].mxu0
    %v173 = vadd.f32 %v76, %v172
    %v174 = vpop.f32.mrb[0].mxu0
    %v175 = vadd.f32 %v72, %v174
    %v176 = vpop.f32.mrb[0].mxu0
    %v177 = vadd.f32 %v76, %v176
    %178 = vmatprep.mubr.bf16.mxu0 0
    %179 = vmatmul.mubr.bf16.gmra.mrb[0].mxu0 %v112
    %v180 = vpop.f32.mrb[0].mxu0
    %v181 = vadd.f32 %v72, %v180
    %v182 = vpop.f32.mrb[0].mxu0
    %v183 = vadd.f32 %v76, %v182
    %v184 = vpop.f32.mrb[0].mxu0
    %v185 = vadd.f32 %v72, %v184
    %v186 = vpop.f32.mrb[0].mxu0
    %v187 = vadd.f32 %v76, %v186
    %188 = vmatprep.mubr.bf16.mxu0 0
    %189 = vmatmul.mubr.bf16.gmra.mrb[0].mxu0 %v115
    %v190 = vpop.f32.mrb[0].mxu0
    %v191 = vadd.f32 %v72, %v190
    %v192 = vpop.f32.mrb[0].mxu0
    %v193 = vadd.f32 %v76, %v192
    %v194 = vpop.f32.mrb[0].mxu0
    %v195 = vadd.f32 %v72, %v194
    %v196 = vpop.f32.mrb[0].mxu0
    %v197 = vadd.f32 %v76, %v196
    %198 = vmatprep.mubr.bf16.mxu0 0
    %199 = vmatmul.mubr.bf16.gmra.mrb[0].mxu0 %v118
    %v200 = vpop.f32.mrb[0].mxu0
    %v201 = vadd.f32 %v72, %v200
    %v202 = vpop.f32.mrb[0].mxu0
    %v203 = vadd.f32 %v76, %v202
    %v204 = vpop.f32.mrb[0].mxu0
    %v205 = vadd.f32 %v72, %v204
    %v206 = vpop.f32.mrb[0].mxu0
    %v207 = vadd.f32 %v76, %v206
    %208 = vdwg.mxu0
    %209 = vmatprep.subr.bf16.mxu0 %v134
    %210 = vmatpush1.bf16.msra.mxu0 %v131
    %211 = vmatprep.subr.bf16.mxu0 0
    %212 = vmatpush1.bf16.msra.mxu0 0
    %213 = vmatprep.subr.bf16.mxu0 0
    %214 = vmatpush1.bf16.msra.mxu0 0
    %215 = vmatprep.subr.bf16.mxu0 0
    %216 = vmatpush1.bf16.msra.mxu0 0
    %217 = vmatprep.subr.bf16.mxu0 0
    %218 = vmatpush1.bf16.msra.mxu0 0
    %219 = vmatprep.subr.bf16.mxu0 0
    %220 = vmatpush1.bf16.msra.mxu0 0
    %221 = vmatprep.subr.bf16.mxu0 0
    %222 = vmatpush1.bf16.msra.mxu0 0
    %223 = vmatprep.subr.bf16.mxu0 0
    %224 = vmatpush1.bf16.msra.mxu0 0
    %225 = vmatprep.subr.bf16.mxu0 0
    %226 = vmatpush1.bf16.msra.mxu0 0
    %227 = vmatprep.subr.bf16.mxu0 0
    %228 = vmatpush1.bf16.msra.mxu0 0
    %229 = vmatprep.subr.bf16.mxu0 0
    %230 = vmatpush1.bf16.msra.mxu0 0
    %231 = vmatprep.subr.bf16.mxu0 0
    %232 = vmatpush1.bf16.msra.mxu0 0
    %233 = vmatprep.subr.bf16.mxu0 0
    %234 = vmatpush1.bf16.msra.mxu0 0
    %235 = vmatprep.subr.bf16.mxu0 0
    %236 = vmatpush1.bf16.msra.mxu0 0
    %237 = vmatprep.subr.bf16.mxu0 0
    %238 = vmatpush1.bf16.msra.mxu0 0
    %239 = vmatprep.subr.bf16.mxu0 0
    %240 = vmatpush1.bf16.msra.mxu0 0
    %241 = vmatprep.mubr.bf16.mxu0 0
    %242 = vmatmul.mubr.bf16.gmra.mrb[0].mxu0 %v109
    %v243 = vpop.f32.mrb[0].mxu0
    %v244 = vadd.f32 %v80, %v243
    %v245 = vpop.f32.mrb[0].mxu0
    %v246 = vadd.f32 %v84, %v245
    %v247 = vpop.f32.mrb[0].mxu0
    %v248 = vadd.f32 %v80, %v247
    %v249 = vpop.f32.mrb[0].mxu0
    %v250 = vadd.f32 %v84, %v249
    %251 = vmatprep.mubr.bf16.mxu0 0
    %252 = vmatmul.mubr.bf16.gmra.mrb[0].mxu0 %v112
    %v253 = vpop.f32.mrb[0].mxu0
    %v254 = vadd.f32 %v80, %v253
    %v255 = vpop.f32.mrb[0].mxu0
    %v256 = vadd.f32 %v84, %v255
    %v257 = vpop.f32.mrb[0].mxu0
    %v258 = vadd.f32 %v80, %v257
    %v259 = vpop.f32.mrb[0].mxu0
    %v260 = vadd.f32 %v84, %v259
    %261 = vmatprep.mubr.bf16.mxu0 0
    %262 = vmatmul.mubr.bf16.gmra.mrb[0].mxu0 %v115
    %v263 = vpop.f32.mrb[0].mxu0
    %v264 = vadd.f32 %v80, %v263
    %v265 = vpop.f32.mrb[0].mxu0
    %v266 = vadd.f32 %v84, %v265
    %v267 = vpop.f32.mrb[0].mxu0
    %v268 = vadd.f32 %v80, %v267
    %v269 = vpop.f32.mrb[0].mxu0
    %v270 = vadd.f32 %v84, %v269
    %271 = vmatprep.mubr.bf16.mxu0 0
    %272 = vmatmul.mubr.bf16.gmra.mrb[0].mxu0 %v118
    %v273 = vpop.f32.mrb[0].mxu0
    %v274 = vadd.f32 %v80, %v273
    %v275 = vpop.f32.mrb[0].mxu0
    %v276 = vadd.f32 %v84, %v275
    %v277 = vpop.f32.mrb[0].mxu0
    %v278 = vadd.f32 %v80, %v277
    %v279 = vpop.f32.mrb[0].mxu0
    %v280 = vadd.f32 %v84, %v279
    %281 = vdwg.mxu0
    %282 = vst [vmem:[#allocation2] sm:$0xff] %v171
    %283 = vst [vmem:[#allocation2 + $0x8] sm:$0xff] %v173
    %284 = vst [vmem:[#allocation2 + $0x10] sm:$0xff] %v244
    %285 = vst [vmem:[#allocation2 + $0x18] sm:$0xff] %v246
    %286 = vst [vmem:[#allocation2 + $0x20] sm:$0xff] %v175
    %287 = vst [vmem:[#allocation2 + $0x28] sm:$0xff] %v177
    %288 = vst [vmem:[#allocation2 + $0x30] sm:$0xff] %v248
    %289 = vst [vmem:[#allocation2 + $0x38] sm:$0xff] %v250
    %290 = vst [vmem:[#allocation2 + $0x40] sm:$0xff] %v181
    %291 = vst [vmem:[#allocation2 + $0x48] sm:$0xff] %v183
    %292 = vst [vmem:[#allocation2 + $0x50] sm:$0xff] %v254
    %293 = vst [vmem:[#allocation2 + $0x58] sm:$0xff] %v256
    %294 = vst [vmem:[#allocation2 + $0x60] sm:$0xff] %v185
    %295 = vst [vmem:[#allocation2 + $0x68] sm:$0xff] %v187
    %296 = vst [vmem:[#allocation2 + $0x70] sm:$0xff] %v258
    %297 = vst [vmem:[#allocation2 + $0x78] sm:$0xff] %v260
    %298 = vst [vmem:[#allocation2 + $0x80] sm:$0xff] %v191
    %299 = vst [vmem:[#allocation2 + $0x88] sm:$0xff] %v193
    %300 = vst [vmem:[#allocation2 + $0x90] sm:$0xff] %v264
    %301 = vst [vmem:[#allocation2 + $0x98] sm:$0xff] %v266
    %302 = vst [vmem:[#allocation2 + $0xa0] sm:$0xff] %v195
    %303 = vst [vmem:[#allocation2 + $0xa8] sm:$0xff] %v197
    %304 = vst [vmem:[#allocation2 + $0xb0] sm:$0xff] %v268
    %305 = vst [vmem:[#allocation2 + $0xb8] sm:$0xff] %v270
    %306 = vst [vmem:[#allocation2 + $0xc0] sm:$0xff] %v201
    %307 = vst [vmem:[#allocation2 + $0xc8] sm:$0xff] %v203
    %308 = vst [vmem:[#allocation2 + $0xd0] sm:$0xff] %v274
    %309 = vst [vmem:[#allocation2 + $0xd8] sm:$0xff] %v276
    %310 = vst [vmem:[#allocation2 + $0xe0] sm:$0xff] %v205
    %311 = vst [vmem:[#allocation2 + $0xe8] sm:$0xff] %v207
    %312 = vst [vmem:[#allocation2 + $0xf0] sm:$0xff] %v278
    %313 = vst [vmem:[#allocation2 + $0xf8] sm:$0xff] %v280
    %s314 = scalar_lea.vmem %s2, 8
    %v315 = vld [vmem:[%s314] sm:$0xff]
    %s316 = scalar_lea.vmem %s4, 4
    %v317 = vld [vmem:[%s316] sm:$0xf]
    %v319 = vlaneseq
    %v320 = vshrl.u32 %v319, 7
    %v321 = vsub.s32 0, %v320
    %v322 = vrot.slane %v317, %v321
    %v323 = vlaneseq
    %v324 = vshrl.u32 %v323, 7
    %v325 = vsub.s32 1, %v324
    %v326 = vrot.slane %v317, %v325
    %v327 = vlaneseq
    %v328 = vshrl.u32 %v327, 7
    %v329 = vsub.s32 2, %v328
    %v330 = vrot.slane %v317, %v329
    %v331 = vlaneseq
    %v332 = vshrl.u32 %v331, 7
    %v333 = vsub.s32 3, %v332
    %v334 = vrot.slane %v317, %v333
    %v340 = vcombine.high %v315, %v315
    %v342 = vunpack.c.l.s4 1983009808
    %v343 = vunpack.c.0.s8 %v342
    %v344 = vlaneseq
    %v345 = vshrl.u32 %v344, 7
    %v346 = vsub.s32 %v343, %v345
    %v347 = vrot.slane %v315, %v346
    %v349 = vunpack.c.l.s4 1983009808
    %v350 = vunpack.c.0.s8 %v349
    %v351 = vlaneseq
    %v352 = vshrl.u32 %v351, 7
    %v353 = vsub.s32 %v350, %v352
    %v354 = vrot.slane %v340, %v353
    %v355 = vcombine.high %v347, %v347
    %v356 = vcombine.high %v354, %v354
    %v358 = vand.u32 %v347, %v123
    %v361 = vand.u32 %v355, %v123
    %v364 = vand.u32 %v354, %v123
    %v367 = vand.u32 %v356, %v123
    %369 = vmatprep.subr.bf16.mxu0 %v361
    %370 = vmatpush1.bf16.msra.mxu0 %v358
    %371 = vmatprep.subr.bf16.mxu0 0
    %372 = vmatpush1.bf16.msra.mxu0 0
    %373 = vmatprep.subr.bf16.mxu0 0
    %374 = vmatpush1.bf16.msra.mxu0 0
    %375 = vmatprep.subr.bf16.mxu0 0
    %376 = vmatpush1.bf16.msra.mxu0 0
    %377 = vmatprep.subr.bf16.mxu0 0
    %378 = vmatpush1.bf16.msra.mxu0 0
    %379 = vmatprep.subr.bf16.mxu0 0
    %380 = vmatpush1.bf16.msra.mxu0 0
    %381 = vmatprep.subr.bf16.mxu0 0
    %382 = vmatpush1.bf16.msra.mxu0 0
    %383 = vmatprep.subr.bf16.mxu0 0
    %384 = vmatpush1.bf16.msra.mxu0 0
    %385 = vmatprep.subr.bf16.mxu0 0
    %386 = vmatpush1.bf16.msra.mxu0 0
    %387 = vmatprep.subr.bf16.mxu0 0
    %388 = vmatpush1.bf16.msra.mxu0 0
    %389 = vmatprep.subr.bf16.mxu0 0
    %390 = vmatpush1.bf16.msra.mxu0 0
    %391 = vmatprep.subr.bf16.mxu0 0
    %392 = vmatpush1.bf16.msra.mxu0 0
    %393 = vmatprep.subr.bf16.mxu0 0
    %394 = vmatpush1.bf16.msra.mxu0 0
    %395 = vmatprep.subr.bf16.mxu0 0
    %396 = vmatpush1.bf16.msra.mxu0 0
    %397 = vmatprep.subr.bf16.mxu0 0
    %398 = vmatpush1.bf16.msra.mxu0 0
    %399 = vmatprep.subr.bf16.mxu0 0
    %400 = vmatpush1.bf16.msra.mxu0 0
    %401 = vmatprep.mubr.bf16.mxu0 0
    %402 = vmatmul.mubr.bf16.gmra.mrb[0].mxu0 %v109
    %v403 = vpop.f32.mrb[0].mxu0
    %v404 = vadd.f32 %v322, %v403
    %v405 = vpop.f32.mrb[0].mxu0
    %v406 = vadd.f32 %v326, %v405
    %v407 = vpop.f32.mrb[0].mxu0
    %v408 = vadd.f32 %v322, %v407
    %v409 = vpop.f32.mrb[0].mxu0
    %v410 = vadd.f32 %v326, %v409
    %411 = vmatprep.mubr.bf16.mxu0 0
    %412 = vmatmul.mubr.bf16.gmra.mrb[0].mxu0 %v112
    %v413 = vpop.f32.mrb[0].mxu0
    %v414 = vadd.f32 %v322, %v413
    %v415 = vpop.f32.mrb[0].mxu0
    %v416 = vadd.f32 %v326, %v415
    %v417 = vpop.f32.mrb[0].mxu0
    %v418 = vadd.f32 %v322, %v417
    %v419 = vpop.f32.mrb[0].mxu0
    %v420 = vadd.f32 %v326, %v419
    %421 = vmatprep.mubr.bf16.mxu0 0
    %422 = vmatmul.mubr.bf16.gmra.mrb[0].mxu0 %v115
    %v423 = vpop.f32.mrb[0].mxu0
    %v424 = vadd.f32 %v322, %v423
    %v425 = vpop.f32.mrb[0].mxu0
    %v426 = vadd.f32 %v326, %v425
    %v427 = vpop.f32.mrb[0].mxu0
    %v428 = vadd.f32 %v322, %v427
    %v429 = vpop.f32.mrb[0].mxu0
    %v430 = vadd.f32 %v326, %v429
    %431 = vmatprep.mubr.bf16.mxu0 0
    %432 = vmatmul.mubr.bf16.gmra.mrb[0].mxu0 %v118
    %v433 = vpop.f32.mrb[0].mxu0
    %v434 = vadd.f32 %v322, %v433
    %v435 = vpop.f32.mrb[0].mxu0
    %v436 = vadd.f32 %v326, %v435
    %v437 = vpop.f32.mrb[0].mxu0
    %v438 = vadd.f32 %v322, %v437
    %v439 = vpop.f32.mrb[0].mxu0
    %v440 = vadd.f32 %v326, %v439
    %441 = vdwg.mxu0
    %442 = vmatprep.subr.bf16.mxu0 %v367
    %443 = vmatpush1.bf16.msra.mxu0 %v364
    %444 = vmatprep.subr.bf16.mxu0 0
    %445 = vmatpush1.bf16.msra.mxu0 0
    %446 = vmatprep.subr.bf16.mxu0 0
    %447 = vmatpush1.bf16.msra.mxu0 0
    %448 = vmatprep.subr.bf16.mxu0 0
    %449 = vmatpush1.bf16.msra.mxu0 0
    %450 = vmatprep.subr.bf16.mxu0 0
    %451 = vmatpush1.bf16.msra.mxu0 0
    %452 = vmatprep.subr.bf16.mxu0 0
    %453 = vmatpush1.bf16.msra.mxu0 0
    %454 = vmatprep.subr.bf16.mxu0 0
    %455 = vmatpush1.bf16.msra.mxu0 0
    %456 = vmatprep.subr.bf16.mxu0 0
    %457 = vmatpush1.bf16.msra.mxu0 0
    %458 = vmatprep.subr.bf16.mxu0 0
    %459 = vmatpush1.bf16.msra.mxu0 0
    %460 = vmatprep.subr.bf16.mxu0 0
    %461 = vmatpush1.bf16.msra.mxu0 0
    %462 = vmatprep.subr.bf16.mxu0 0
    %463 = vmatpush1.bf16.msra.mxu0 0
    %464 = vmatprep.subr.bf16.mxu0 0
    %465 = vmatpush1.bf16.msra.mxu0 0
    %466 = vmatprep.subr.bf16.mxu0 0
    %467 = vmatpush1.bf16.msra.mxu0 0
    %468 = vmatprep.subr.bf16.mxu0 0
    %469 = vmatpush1.bf16.msra.mxu0 0
    %470 = vmatprep.subr.bf16.mxu0 0
    %471 = vmatpush1.bf16.msra.mxu0 0
    %472 = vmatprep.subr.bf16.mxu0 0
    %473 = vmatpush1.bf16.msra.mxu0 0
    %474 = vmatprep.mubr.bf16.mxu0 0
    %475 = vmatmul.mubr.bf16.gmra.mrb[0].mxu0 %v109
    %v476 = vpop.f32.mrb[0].mxu0
    %v477 = vadd.f32 %v330, %v476
    %v478 = vpop.f32.mrb[0].mxu0
    %v479 = vadd.f32 %v334, %v478
    %v480 = vpop.f32.mrb[0].mxu0
    %v481 = vadd.f32 %v330, %v480
    %v482 = vpop.f32.mrb[0].mxu0
    %v483 = vadd.f32 %v334, %v482
    %484 = vmatprep.mubr.bf16.mxu0 0
    %485 = vmatmul.mubr.bf16.gmra.mrb[0].mxu0 %v112
    %v486 = vpop.f32.mrb[0].mxu0
    %v487 = vadd.f32 %v330, %v486
    %v488 = vpop.f32.mrb[0].mxu0
    %v489 = vadd.f32 %v334, %v488
    %v490 = vpop.f32.mrb[0].mxu0
    %v491 = vadd.f32 %v330, %v490
    %v492 = vpop.f32.mrb[0].mxu0
    %v493 = vadd.f32 %v334, %v492
    %494 = vmatprep.mubr.bf16.mxu0 0
    %495 = vmatmul.mubr.bf16.gmra.mrb[0].mxu0 %v115
    %v496 = vpop.f32.mrb[0].mxu0
    %v497 = vadd.f32 %v330, %v496
    %v498 = vpop.f32.mrb[0].mxu0
    %v499 = vadd.f32 %v334, %v498
    %v500 = vpop.f32.mrb[0].mxu0
    %v501 = vadd.f32 %v330, %v500
    %v502 = vpop.f32.mrb[0].mxu0
    %v503 = vadd.f32 %v334, %v502
    %504 = vmatprep.mubr.bf16.mxu0 0
    %505 = vmatmul.mubr.bf16.gmra.mrb[0].mxu0 %v118
    %v506 = vpop.f32.mrb[0].mxu0
    %v507 = vadd.f32 %v330, %v506
    %v508 = vpop.f32.mrb[0].mxu0
    %v509 = vadd.f32 %v334, %v508
    %v510 = vpop.f32.mrb[0].mxu0
    %v511 = vadd.f32 %v330, %v510
    %v512 = vpop.f32.mrb[0].mxu0
    %v513 = vadd.f32 %v334, %v512
    %514 = vdwg.mxu0
    %s515 = scalar_lea.vmem [#allocation2], 256
    %516 = vst [vmem:[%s515] sm:$0xff] %v404
    %517 = vst [vmem:[%s515 + $0x8] sm:$0xff] %v406
    %518 = vst [vmem:[%s515 + $0x10] sm:$0xff] %v477
    %519 = vst [vmem:[%s515 + $0x18] sm:$0xff] %v479
    %520 = vst [vmem:[%s515 + $0x20] sm:$0xff] %v408
    %521 = vst [vmem:[%s515 + $0x28] sm:$0xff] %v410
    %522 = vst [vmem:[%s515 + $0x30] sm:$0xff] %v481
    %523 = vst [vmem:[%s515 + $0x38] sm:$0xff] %v483
    %524 = vst [vmem:[%s515 + $0x40] sm:$0xff] %v414
    %525 = vst [vmem:[%s515 + $0x48] sm:$0xff] %v416
    %526 = vst [vmem:[%s515 + $0x50] sm:$0xff] %v487
    %527 = vst [vmem:[%s515 + $0x58] sm:$0xff] %v489
    %528 = vst [vmem:[%s515 + $0x60] sm:$0xff] %v418
    %529 = vst [vmem:[%s515 + $0x68] sm:$0xff] %v420
    %530 = vst [vmem:[%s515 + $0x70] sm:$0xff] %v491
    %531 = vst [vmem:[%s515 + $0x78] sm:$0xff] %v493
    %532 = vst [vmem:[%s515 + $0x80] sm:$0xff] %v424
    %533 = vst [vmem:[%s515 + $0x88] sm:$0xff] %v426
    %534 = vst [vmem:[%s515 + $0x90] sm:$0xff] %v497
    %535 = vst [vmem:[%s515 + $0x98] sm:$0xff] %v499
    %536 = vst [vmem:[%s515 + $0xa0] sm:$0xff] %v428
    %537 = vst [vmem:[%s515 + $0xa8] sm:$0xff] %v430
    %538 = vst [vmem:[%s515 + $0xb0] sm:$0xff] %v501
    %539 = vst [vmem:[%s515 + $0xb8] sm:$0xff] %v503
    %540 = vst [vmem:[%s515 + $0xc0] sm:$0xff] %v434
    %541 = vst [vmem:[%s515 + $0xc8] sm:$0xff] %v436
    %542 = vst [vmem:[%s515 + $0xd0] sm:$0xff] %v507
    %543 = vst [vmem:[%s515 + $0xd8] sm:$0xff] %v509
    %544 = vst [vmem:[%s515 + $0xe0] sm:$0xff] %v438
    %545 = vst [vmem:[%s515 + $0xe8] sm:$0xff] %v440
    %546 = vst [vmem:[%s515 + $0xf0] sm:$0xff] %v511
    %547 = vst [vmem:[%s515 + $0xf8] sm:$0xff] %v513
    %v548 = vld [vmem:[%s0] sm:$0xff]
    %s549 = smul.u32 0, 8
    loop: start=0, step=1, limit=8
    $region38: #{tpu_custom_call.1} parent=1 // loop_pre_header
      _
    $region39: #{tpu_custom_call.1} parent=1 // loop_header
      %s551 = sphi 0, %s555
      %p552 = scmp.ge.s32.totalorder %s551, 8
    $region40: #{tpu_custom_call.1} parent=1 // loop_header_branch
      %554 = sbr.rel (%p552) target = $region44
    $region41: #{tpu_custom_call.1} parent=1 // loop_body
      %s556 = sadd.s32 %s549, %s551
      %v557 = vstv %s556
      %vm558 = vcmp.gt.s32.totalorder %v548, %v557
      %s559 = smul.u32 %s551, 8
      %v560 = vld [vmem:[#allocation4] sm:$0xff]
      %v561 = vld [vmem:[#allocation5] sm:$0xff]
      %s562 = sshra.s32 %s559, 3
      %s563 = sand.u32 %s559, 7
      %s564 = smul.u32 %s562, 4
      %s565 = smul.addr %s564, 8
      %s566 = scalar_lea.vmem [#allocation2], %s565
      %v567 = vld [vmem:[%s566] sm:$0xff]
      %v568 = vld [vmem:[%s566 + $0x8] sm:$0xff]
      %v569 = vld [vmem:[%s566 + $0x10] sm:$0xff]
      %v570 = vld [vmem:[%s566 + $0x18] sm:$0xff]
      %v571 = vpack.c.bf16 %v560, %v560
      %v572 = vld [vmem:[#allocation6] sm:$0xff]
      %v573 = vld [vmem:[#allocation6 + $0x8] sm:$0xff]
      %v574 = vld [vmem:[#allocation6 + $0x10] sm:$0xff]
      %v575 = vld [vmem:[#allocation6 + $0x18] sm:$0xff]
      %v576 = vld [vmem:[#allocation6 + $0x20] sm:$0xff]
      %v577 = vld [vmem:[#allocation6 + $0x28] sm:$0xff]
      %v578 = vld [vmem:[#allocation6 + $0x30] sm:$0xff]
      %v579 = vld [vmem:[#allocation6 + $0x38] sm:$0xff]
      %v580 = vld [vmem:[#allocation6 + $0x40] sm:$0xff]
      %v581 = vld [vmem:[#allocation6 + $0x48] sm:$0xff]
      %v582 = vld [vmem:[#allocation6 + $0x50] sm:$0xff]
      %v583 = vld [vmem:[#allocation6 + $0x58] sm:$0xff]
      %v584 = vld [vmem:[#allocation6 + $0x60] sm:$0xff]
      %v585 = vld [vmem:[#allocation6 + $0x68] sm:$0xff]
      %v586 = vld [vmem:[#allocation6 + $0x70] sm:$0xff]
      %v587 = vld [vmem:[#allocation6 + $0x78] sm:$0xff]
      %v588 = vld [vmem:[#allocation6 + $0x80] sm:$0xff]
      %v589 = vld [vmem:[#allocation6 + $0x88] sm:$0xff]
      %v590 = vld [vmem:[#allocation6 + $0x90] sm:$0xff]
      %v591 = vld [vmem:[#allocation6 + $0x98] sm:$0xff]
      %v592 = vld [vmem:[#allocation6 + $0xa0] sm:$0xff]
      %v593 = vld [vmem:[#allocation6 + $0xa8] sm:$0xff]
      %v594 = vld [vmem:[#allocation6 + $0xb0] sm:$0xff]
      %v595 = vld [vmem:[#allocation6 + $0xb8] sm:$0xff]
      %v596 = vld [vmem:[#allocation6 + $0xc0] sm:$0xff]
      %v597 = vld [vmem:[#allocation6 + $0xc8] sm:$0xff]
      %v598 = vld [vmem:[#allocation6 + $0xd0] sm:$0xff]
      %v599 = vld [vmem:[#allocation6 + $0xd8] sm:$0xff]
      %v600 = vld [vmem:[#allocation6 + $0xe0] sm:$0xff]
      %v601 = vld [vmem:[#allocation6 + $0xe8] sm:$0xff]
      %v602 = vld [vmem:[#allocation6 + $0xf0] sm:$0xff]
      %v603 = vld [vmem:[#allocation6 + $0xf8] sm:$0xff]
      %v636 = vunpack.c.l.b16 %v572
      %v637 = vunpack.c.h.b16 %v572
      %v638 = vunpack.c.l.b16 %v573
      %v639 = vunpack.c.h.b16 %v573
      %v640 = vunpack.c.l.b16 %v574
      %v641 = vunpack.c.h.b16 %v574
      %v642 = vunpack.c.l.b16 %v575
      %v643 = vunpack.c.h.b16 %v575
      %v644 = vunpack.c.l.b16 %v576
      %v645 = vunpack.c.h.b16 %v576
      %v646 = vunpack.c.l.b16 %v577
      %v647 = vunpack.c.h.b16 %v577
      %v648 = vunpack.c.l.b16 %v578
      %v649 = vunpack.c.h.b16 %v578
      %v650 = vunpack.c.l.b16 %v579
      %v651 = vunpack.c.h.b16 %v579
      %v652 = vunpack.c.l.b16 %v580
      %v653 = vunpack.c.h.b16 %v580
      %v654 = vunpack.c.l.b16 %v581
      %v655 = vunpack.c.h.b16 %v581
      %v656 = vunpack.c.l.b16 %v582
      %v657 = vunpack.c.h.b16 %v582
      %v658 = vunpack.c.l.b16 %v583
      %v659 = vunpack.c.h.b16 %v583
      %v660 = vunpack.c.l.b16 %v584
      %v661 = vunpack.c.h.b16 %v584
      %v662 = vunpack.c.l.b16 %v585
      %v663 = vunpack.c.h.b16 %v585
      %v664 = vunpack.c.l.b16 %v586
      %v665 = vunpack.c.h.b16 %v586
      %v666 = vunpack.c.l.b16 %v587
      %v667 = vunpack.c.h.b16 %v587
      %v668 = vunpack.c.l.b16 %v588
      %v669 = vunpack.c.h.b16 %v588
      %v670 = vunpack.c.l.b16 %v589
      %v671 = vunpack.c.h.b16 %v589
      %v672 = vunpack.c.l.b16 %v590
      %v673 = vunpack.c.h.b16 %v590
      %v674 = vunpack.c.l.b16 %v591
      %v675 = vunpack.c.h.b16 %v591
      %v676 = vunpack.c.l.b16 %v592
      %v677 = vunpack.c.h.b16 %v592
      %v678 = vunpack.c.l.b16 %v593
      %v679 = vunpack.c.h.b16 %v593
      %v680 = vunpack.c.l.b16 %v594
      %v681 = vunpack.c.h.b16 %v594
      %v682 = vunpack.c.l.b16 %v595
      %v683 = vunpack.c.h.b16 %v595
      %v684 = vunpack.c.l.b16 %v596
      %v685 = vunpack.c.h.b16 %v596
      %v686 = vunpack.c.l.b16 %v597
      %v687 = vunpack.c.h.b16 %v597
      %v688 = vunpack.c.l.b16 %v598
      %v689 = vunpack.c.h.b16 %v598
      %v690 = vunpack.c.l.b16 %v599
      %v691 = vunpack.c.h.b16 %v599
      %v692 = vunpack.c.l.b16 %v600
      %v693 = vunpack.c.h.b16 %v600
      %v694 = vunpack.c.l.b16 %v601
      %v695 = vunpack.c.h.b16 %v601
      %v696 = vunpack.c.l.b16 %v602
      %v697 = vunpack.c.h.b16 %v602
      %v698 = vunpack.c.l.b16 %v603
      %v699 = vunpack.c.h.b16 %v603
      %v700 = vpack.c.b16 %v640, %v636
      %v701 = vpack.c.b16 %v641, %v637
      %v702 = vpack.c.b16 %v642, %v638
      %v703 = vpack.c.b16 %v643, %v639
      %v704 = vpack.c.b16 %v648, %v644
      %v705 = vpack.c.b16 %v649, %v645
      %v706 = vpack.c.b16 %v650, %v646
      %v707 = vpack.c.b16 %v651, %v647
      %v708 = vpack.c.b16 %v656, %v652
      %v709 = vpack.c.b16 %v657, %v653
      %v710 = vpack.c.b16 %v658, %v654
      %v711 = vpack.c.b16 %v659, %v655
      %v712 = vpack.c.b16 %v664, %v660
      %v713 = vpack.c.b16 %v665, %v661
      %v714 = vpack.c.b16 %v666, %v662
      %v715 = vpack.c.b16 %v667, %v663
      %v716 = vpack.c.b16 %v672, %v668
      %v717 = vpack.c.b16 %v673, %v669
      %v718 = vpack.c.b16 %v674, %v670
      %v719 = vpack.c.b16 %v675, %v671
      %v720 = vpack.c.b16 %v680, %v676
      %v721 = vpack.c.b16 %v681, %v677
      %v722 = vpack.c.b16 %v682, %v678
      %v723 = vpack.c.b16 %v683, %v679
      %v724 = vpack.c.b16 %v688, %v684
      %v725 = vpack.c.b16 %v689, %v685
      %v726 = vpack.c.b16 %v690, %v686
      %v727 = vpack.c.b16 %v691, %v687
      %v728 = vpack.c.b16 %v696, %v692
      %v729 = vpack.c.b16 %v697, %v693
      %v730 = vpack.c.b16 %v698, %v694
      %v731 = vpack.c.b16 %v699, %v695
      %764 = vmatprep.subr.bf16.mxu0 %v701
      %765 = vmatpush1.bf16.msra.mxu0 %v700
      %766 = vmatprep.subr.bf16.mxu0 %v705
      %767 = vmatpush1.bf16.msra.mxu0 %v704
      %768 = vmatprep.subr.bf16.mxu0 %v709
      %769 = vmatpush1.bf16.msra.mxu0 %v708
      %770 = vmatprep.subr.bf16.mxu0 %v713
      %771 = vmatpush1.bf16.msra.mxu0 %v712
      %772 = vmatprep.subr.bf16.mxu0 %v717
      %773 = vmatpush1.bf16.msra.mxu0 %v716
      %774 = vmatprep.subr.bf16.mxu0 %v721
      %775 = vmatpush1.bf16.msra.mxu0 %v720
      %776 = vmatprep.subr.bf16.mxu0 %v725
      %777 = vmatpush1.bf16.msra.mxu0 %v724
      %778 = vmatprep.subr.bf16.mxu0 %v729
      %779 = vmatpush1.bf16.msra.mxu0 %v728
      %780 = vmatprep.subr.bf16.mxu0 0
      %781 = vmatpush1.bf16.msra.mxu0 0
      %782 = vmatprep.subr.bf16.mxu0 0
      %783 = vmatpush1.bf16.msra.mxu0 0
      %784 = vmatprep.subr.bf16.mxu0 0
      %785 = vmatpush1.bf16.msra.mxu0 0
      %786 = vmatprep.subr.bf16.mxu0 0
      %787 = vmatpush1.bf16.msra.mxu0 0
      %788 = vmatprep.subr.bf16.mxu0 0
      %789 = vmatpush1.bf16.msra.mxu0 0
      %790 = vmatprep.subr.bf16.mxu0 0
      %791 = vmatpush1.bf16.msra.mxu0 0
      %792 = vmatprep.subr.bf16.mxu0 0
      %793 = vmatpush1.bf16.msra.mxu0 0
      %794 = vmatprep.subr.bf16.mxu0 0
      %795 = vmatpush1.bf16.msra.mxu0 0
      %796 = vmatprep.mubr.bf16.mxu0 0
      %797 = vmatmul.mubr.bf16.gmra.mrb[0].mxu0 %v571
      %v798 = vpop.f32.mrb[0].mxu0
      %v799 = vadd.f32 0.0, %v798
      %v800 = vpop.f32.mrb[0].mxu0
      %v801 = vadd.f32 0.0, %v800
      %v802 = vpop.f32.mrb[0].mxu0
      %v803 = vpop.f32.mrb[0].mxu0
      %804 = vdwg.mxu0
      %805 = vmatprep.subr.bf16.mxu0 %v703
      %806 = vmatpush1.bf16.msra.mxu0 %v702
      %807 = vmatprep.subr.bf16.mxu0 %v707
      %808 = vmatpush1.bf16.msra.mxu0 %v706
      %809 = vmatprep.subr.bf16.mxu0 %v711
      %810 = vmatpush1.bf16.msra.mxu0 %v710
      %811 = vmatprep.subr.bf16.mxu0 %v715
      %812 = vmatpush1.bf16.msra.mxu0 %v714
      %813 = vmatprep.subr.bf16.mxu0 %v719
      %814 = vmatpush1.bf16.msra.mxu0 %v718
      %815 = vmatprep.subr.bf16.mxu0 %v723
      %816 = vmatpush1.bf16.msra.mxu0 %v722
      %817 = vmatprep.subr.bf16.mxu0 %v727
      %818 = vmatpush1.bf16.msra.mxu0 %v726
      %819 = vmatprep.subr.bf16.mxu0 %v731
      %820 = vmatpush1.bf16.msra.mxu0 %v730
      %821 = vmatprep.subr.bf16.mxu0 0
      %822 = vmatpush1.bf16.msra.mxu0 0
      %823 = vmatprep.subr.bf16.mxu0 0
      %824 = vmatpush1.bf16.msra.mxu0 0
      %825 = vmatprep.subr.bf16.mxu0 0
      %826 = vmatpush1.bf16.msra.mxu0 0
      %827 = vmatprep.subr.bf16.mxu0 0
      %828 = vmatpush1.bf16.msra.mxu0 0
      %829 = vmatprep.subr.bf16.mxu0 0
      %830 = vmatpush1.bf16.msra.mxu0 0
      %831 = vmatprep.subr.bf16.mxu0 0
      %832 = vmatpush1.bf16.msra.mxu0 0
      %833 = vmatprep.subr.bf16.mxu0 0
      %834 = vmatpush1.bf16.msra.mxu0 0
      %835 = vmatprep.subr.bf16.mxu0 0
      %836 = vmatpush1.bf16.msra.mxu0 0
      %837 = vmatprep.mubr.bf16.mxu0 0
      %838 = vmatmul.mubr.bf16.gmra.mrb[0].mxu0 %v571
      %v839 = vpop.f32.mrb[0].mxu0
      %v840 = vadd.f32 0.0, %v839
      %v841 = vpop.f32.mrb[0].mxu0
      %v842 = vadd.f32 0.0, %v841
      %v843 = vpop.f32.mrb[0].mxu0
      %v844 = vpop.f32.mrb[0].mxu0
      %845 = vdwg.mxu0
      %v846 = vadd.f32 %v567, %v799
      %v847 = vadd.f32 %v568, %v801
      %v848 = vadd.f32 %v569, %v840
      %v849 = vadd.f32 %v570, %v842
      %v850 = vxor.u32 %v846, 2147483648
      %v851 = vmul.f32 %v850, 1.442695
      %v852 = vpow.pop %v851
      %v853 = vadd.f32 %v852, 1.0
      %v854 = vrcp.pop %v853
      %v855 = vmul.f32 1.0, %v854
      %v856 = vxor.u32 %v847, 2147483648
      %v857 = vmul.f32 %v856, 1.442695
      %v858 = vpow.pop %v857
      %v859 = vadd.f32 %v858, 1.0
      %v860 = vrcp.pop %v859
      %v861 = vmul.f32 1.0, %v860
      %v862 = vtanh.pop %v848
      %v863 = vxor.u32 %v849, 2147483648
      %v864 = vmul.f32 %v863, 1.442695
      %v865 = vpow.pop %v864
      %v866 = vadd.f32 %v865, 1.0
      %v867 = vrcp.pop %v866
      %v868 = vmul.f32 1.0, %v867
      %v869 = vmul.f32 %v861, %v561
      %v870 = vmul.f32 %v855, %v862
      %v871 = vadd.f32 %v869, %v870
      %v872 = vtanh.pop %v871
      %v873 = vmul.f32 %v868, %v872
      %v874 = vsel %vm558, 1, 0
      %875 = vset.pattern.permute.xlu0 0
      %876 = vperm.xlu0 %875, %v874
      %v877 = vpop.permute.xlu0 %876
      %vm878 = vcmp.eq.s32.totalorder %v877, 1
      %v879 = vsel %vm878, %v873, %v560
      %880 = vst [vmem:[#allocation4] sm:$0xff] %v879
      %v881 = vsel %vm878, %v871, %v561
      %882 = vst [vmem:[#allocation5] sm:$0xff] %v881
      %v883 = vsel %vm878, %v873, 0.0
      %s884 = scalar_lea.vmem [#allocation3], %s559
      %885 = vst [vmem:[%s884] sm:$0xff] %v883
      %s886 = scalar_lea.vmem [#allocation4], 8
      %v887 = vld [vmem:[%s886] sm:$0xff]
      %s888 = scalar_lea.vmem [#allocation5], 8
      %v889 = vld [vmem:[%s888] sm:$0xff]
      %s890 = smul.addr %s564, 8
      %s891 = scalar_lea.vmem %s515, %s890 [#allocation2]
      %v892 = vld [vmem:[%s891] sm:$0xff]
      %v893 = vld [vmem:[%s891 + $0x8] sm:$0xff]
      %v894 = vld [vmem:[%s891 + $0x10] sm:$0xff]
      %v895 = vld [vmem:[%s891 + $0x18] sm:$0xff]
      %v896 = vpack.c.bf16 %v887, %v887
      %v897 = vpack.c.bf16 %v883, %v883
      %s898 = scalar_lea.vmem [#allocation6], 512
      %v899 = vld [vmem:[%s898] sm:$0xff]
      %v900 = vld [vmem:[%s898 + $0x8] sm:$0xff]
      %v901 = vld [vmem:[%s898 + $0x10] sm:$0xff]
      %v902 = vld [vmem:[%s898 + $0x18] sm:$0xff]
      %v903 = vld [vmem:[%s898 + $0x20] sm:$0xff]
      %v904 = vld [vmem:[%s898 + $0x28] sm:$0xff]
      %v905 = vld [vmem:[%s898 + $0x30] sm:$0xff]
      %v906 = vld [vmem:[%s898 + $0x38] sm:$0xff]
      %v907 = vld [vmem:[%s898 + $0x40] sm:$0xff]
      %v908 = vld [vmem:[%s898 + $0x48] sm:$0xff]
      %v909 = vld [vmem:[%s898 + $0x50] sm:$0xff]
      %v910 = vld [vmem:[%s898 + $0x58] sm:$0xff]
      %v911 = vld [vmem:[%s898 + $0x60] sm:$0xff]
      %v912 = vld [vmem:[%s898 + $0x68] sm:$0xff]
      %v913 = vld [vmem:[%s898 + $0x70] sm:$0xff]
      %v914 = vld [vmem:[%s898 + $0x78] sm:$0xff]
      %v915 = vld [vmem:[%s898 + $0x80] sm:$0xff]
      %v916 = vld [vmem:[%s898 + $0x88] sm:$0xff]
      %v917 = vld [vmem:[%s898 + $0x90] sm:$0xff]
      %v918 = vld [vmem:[%s898 + $0x98] sm:$0xff]
      %v919 = vld [vmem:[%s898 + $0xa0] sm:$0xff]
      %v920 = vld [vmem:[%s898 + $0xa8] sm:$0xff]
      %v921 = vld [vmem:[%s898 + $0xb0] sm:$0xff]
      %v922 = vld [vmem:[%s898 + $0xb8] sm:$0xff]
      %v923 = vld [vmem:[%s898 + $0xc0] sm:$0xff]
      %v924 = vld [vmem:[%s898 + $0xc8] sm:$0xff]
      %v925 = vld [vmem:[%s898 + $0xd0] sm:$0xff]
      %v926 = vld [vmem:[%s898 + $0xd8] sm:$0xff]
      %v927 = vld [vmem:[%s898 + $0xe0] sm:$0xff]
      %v928 = vld [vmem:[%s898 + $0xe8] sm:$0xff]
      %v929 = vld [vmem:[%s898 + $0xf0] sm:$0xff]
      %v930 = vld [vmem:[%s898 + $0xf8] sm:$0xff]
      %v931 = vld [vmem:[%s898 + $0x100] sm:$0xff]
      %v932 = vld [vmem:[%s898 + $0x108] sm:$0xff]
      %v933 = vld [vmem:[%s898 + $0x110] sm:$0xff]
      %v934 = vld [vmem:[%s898 + $0x118] sm:$0xff]
      %v935 = vld [vmem:[%s898 + $0x120] sm:$0xff]
      %v936 = vld [vmem:[%s898 + $0x128] sm:$0xff]
      %v937 = vld [vmem:[%s898 + $0x130] sm:$0xff]
      %v938 = vld [vmem:[%s898 + $0x138] sm:$0xff]
      %v939 = vld [vmem:[%s898 + $0x140] sm:$0xff]
      %v940 = vld [vmem:[%s898 + $0x148] sm:$0xff]
      %v941 = vld [vmem:[%s898 + $0x150] sm:$0xff]
      %v942 = vld [vmem:[%s898 + $0x158] sm:$0xff]
      %v943 = vld [vmem:[%s898 + $0x160] sm:$0xff]
      %v944 = vld [vmem:[%s898 + $0x168] sm:$0xff]
      %v945 = vld [vmem:[%s898 + $0x170] sm:$0xff]
      %v946 = vld [vmem:[%s898 + $0x178] sm:$0xff]
      %v947 = vld [vmem:[%s898 + $0x180] sm:$0xff]
      %v948 = vld [vmem:[%s898 + $0x188] sm:$0xff]
      %v949 = vld [vmem:[%s898 + $0x190] sm:$0xff]
      %v950 = vld [vmem:[%s898 + $0x198] sm:$0xff]
      %v951 = vld [vmem:[%s898 + $0x1a0] sm:$0xff]
      %v952 = vld [vmem:[%s898 + $0x1a8] sm:$0xff]
      %v953 = vld [vmem:[%s898 + $0x1b0] sm:$0xff]
      %v954 = vld [vmem:[%s898 + $0x1b8] sm:$0xff]
      %v955 = vld [vmem:[%s898 + $0x1c0] sm:$0xff]
      %v956 = vld [vmem:[%s898 + $0x1c8] sm:$0xff]
      %v957 = vld [vmem:[%s898 + $0x1d0] sm:$0xff]
      %v958 = vld [vmem:[%s898 + $0x1d8] sm:$0xff]
      %v959 = vld [vmem:[%s898 + $0x1e0] sm:$0xff]
      %v960 = vld [vmem:[%s898 + $0x1e8] sm:$0xff]
      %v961 = vld [vmem:[%s898 + $0x1f0] sm:$0xff]
      %v962 = vld [vmem:[%s898 + $0x1f8] sm:$0xff]
      %v1027 = vunpack.c.l.b16 %v899
      %v1028 = vunpack.c.h.b16 %v899
      %v1029 = vunpack.c.l.b16 %v900
      %v1030 = vunpack.c.h.b16 %v900
      %v1031 = vunpack.c.l.b16 %v901
      %v1032 = vunpack.c.h.b16 %v901
      %v1033 = vunpack.c.l.b16 %v902
      %v1034 = vunpack.c.h.b16 %v902
      %v1035 = vunpack.c.l.b16 %v903
      %v1036 = vunpack.c.h.b16 %v903
      %v1037 = vunpack.c.l.b16 %v904
      %v1038 = vunpack.c.h.b16 %v904
      %v1039 = vunpack.c.l.b16 %v905
      %v1040 = vunpack.c.h.b16 %v905
      %v1041 = vunpack.c.l.b16 %v906
      %v1042 = vunpack.c.h.b16 %v906
      %v1043 = vunpack.c.l.b16 %v907
      %v1044 = vunpack.c.h.b16 %v907
      %v1045 = vunpack.c.l.b16 %v908
      %v1046 = vunpack.c.h.b16 %v908
      %v1047 = vunpack.c.l.b16 %v909
      %v1048 = vunpack.c.h.b16 %v909
      %v1049 = vunpack.c.l.b16 %v910
      %v1050 = vunpack.c.h.b16 %v910
      %v1051 = vunpack.c.l.b16 %v911
      %v1052 = vunpack.c.h.b16 %v911
      %v1053 = vunpack.c.l.b16 %v912
      %v1054 = vunpack.c.h.b16 %v912
      %v1055 = vunpack.c.l.b16 %v913
      %v1056 = vunpack.c.h.b16 %v913
      %v1057 = vunpack.c.l.b16 %v914
      %v1058 = vunpack.c.h.b16 %v914
      %v1059 = vunpack.c.l.b16 %v915
      %v1060 = vunpack.c.h.b16 %v915
      %v1061 = vunpack.c.l.b16 %v916
      %v1062 = vunpack.c.h.b16 %v916
      %v1063 = vunpack.c.l.b16 %v917
      %v1064 = vunpack.c.h.b16 %v917
      %v1065 = vunpack.c.l.b16 %v918
      %v1066 = vunpack.c.h.b16 %v918
      %v1067 = vunpack.c.l.b16 %v919
      %v1068 = vunpack.c.h.b16 %v919
      %v1069 = vunpack.c.l.b16 %v920
      %v1070 = vunpack.c.h.b16 %v920
      %v1071 = vunpack.c.l.b16 %v921
      %v1072 = vunpack.c.h.b16 %v921
      %v1073 = vunpack.c.l.b16 %v922
      %v1074 = vunpack.c.h.b16 %v922
      %v1075 = vunpack.c.l.b16 %v923
      %v1076 = vunpack.c.h.b16 %v923
      %v1077 = vunpack.c.l.b16 %v924
      %v1078 = vunpack.c.h.b16 %v924
      %v1079 = vunpack.c.l.b16 %v925
      %v1080 = vunpack.c.h.b16 %v925
      %v1081 = vunpack.c.l.b16 %v926
      %v1082 = vunpack.c.h.b16 %v926
      %v1083 = vunpack.c.l.b16 %v927
      %v1084 = vunpack.c.h.b16 %v927
      %v1085 = vunpack.c.l.b16 %v928
      %v1086 = vunpack.c.h.b16 %v928
      %v1087 = vunpack.c.l.b16 %v929
      %v1088 = vunpack.c.h.b16 %v929
      %v1089 = vunpack.c.l.b16 %v930
      %v1090 = vunpack.c.h.b16 %v930
      %v1091 = vunpack.c.l.b16 %v931
      %v1092 = vunpack.c.h.b16 %v931
      %v1093 = vunpack.c.l.b16 %v932
      %v1094 = vunpack.c.h.b16 %v932
      %v1095 = vunpack.c.l.b16 %v933
      %v1096 = vunpack.c.h.b16 %v933
      %v1097 = vunpack.c.l.b16 %v934
      %v1098 = vunpack.c.h.b16 %v934
      %v1099 = vunpack.c.l.b16 %v935
      %v1100 = vunpack.c.h.b16 %v935
      %v1101 = vunpack.c.l.b16 %v936
      %v1102 = vunpack.c.h.b16 %v936
      %v1103 = vunpack.c.l.b16 %v937
      %v1104 = vunpack.c.h.b16 %v937
      %v1105 = vunpack.c.l.b16 %v938
      %v1106 = vunpack.c.h.b16 %v938
      %v1107 = vunpack.c.l.b16 %v939
      %v1108 = vunpack.c.h.b16 %v939
      %v1109 = vunpack.c.l.b16 %v940
      %v1110 = vunpack.c.h.b16 %v940
      %v1111 = vunpack.c.l.b16 %v941
      %v1112 = vunpack.c.h.b16 %v941
      %v1113 = vunpack.c.l.b16 %v942
      %v1114 = vunpack.c.h.b16 %v942
      %v1115 = vunpack.c.l.b16 %v943
      %v1116 = vunpack.c.h.b16 %v943
      %v1117 = vunpack.c.l.b16 %v944
      %v1118 = vunpack.c.h.b16 %v944
      %v1119 = vunpack.c.l.b16 %v945
      %v1120 = vunpack.c.h.b16 %v945
      %v1121 = vunpack.c.l.b16 %v946
      %v1122 = vunpack.c.h.b16 %v946
      %v1123 = vunpack.c.l.b16 %v947
      %v1124 = vunpack.c.h.b16 %v947
      %v1125 = vunpack.c.l.b16 %v948
      %v1126 = vunpack.c.h.b16 %v948
      %v1127 = vunpack.c.l.b16 %v949
      %v1128 = vunpack.c.h.b16 %v949
      %v1129 = vunpack.c.l.b16 %v950
      %v1130 = vunpack.c.h.b16 %v950
      %v1131 = vunpack.c.l.b16 %v951
      %v1132 = vunpack.c.h.b16 %v951
      %v1133 = vunpack.c.l.b16 %v952
      %v1134 = vunpack.c.h.b16 %v952
      %v1135 = vunpack.c.l.b16 %v953
      %v1136 = vunpack.c.h.b16 %v953
      %v1137 = vunpack.c.l.b16 %v954
      %v1138 = vunpack.c.h.b16 %v954
      %v1139 = vunpack.c.l.b16 %v955
      %v1140 = vunpack.c.h.b16 %v955
      %v1141 = vunpack.c.l.b16 %v956
      %v1142 = vunpack.c.h.b16 %v956
      %v1143 = vunpack.c.l.b16 %v957
      %v1144 = vunpack.c.h.b16 %v957
      %v1145 = vunpack.c.l.b16 %v958
      %v1146 = vunpack.c.h.b16 %v958
      %v1147 = vunpack.c.l.b16 %v959
      %v1148 = vunpack.c.h.b16 %v959
      %v1149 = vunpack.c.l.b16 %v960
      %v1150 = vunpack.c.h.b16 %v960
      %v1151 = vunpack.c.l.b16 %v961
      %v1152 = vunpack.c.h.b16 %v961
      %v1153 = vunpack.c.l.b16 %v962
      %v1154 = vunpack.c.h.b16 %v962
      %v1155 = vpack.c.b16 %v1031, %v1027
      %v1156 = vpack.c.b16 %v1032, %v1028
      %v1157 = vpack.c.b16 %v1033, %v1029
      %v1158 = vpack.c.b16 %v1034, %v1030
      %v1159 = vpack.c.b16 %v1039, %v1035
      %v1160 = vpack.c.b16 %v1040, %v1036
      %v1161 = vpack.c.b16 %v1041, %v1037
      %v1162 = vpack.c.b16 %v1042, %v1038
      %v1163 = vpack.c.b16 %v1047, %v1043
      %v1164 = vpack.c.b16 %v1048, %v1044
      %v1165 = vpack.c.b16 %v1049, %v1045
      %v1166 = vpack.c.b16 %v1050, %v1046
      %v1167 = vpack.c.b16 %v1055, %v1051
      %v1168 = vpack.c.b16 %v1056, %v1052
      %v1169 = vpack.c.b16 %v1057, %v1053
      %v1170 = vpack.c.b16 %v1058, %v1054
      %v1171 = vpack.c.b16 %v1063, %v1059
      %v1172 = vpack.c.b16 %v1064, %v1060
      %v1173 = vpack.c.b16 %v1065, %v1061
      %v1174 = vpack.c.b16 %v1066, %v1062
      %v1175 = vpack.c.b16 %v1071, %v1067
      %v1176 = vpack.c.b16 %v1072, %v1068
      %v1177 = vpack.c.b16 %v1073, %v1069
      %v1178 = vpack.c.b16 %v1074, %v1070
      %v1179 = vpack.c.b16 %v1079, %v1075
      %v1180 = vpack.c.b16 %v1080, %v1076
      %v1181 = vpack.c.b16 %v1081, %v1077
      %v1182 = vpack.c.b16 %v1082, %v1078
      %v1183 = vpack.c.b16 %v1087, %v1083
      %v1184 = vpack.c.b16 %v1088, %v1084
      %v1185 = vpack.c.b16 %v1089, %v1085
      %v1186 = vpack.c.b16 %v1090, %v1086
      %v1187 = vpack.c.b16 %v1095, %v1091
      %v1188 = vpack.c.b16 %v1096, %v1092
      %v1189 = vpack.c.b16 %v1097, %v1093
      %v1190 = vpack.c.b16 %v1098, %v1094
      %v1191 = vpack.c.b16 %v1103, %v1099
      %v1192 = vpack.c.b16 %v1104, %v1100
      %v1193 = vpack.c.b16 %v1105, %v1101
      %v1194 = vpack.c.b16 %v1106, %v1102
      %v1195 = vpack.c.b16 %v1111, %v1107
      %v1196 = vpack.c.b16 %v1112, %v1108
      %v1197 = vpack.c.b16 %v1113, %v1109
      %v1198 = vpack.c.b16 %v1114, %v1110
      %v1199 = vpack.c.b16 %v1119, %v1115
      %v1200 = vpack.c.b16 %v1120, %v1116
      %v1201 = vpack.c.b16 %v1121, %v1117
      %v1202 = vpack.c.b16 %v1122, %v1118
      %v1203 = vpack.c.b16 %v1127, %v1123
      %v1204 = vpack.c.b16 %v1128, %v1124
      %v1205 = vpack.c.b16 %v1129, %v1125
      %v1206 = vpack.c.b16 %v1130, %v1126
      %v1207 = vpack.c.b16 %v1135, %v1131
      %v1208 = vpack.c.b16 %v1136, %v1132
      %v1209 = vpack.c.b16 %v1137, %v1133
      %v1210 = vpack.c.b16 %v1138, %v1134
      %v1211 = vpack.c.b16 %v1143, %v1139
      %v1212 = vpack.c.b16 %v1144, %v1140
      %v1213 = vpack.c.b16 %v1145, %v1141
      %v1214 = vpack.c.b16 %v1146, %v1142
      %v1215 = vpack.c.b16 %v1151, %v1147
      %v1216 = vpack.c.b16 %v1152, %v1148
      %v1217 = vpack.c.b16 %v1153, %v1149
      %v1218 = vpack.c.b16 %v1154, %v1150
      %1283 = vmatprep.subr.bf16.mxu0 %v1156
      %1284 = vmatpush1.bf16.msra.mxu0 %v1155
      %1285 = vmatprep.subr.bf16.mxu0 %v1160
      %1286 = vmatpush1.bf16.msra.mxu0 %v1159
      %1287 = vmatprep.subr.bf16.mxu0 %v1164
      %1288 = vmatpush1.bf16.msra.mxu0 %v1163
      %1289 = vmatprep.subr.bf16.mxu0 %v1168
      %1290 = vmatpush1.bf16.msra.mxu0 %v1167
      %1291 = vmatprep.subr.bf16.mxu0 %v1172
      %1292 = vmatpush1.bf16.msra.mxu0 %v1171
      %1293 = vmatprep.subr.bf16.mxu0 %v1176
      %1294 = vmatpush1.bf16.msra.mxu0 %v1175
      %1295 = vmatprep.subr.bf16.mxu0 %v1180
      %1296 = vmatpush1.bf16.msra.mxu0 %v1179
      %1297 = vmatprep.subr.bf16.mxu0 %v1184
      %1298 = vmatpush1.bf16.msra.mxu0 %v1183
      %1299 = vmatprep.subr.bf16.mxu0 %v1188
      %1300 = vmatpush1.bf16.msra.mxu0 %v1187
      %1301 = vmatprep.subr.bf16.mxu0 %v1192
      %1302 = vmatpush1.bf16.msra.mxu0 %v1191
      %1303 = vmatprep.subr.bf16.mxu0 %v1196
      %1304 = vmatpush1.bf16.msra.mxu0 %v1195
      %1305 = vmatprep.subr.bf16.mxu0 %v1200
      %1306 = vmatpush1.bf16.msra.mxu0 %v1199
      %1307 = vmatprep.subr.bf16.mxu0 %v1204
      %1308 = vmatpush1.bf16.msra.mxu0 %v1203
      %1309 = vmatprep.subr.bf16.mxu0 %v1208
      %1310 = vmatpush1.bf16.msra.mxu0 %v1207
      %1311 = vmatprep.subr.bf16.mxu0 %v1212
      %1312 = vmatpush1.bf16.msra.mxu0 %v1211
      %1313 = vmatprep.subr.bf16.mxu0 %v1216
      %1314 = vmatpush1.bf16.msra.mxu0 %v1215
      %1315 = vmatprep.mubr.bf16.mxu0 %v897
      %1316 = vmatmul.mubr.bf16.gmra.mrb[0].mxu0 %v896
      %v1317 = vpop.f32.mrb[0].mxu0
      %v1318 = vadd.f32 0.0, %v1317
      %v1319 = vpop.f32.mrb[0].mxu0
      %v1320 = vadd.f32 0.0, %v1319
      %v1321 = vpop.f32.mrb[0].mxu0
      %v1322 = vpop.f32.mrb[0].mxu0
      %1323 = vdwg.mxu0
      %1324 = vmatprep.subr.bf16.mxu0 %v1158
      %1325 = vmatpush1.bf16.msra.mxu0 %v1157
      %1326 = vmatprep.subr.bf16.mxu0 %v1162
      %1327 = vmatpush1.bf16.msra.mxu0 %v1161
      %1328 = vmatprep.subr.bf16.mxu0 %v1166
      %1329 = vmatpush1.bf16.msra.mxu0 %v1165
      %1330 = vmatprep.subr.bf16.mxu0 %v1170
      %1331 = vmatpush1.bf16.msra.mxu0 %v1169
      %1332 = vmatprep.subr.bf16.mxu0 %v1174
      %1333 = vmatpush1.bf16.msra.mxu0 %v1173
      %1334 = vmatprep.subr.bf16.mxu0 %v1178
      %1335 = vmatpush1.bf16.msra.mxu0 %v1177
      %1336 = vmatprep.subr.bf16.mxu0 %v1182
      %1337 = vmatpush1.bf16.msra.mxu0 %v1181
      %1338 = vmatprep.subr.bf16.mxu0 %v1186
      %1339 = vmatpush1.bf16.msra.mxu0 %v1185
      %1340 = vmatprep.subr.bf16.mxu0 %v1190
      %1341 = vmatpush1.bf16.msra.mxu0 %v1189
      %1342 = vmatprep.subr.bf16.mxu0 %v1194
      %1343 = vmatpush1.bf16.msra.mxu0 %v1193
      %1344 = vmatprep.subr.bf16.mxu0 %v1198
      %1345 = vmatpush1.bf16.msra.mxu0 %v1197
      %1346 = vmatprep.subr.bf16.mxu0 %v1202
      %1347 = vmatpush1.bf16.msra.mxu0 %v1201
      %1348 = vmatprep.subr.bf16.mxu0 %v1206
      %1349 = vmatpush1.bf16.msra.mxu0 %v1205
      %1350 = vmatprep.subr.bf16.mxu0 %v1210
      %1351 = vmatpush1.bf16.msra.mxu0 %v1209
      %1352 = vmatprep.subr.bf16.mxu0 %v1214
      %1353 = vmatpush1.bf16.msra.mxu0 %v1213
      %1354 = vmatprep.subr.bf16.mxu0 %v1218
      %1355 = vmatpush1.bf16.msra.mxu0 %v1217
      %1356 = vmatprep.mubr.bf16.mxu0 %v897
      %1357 = vmatmul.mubr.bf16.gmra.mrb[0].mxu0 %v896
      %v1358 = vpop.f32.mrb[0].mxu0
      %v1359 = vadd.f32 0.0, %v1358
      %v1360 = vpop.f32.mrb[0].mxu0
      %v1361 = vadd.f32 0.0, %v1360
      %v1362 = vpop.f32.mrb[0].mxu0
      %v1363 = vpop.f32.mrb[0].mxu0
      %1364 = vdwg.mxu0
      %v1365 = vadd.f32 %v892, %v1318
      %v1366 = vadd.f32 %v893, %v1320
      %v1367 = vadd.f32 %v894, %v1359
      %v1368 = vadd.f32 %v895, %v1361
      %v1369 = vxor.u32 %v1365, 2147483648
      %v1370 = vmul.f32 %v1369, 1.442695
      %v1371 = vpow.pop %v1370
      %v1372 = vadd.f32 %v1371, 1.0
      %v1373 = vrcp.pop %v1372
      %v1374 = vmul.f32 1.0, %v1373
      %v1375 = vxor.u32 %v1366, 2147483648
      %v1376 = vmul.f32 %v1375, 1.442695
      %v1377 = vpow.pop %v1376
      %v1378 = vadd.f32 %v1377, 1.0
      %v1379 = vrcp.pop %v1378
      %v1380 = vmul.f32 1.0, %v1379
      %v1381 = vtanh.pop %v1367
      %v1382 = vxor.u32 %v1368, 2147483648
      %v1383 = vmul.f32 %v1382, 1.442695
      %v1384 = vpow.pop %v1383
      %v1385 = vadd.f32 %v1384, 1.0
      %v1386 = vrcp.pop %v1385
      %v1387 = vmul.f32 1.0, %v1386
      %v1388 = vmul.f32 %v1380, %v889
      %v1389 = vmul.f32 %v1374, %v1381
      %v1390 = vadd.f32 %v1388, %v1389
      %v1391 = vtanh.pop %v1390
      %v1392 = vmul.f32 %v1387, %v1391
      %v1393 = vsel %vm878, %v1392, %v887
      %1394 = vst [vmem:[%s886] sm:$0xff] %v1393
      %v1395 = vsel %vm878, %v1390, %v889
      %1396 = vst [vmem:[%s888] sm:$0xff] %v1395
      %v1397 = vsel %vm878, %v1392, 0.0
      %s1398 = scalar_lea.vmem [#allocation3], 64
      %s1399 = scalar_lea.vmem %s1398, %s559 [#allocation3]
      %1400 = vst [vmem:[%s1399] sm:$0xff] %v1397
    $region42: #{tpu_custom_call.1} parent=1 // loop_footer
      %s555 = sadd.s32 1, %s551
    $region43: #{tpu_custom_call.1} parent=1 // loop_footer_branch
      %550 = sbr.rel target = $region39
    $region44: #{tpu_custom_call.1} parent=1 // loop_exit
      _
    %v1401 = vld [vmem:[#allocation3] sm:$0xff]
    %v1402 = vld [vmem:[#allocation3 + $0x8] sm:$0xff]
    %v1403 = vld [vmem:[#allocation3 + $0x10] sm:$0xff]
    %v1404 = vld [vmem:[#allocation3 + $0x18] sm:$0xff]
    %v1405 = vld [vmem:[#allocation3 + $0x20] sm:$0xff]
    %v1406 = vld [vmem:[#allocation3 + $0x28] sm:$0xff]
    %v1407 = vld [vmem:[#allocation3 + $0x30] sm:$0xff]
    %v1408 = vld [vmem:[#allocation3 + $0x38] sm:$0xff]
    %v1409 = vpack.c.bf16 %v1402, %v1401
    %v1410 = vpack.c.bf16 %v1404, %v1403
    %v1411 = vpack.c.bf16 %v1406, %v1405
    %v1412 = vpack.c.bf16 %v1408, %v1407
    %v1413 = vld [vmem:[%s5] sm:$0xf]
    %v1414 = vld [vmem:[%s5 + $0x4] sm:$0xf]
    %v1415 = vld [vmem:[%s5 + $0x8] sm:$0xf]
    %v1416 = vld [vmem:[%s5 + $0xc] sm:$0xf]
    %v1417 = vld [vmem:[%s5 + $0x10] sm:$0xf]
    %v1418 = vld [vmem:[%s5 + $0x14] sm:$0xf]
    %v1419 = vld [vmem:[%s5 + $0x18] sm:$0xf]
    %v1420 = vld [vmem:[%s5 + $0x1c] sm:$0xf]
    %v1421 = vld [vmem:[%s5 + $0x20] sm:$0xf]
    %v1422 = vld [vmem:[%s5 + $0x24] sm:$0xf]
    %v1423 = vld [vmem:[%s5 + $0x28] sm:$0xf]
    %v1424 = vld [vmem:[%s5 + $0x2c] sm:$0xf]
    %v1425 = vld [vmem:[%s5 + $0x30] sm:$0xf]
    %v1426 = vld [vmem:[%s5 + $0x34] sm:$0xf]
    %v1427 = vld [vmem:[%s5 + $0x38] sm:$0xf]
    %v1428 = vld [vmem:[%s5 + $0x3c] sm:$0xf]
    %s1429 = scalar_lea.vmem [#allocation3], 64
    %v1430 = vld [vmem:[%s1429] sm:$0xff]
    %v1431 = vld [vmem:[%s1429 + $0x8] sm:$0xff]
    %v1432 = vld [vmem:[%s1429 + $0x10] sm:$0xff]
    %v1433 = vld [vmem:[%s1429 + $0x18] sm:$0xff]
    %v1434 = vld [vmem:[%s1429 + $0x20] sm:$0xff]
    %v1435 = vld [vmem:[%s1429 + $0x28] sm:$0xff]
    %v1436 = vld [vmem:[%s1429 + $0x30] sm:$0xff]
    %v1437 = vld [vmem:[%s1429 + $0x38] sm:$0xff]
    %v1438 = vpack.c.bf16 %v1431, %v1430
    %v1439 = vpack.c.bf16 %v1433, %v1432
    %v1440 = vpack.c.bf16 %v1435, %v1434
    %v1441 = vpack.c.bf16 %v1437, %v1436
    %s1442 = scalar_lea.vmem %s5, 64
    %v1443 = vld [vmem:[%s1442] sm:$0xf]
    %v1444 = vld [vmem:[%s1442 + $0x4] sm:$0xf]
    %v1445 = vld [vmem:[%s1442 + $0x8] sm:$0xf]
    %v1446 = vld [vmem:[%s1442 + $0xc] sm:$0xf]
    %v1447 = vld [vmem:[%s1442 + $0x10] sm:$0xf]
    %v1448 = vld [vmem:[%s1442 + $0x14] sm:$0xf]
    %v1449 = vld [vmem:[%s1442 + $0x18] sm:$0xf]
    %v1450 = vld [vmem:[%s1442 + $0x1c] sm:$0xf]
    %v1451 = vld [vmem:[%s1442 + $0x20] sm:$0xf]
    %v1452 = vld [vmem:[%s1442 + $0x24] sm:$0xf]
    %v1453 = vld [vmem:[%s1442 + $0x28] sm:$0xf]
    %v1454 = vld [vmem:[%s1442 + $0x2c] sm:$0xf]
    %v1455 = vld [vmem:[%s1442 + $0x30] sm:$0xf]
    %v1456 = vld [vmem:[%s1442 + $0x34] sm:$0xf]
    %v1457 = vld [vmem:[%s1442 + $0x38] sm:$0xf]
    %v1458 = vld [vmem:[%s1442 + $0x3c] sm:$0xf]
    %v1475 = vunpack.c.l.b16 %v1443
    %v1476 = vunpack.c.l.b16 %v1444
    %v1477 = vunpack.c.l.b16 %v1445
    %v1478 = vunpack.c.l.b16 %v1446
    %v1479 = vunpack.c.l.b16 %v1447
    %v1480 = vunpack.c.l.b16 %v1448
    %v1481 = vunpack.c.l.b16 %v1449
    %v1482 = vunpack.c.l.b16 %v1450
    %v1483 = vunpack.c.l.b16 %v1451
    %v1484 = vunpack.c.l.b16 %v1452
    %v1485 = vunpack.c.l.b16 %v1453
    %v1486 = vunpack.c.l.b16 %v1454
    %v1487 = vunpack.c.l.b16 %v1455
    %v1488 = vunpack.c.l.b16 %v1456
    %v1489 = vunpack.c.l.b16 %v1457
    %v1490 = vunpack.c.l.b16 %v1458
    %v1491 = vpack.c.b16 %v1476, %v1475
    %v1492 = vpack.c.b16 %v1478, %v1477
    %v1493 = vpack.c.b16 %v1480, %v1479
    %v1494 = vpack.c.b16 %v1482, %v1481
    %v1495 = vpack.c.b16 %v1484, %v1483
    %v1496 = vpack.c.b16 %v1486, %v1485
    %v1497 = vpack.c.b16 %v1488, %v1487
    %v1498 = vpack.c.b16 %v1490, %v1489
    %1507 = vmatprep.subr.bf16.mxu0 0
    %1508 = vmatpush1.bf16.msra.mxu0 %v1491
    %1509 = vmatprep.subr.bf16.mxu0 0
    %1510 = vmatpush1.bf16.msra.mxu0 %v1492
    %1511 = vmatprep.subr.bf16.mxu0 0
    %1512 = vmatpush1.bf16.msra.mxu0 %v1493
    %1513 = vmatprep.subr.bf16.mxu0 0
    %1514 = vmatpush1.bf16.msra.mxu0 %v1494
    %1515 = vmatprep.subr.bf16.mxu0 0
    %1516 = vmatpush1.bf16.msra.mxu0 %v1495
    %1517 = vmatprep.subr.bf16.mxu0 0
    %1518 = vmatpush1.bf16.msra.mxu0 %v1496
    %1519 = vmatprep.subr.bf16.mxu0 0
    %1520 = vmatpush1.bf16.msra.mxu0 %v1497
    %1521 = vmatprep.subr.bf16.mxu0 0
    %1522 = vmatpush1.bf16.msra.mxu0 %v1498
    %1523 = vmatprep.subr.bf16.mxu0 0
    %1524 = vmatpush1.bf16.msra.mxu0 0
    %1525 = vmatprep.subr.bf16.mxu0 0
    %1526 = vmatpush1.bf16.msra.mxu0 0
    %1527 = vmatprep.subr.bf16.mxu0 0
    %1528 = vmatpush1.bf16.msra.mxu0 0
    %1529 = vmatprep.subr.bf16.mxu0 0
    %1530 = vmatpush1.bf16.msra.mxu0 0
    %1531 = vmatprep.subr.bf16.mxu0 0
    %1532 = vmatpush1.bf16.msra.mxu0 0
    %1533 = vmatprep.subr.bf16.mxu0 0
    %1534 = vmatpush1.bf16.msra.mxu0 0
    %1535 = vmatprep.subr.bf16.mxu0 0
    %1536 = vmatpush1.bf16.msra.mxu0 0
    %1537 = vmatprep.subr.bf16.mxu0 0
    %1538 = vmatpush1.bf16.msra.mxu0 0
    %1539 = vmatprep.mubr.bf16.mxu0 0
    %1540 = vmatmul.mubr.bf16.gmra.mrb[0].mxu0 %v1438
    %v1541 = vpop.f32.mrb[0].mxu0
    %v1542 = vadd.f32 0.0, %v1541
    %v1543 = vpop.f32.mrb[0].mxu0
    %v1544 = vpop.f32.mrb[0].mxu0
    %v1545 = vadd.f32 0.0, %v1544
    %v1546 = vpop.f32.mrb[0].mxu0
    %1547 = vmatprep.mubr.bf16.mxu0 0
    %1548 = vmatmul.mubr.bf16.gmra.mrb[0].mxu0 %v1439
    %v1549 = vpop.f32.mrb[0].mxu0
    %v1550 = vadd.f32 0.0, %v1549
    %v1551 = vpop.f32.mrb[0].mxu0
    %v1552 = vpop.f32.mrb[0].mxu0
    %v1553 = vadd.f32 0.0, %v1552
    %v1554 = vpop.f32.mrb[0].mxu0
    %1555 = vmatprep.mubr.bf16.mxu0 0
    %1556 = vmatmul.mubr.bf16.gmra.mrb[0].mxu0 %v1440
    %v1557 = vpop.f32.mrb[0].mxu0
    %v1558 = vadd.f32 0.0, %v1557
    %v1559 = vpop.f32.mrb[0].mxu0
    %v1560 = vpop.f32.mrb[0].mxu0
    %v1561 = vadd.f32 0.0, %v1560
    %v1562 = vpop.f32.mrb[0].mxu0
    %1563 = vmatprep.mubr.bf16.mxu0 0
    %1564 = vmatmul.mubr.bf16.gmra.mrb[0].mxu0 %v1441
    %v1565 = vpop.f32.mrb[0].mxu0
    %v1566 = vadd.f32 0.0, %v1565
    %v1567 = vpop.f32.mrb[0].mxu0
    %v1568 = vpop.f32.mrb[0].mxu0
    %v1569 = vadd.f32 0.0, %v1568
    %v1570 = vpop.f32.mrb[0].mxu0
    %1571 = vdwg.mxu0
    %v1588 = vunpack.c.l.b16 %v1413
    %v1589 = vunpack.c.l.b16 %v1414
    %v1590 = vunpack.c.l.b16 %v1415
    %v1591 = vunpack.c.l.b16 %v1416
    %v1592 = vunpack.c.l.b16 %v1417
    %v1593 = vunpack.c.l.b16 %v1418
    %v1594 = vunpack.c.l.b16 %v1419
    %v1595 = vunpack.c.l.b16 %v1420
    %v1596 = vunpack.c.l.b16 %v1421
    %v1597 = vunpack.c.l.b16 %v1422
    %v1598 = vunpack.c.l.b16 %v1423
    %v1599 = vunpack.c.l.b16 %v1424
    %v1600 = vunpack.c.l.b16 %v1425
    %v1601 = vunpack.c.l.b16 %v1426
    %v1602 = vunpack.c.l.b16 %v1427
    %v1603 = vunpack.c.l.b16 %v1428
    %v1604 = vpack.c.b16 %v1589, %v1588
    %v1605 = vpack.c.b16 %v1591, %v1590
    %v1606 = vpack.c.b16 %v1593, %v1592
    %v1607 = vpack.c.b16 %v1595, %v1594
    %v1608 = vpack.c.b16 %v1597, %v1596
    %v1609 = vpack.c.b16 %v1599, %v1598
    %v1610 = vpack.c.b16 %v1601, %v1600
    %v1611 = vpack.c.b16 %v1603, %v1602
    %1620 = vmatprep.subr.bf16.mxu0 0
    %1621 = vmatpush1.bf16.msra.mxu0 %v1604
    %1622 = vmatprep.subr.bf16.mxu0 0
    %1623 = vmatpush1.bf16.msra.mxu0 %v1605
    %1624 = vmatprep.subr.bf16.mxu0 0
    %1625 = vmatpush1.bf16.msra.mxu0 %v1606
    %1626 = vmatprep.subr.bf16.mxu0 0
    %1627 = vmatpush1.bf16.msra.mxu0 %v1607
    %1628 = vmatprep.subr.bf16.mxu0 0
    %1629 = vmatpush1.bf16.msra.mxu0 %v1608
    %1630 = vmatprep.subr.bf16.mxu0 0
    %1631 = vmatpush1.bf16.msra.mxu0 %v1609
    %1632 = vmatprep.subr.bf16.mxu0 0
    %1633 = vmatpush1.bf16.msra.mxu0 %v1610
    %1634 = vmatprep.subr.bf16.mxu0 0
    %1635 = vmatpush1.bf16.msra.mxu0 %v1611
    %1636 = vmatprep.subr.bf16.mxu0 0
    %1637 = vmatpush1.bf16.msra.mxu0 0
    %1638 = vmatprep.subr.bf16.mxu0 0
    %1639 = vmatpush1.bf16.msra.mxu0 0
    %1640 = vmatprep.subr.bf16.mxu0 0
    %1641 = vmatpush1.bf16.msra.mxu0 0
    %1642 = vmatprep.subr.bf16.mxu0 0
    %1643 = vmatpush1.bf16.msra.mxu0 0
    %1644 = vmatprep.subr.bf16.mxu0 0
    %1645 = vmatpush1.bf16.msra.mxu0 0
    %1646 = vmatprep.subr.bf16.mxu0 0
    %1647 = vmatpush1.bf16.msra.mxu0 0
    %1648 = vmatprep.subr.bf16.mxu0 0
    %1649 = vmatpush1.bf16.msra.mxu0 0
    %1650 = vmatprep.subr.bf16.mxu0 0
    %1651 = vmatpush1.bf16.msra.mxu0 0
    %1652 = vmatprep.mubr.bf16.mxu0 0
    %1653 = vmatmul.mubr.bf16.gmra.mrb[0].mxu0 %v1409
    %v1654 = vpop.f32.mrb[0].mxu0
    %v1655 = vadd.f32 %v1542, %v1654
    %v1656 = vpop.f32.mrb[0].mxu0
    %v1657 = vpop.f32.mrb[0].mxu0
    %v1658 = vadd.f32 %v1545, %v1657
    %v1659 = vpop.f32.mrb[0].mxu0
    %1660 = vmatprep.mubr.bf16.mxu0 0
    %1661 = vmatmul.mubr.bf16.gmra.mrb[0].mxu0 %v1410
    %v1662 = vpop.f32.mrb[0].mxu0
    %v1663 = vadd.f32 %v1550, %v1662
    %v1664 = vpop.f32.mrb[0].mxu0
    %v1665 = vpop.f32.mrb[0].mxu0
    %v1666 = vadd.f32 %v1553, %v1665
    %v1667 = vpop.f32.mrb[0].mxu0
    %1668 = vmatprep.mubr.bf16.mxu0 0
    %1669 = vmatmul.mubr.bf16.gmra.mrb[0].mxu0 %v1411
    %v1670 = vpop.f32.mrb[0].mxu0
    %v1671 = vadd.f32 %v1558, %v1670
    %v1672 = vpop.f32.mrb[0].mxu0
    %v1673 = vpop.f32.mrb[0].mxu0
    %v1674 = vadd.f32 %v1561, %v1673
    %v1675 = vpop.f32.mrb[0].mxu0
    %1676 = vmatprep.mubr.bf16.mxu0 0
    %1677 = vmatmul.mubr.bf16.gmra.mrb[0].mxu0 %v1412
    %v1678 = vpop.f32.mrb[0].mxu0
    %v1679 = vadd.f32 %v1566, %v1678
    %v1680 = vpop.f32.mrb[0].mxu0
    %v1681 = vpop.f32.mrb[0].mxu0
    %v1682 = vadd.f32 %v1569, %v1681
    %v1683 = vpop.f32.mrb[0].mxu0
    %1684 = vdwg.mxu0
    %v1685 = vld [vmem:[%s6] sm:$0x1]
    %v1687 = vlaneseq
    %v1688 = vshrl.u32 %v1687, 7
    %v1689 = vsub.s32 0, %v1688
    %v1690 = vrot.slane %v1685, %v1689
    %v1692 = vadd.f32 %v1655, %v1690
    %v1693 = vadd.f32 %v1658, %v1690
    %v1694 = vadd.f32 %v1663, %v1690
    %v1695 = vadd.f32 %v1666, %v1690
    %v1696 = vadd.f32 %v1671, %v1690
    %v1697 = vadd.f32 %v1674, %v1690
    %v1698 = vadd.f32 %v1679, %v1690
    %v1699 = vadd.f32 %v1682, %v1690
    %v1700 = vlaneseq
    %v1701 = vand.u32 %v1700, 127
    %vm1702 = vcmp.ge.s32.totalorder %v1701, 21
    %vm1703 = vcmp.lt.s32.totalorder %v1701, 41
    %vm1704 = vmand %vm1702, %vm1703
    %vm1705 = vcmp.ge.s32.totalorder %v1701, 81
    %vm1706 = vcmp.lt.s32.totalorder %v1701, 121
    %vm1707 = vmand %vm1705, %vm1706
    %v1708 = vsel %vm1704, %v1692, -1e+30
    %v1709 = vsel %vm1704, %v1693, -1e+30
    %v1710 = vsel %vm1704, %v1694, -1e+30
    %v1711 = vsel %vm1704, %v1695, -1e+30
    %v1712 = vsel %vm1704, %v1696, -1e+30
    %v1713 = vsel %vm1704, %v1697, -1e+30
    %v1714 = vsel %vm1704, %v1698, -1e+30
    %v1715 = vsel %vm1704, %v1699, -1e+30
    %1716 = vmax.xlane.f32.xlu0 %v1708
    %v1717 = vpop.xlane.xlu0 %1716
    %1718 = vmax.xlane.f32.xlu0 %v1709
    %v1719 = vpop.xlane.xlu0 %1718
    %1720 = vmax.xlane.f32.xlu0 %v1710
    %v1721 = vpop.xlane.xlu0 %1720
    %1722 = vmax.xlane.f32.xlu0 %v1711
    %v1723 = vpop.xlane.xlu0 %1722
    %1724 = vmax.xlane.f32.xlu0 %v1712
    %v1725 = vpop.xlane.xlu0 %1724
    %1726 = vmax.xlane.f32.xlu0 %v1713
    %v1727 = vpop.xlane.xlu0 %1726
    %1728 = vmax.xlane.f32.xlu0 %v1714
    %v1729 = vpop.xlane.xlu0 %1728
    %1730 = vmax.xlane.f32.xlu0 %v1715
    %v1731 = vpop.xlane.xlu0 %1730
    %v1732 = vsub.f32 %v1692, %v1717
    %v1733 = vsub.f32 %v1693, %v1719
    %v1734 = vsub.f32 %v1694, %v1721
    %v1735 = vsub.f32 %v1695, %v1723
    %v1736 = vsub.f32 %v1696, %v1725
    %v1737 = vsub.f32 %v1697, %v1727
    %v1738 = vsub.f32 %v1698, %v1729
    %v1739 = vsub.f32 %v1699, %v1731
    %v1740 = vsel %vm1707, %v1692, 0.0
    %v1741 = vsel %vm1707, %v1693, 0.0
    %v1742 = vsel %vm1707, %v1694, 0.0
    %v1743 = vsel %vm1707, %v1695, 0.0
    %v1744 = vsel %vm1707, %v1696, 0.0
    %v1745 = vsel %vm1707, %v1697, 0.0
    %v1746 = vsel %vm1707, %v1698, 0.0
    %v1747 = vsel %vm1707, %v1699, 0.0
    %v1748 = vsel %vm1704, %v1732, %v1740
    %v1749 = vsel %vm1704, %v1733, %v1741
    %v1750 = vsel %vm1704, %v1734, %v1742
    %v1751 = vsel %vm1704, %v1735, %v1743
    %v1752 = vsel %vm1704, %v1736, %v1744
    %v1753 = vsel %vm1704, %v1737, %v1745
    %v1754 = vsel %vm1704, %v1738, %v1746
    %v1755 = vsel %vm1704, %v1739, %v1747
    %v1756 = vmul.f32 %v1748, 1.442695
    %v1757 = vpow.pop %v1756
    %v1758 = vmul.f32 %v1749, 1.442695
    %v1759 = vpow.pop %v1758
    %v1760 = vmul.f32 %v1750, 1.442695
    %v1761 = vpow.pop %v1760
    %v1762 = vmul.f32 %v1751, 1.442695
    %v1763 = vpow.pop %v1762
    %v1764 = vmul.f32 %v1752, 1.442695
    %v1765 = vpow.pop %v1764
    %v1766 = vmul.f32 %v1753, 1.442695
    %v1767 = vpow.pop %v1766
    %v1768 = vmul.f32 %v1754, 1.442695
    %v1769 = vpow.pop %v1768
    %v1770 = vmul.f32 %v1755, 1.442695
    %v1771 = vpow.pop %v1770
    %v1772 = vsel %vm1704, %v1757, 0.0
    %v1773 = vsel %vm1704, %v1759, 0.0
    %v1774 = vsel %vm1704, %v1761, 0.0
    %v1775 = vsel %vm1704, %v1763, 0.0
    %v1776 = vsel %vm1704, %v1765, 0.0
    %v1777 = vsel %vm1704, %v1767, 0.0
    %v1778 = vsel %vm1704, %v1769, 0.0
    %v1779 = vsel %vm1704, %v1771, 0.0
    %1780 = vadd.xlane.f32.xlu0 %v1772
    %v1781 = vpop.xlane.xlu0 %1780
    %1782 = vadd.xlane.f32.xlu0 %v1773
    %v1783 = vpop.xlane.xlu0 %1782
    %1784 = vadd.xlane.f32.xlu0 %v1774
    %v1785 = vpop.xlane.xlu0 %1784
    %1786 = vadd.xlane.f32.xlu0 %v1775
    %v1787 = vpop.xlane.xlu0 %1786
    %1788 = vadd.xlane.f32.xlu0 %v1776
    %v1789 = vpop.xlane.xlu0 %1788
    %1790 = vadd.xlane.f32.xlu0 %v1777
    %v1791 = vpop.xlane.xlu0 %1790
    %1792 = vadd.xlane.f32.xlu0 %v1778
    %v1793 = vpop.xlane.xlu0 %1792
    %1794 = vadd.xlane.f32.xlu0 %v1779
    %v1795 = vpop.xlane.xlu0 %1794
    %v1796 = vrcp.pop %v1781
    %v1797 = vrcp.pop %v1783
    %v1798 = vrcp.pop %v1785
    %v1799 = vrcp.pop %v1787
    %v1800 = vrcp.pop %v1789
    %v1801 = vrcp.pop %v1791
    %v1802 = vrcp.pop %v1793
    %v1803 = vrcp.pop %v1795
    %vm1804 = vcmp.lt.s32.totalorder %v1701, 1
    %v1805 = vxor.u32 %v1692, 2147483648
    %v1806 = vxor.u32 %v1693, 2147483648
    %v1807 = vxor.u32 %v1694, 2147483648
    %v1808 = vxor.u32 %v1695, 2147483648
    %v1809 = vxor.u32 %v1696, 2147483648
    %v1810 = vxor.u32 %v1697, 2147483648
    %v1811 = vxor.u32 %v1698, 2147483648
    %v1812 = vxor.u32 %v1699, 2147483648
    %v1813 = vmul.f32 %v1805, 1.442695
    %v1814 = vpow.pop %v1813
    %v1815 = vmul.f32 %v1806, 1.442695
    %v1816 = vpow.pop %v1815
    %v1817 = vmul.f32 %v1807, 1.442695
    %v1818 = vpow.pop %v1817
    %v1819 = vmul.f32 %v1808, 1.442695
    %v1820 = vpow.pop %v1819
    %v1821 = vmul.f32 %v1809, 1.442695
    %v1822 = vpow.pop %v1821
    %v1823 = vmul.f32 %v1810, 1.442695
    %v1824 = vpow.pop %v1823
    %v1825 = vmul.f32 %v1811, 1.442695
    %v1826 = vpow.pop %v1825
    %v1827 = vmul.f32 %v1812, 1.442695
    %v1828 = vpow.pop %v1827
    %v1829 = vadd.f32 %v1814, 1.0
    %v1830 = vadd.f32 %v1816, 1.0
    %v1831 = vadd.f32 %v1818, 1.0
    %v1832 = vadd.f32 %v1820, 1.0
    %v1833 = vadd.f32 %v1822, 1.0
    %v1834 = vadd.f32 %v1824, 1.0
    %v1835 = vadd.f32 %v1826, 1.0
    %v1836 = vadd.f32 %v1828, 1.0
    %v1837 = vrcp.pop %v1829
    %v1838 = vmul.f32 1.0, %v1837
    %v1839 = vrcp.pop %v1830
    %v1840 = vmul.f32 1.0, %v1839
    %v1841 = vrcp.pop %v1831
    %v1842 = vmul.f32 1.0, %v1841
    %v1843 = vrcp.pop %v1832
    %v1844 = vmul.f32 1.0, %v1843
    %v1845 = vrcp.pop %v1833
    %v1846 = vmul.f32 1.0, %v1845
    %v1847 = vrcp.pop %v1834
    %v1848 = vmul.f32 1.0, %v1847
    %v1849 = vrcp.pop %v1835
    %v1850 = vmul.f32 1.0, %v1849
    %v1851 = vrcp.pop %v1836
    %v1852 = vmul.f32 1.0, %v1851
    %vm1853 = vcmp.lt.s32.totalorder %v1701, 21
    %v1854 = vtanh.pop %v1692
    %v1855 = vtanh.pop %v1693
    %v1856 = vtanh.pop %v1694
    %v1857 = vtanh.pop %v1695
    %v1858 = vtanh.pop %v1696
    %v1859 = vtanh.pop %v1697
    %v1860 = vtanh.pop %v1698
    %v1861 = vtanh.pop %v1699
    %v1862 = vmul.f32 %v1757, %v1796
    %v1863 = vmul.f32 %v1759, %v1797
    %v1864 = vmul.f32 %v1761, %v1798
    %v1865 = vmul.f32 %v1763, %v1799
    %v1866 = vmul.f32 %v1765, %v1800
    %v1867 = vmul.f32 %v1767, %v1801
    %v1868 = vmul.f32 %v1769, %v1802
    %v1869 = vmul.f32 %v1771, %v1803
    %vm1870 = vcmp.lt.s32.totalorder %v1701, 81
    %v1871 = vsel %vm1707, %v1757, 0.0
    %v1872 = vsel %vm1707, %v1759, 0.0
    %v1873 = vsel %vm1707, %v1761, 0.0
    %v1874 = vsel %vm1707, %v1763, 0.0
    %v1875 = vsel %vm1707, %v1765, 0.0
    %v1876 = vsel %vm1707, %v1767, 0.0
    %v1877 = vsel %vm1707, %v1769, 0.0
    %v1878 = vsel %vm1707, %v1771, 0.0
    %v1879 = vsel %vm1870, %v1692, %v1871
    %v1880 = vsel %vm1870, %v1693, %v1872
    %v1881 = vsel %vm1870, %v1694, %v1873
    %v1882 = vsel %vm1870, %v1695, %v1874
    %v1883 = vsel %vm1870, %v1696, %v1875
    %v1884 = vsel %vm1870, %v1697, %v1876
    %v1885 = vsel %vm1870, %v1698, %v1877
    %v1886 = vsel %vm1870, %v1699, %v1878
    %v1887 = vsel %vm1704, %v1862, %v1879
    %v1888 = vsel %vm1704, %v1863, %v1880
    %v1889 = vsel %vm1704, %v1864, %v1881
    %v1890 = vsel %vm1704, %v1865, %v1882
    %v1891 = vsel %vm1704, %v1866, %v1883
    %v1892 = vsel %vm1704, %v1867, %v1884
    %v1893 = vsel %vm1704, %v1868, %v1885
    %v1894 = vsel %vm1704, %v1869, %v1886
    %v1895 = vsel %vm1853, %v1854, %v1887
    %v1896 = vsel %vm1853, %v1855, %v1888
    %v1897 = vsel %vm1853, %v1856, %v1889
    %v1898 = vsel %vm1853, %v1857, %v1890
    %v1899 = vsel %vm1853, %v1858, %v1891
    %v1900 = vsel %vm1853, %v1859, %v1892
    %v1901 = vsel %vm1853, %v1860, %v1893
    %v1902 = vsel %vm1853, %v1861, %v1894
    %v1903 = vsel %vm1804, %v1838, %v1895
    %v1904 = vsel %vm1804, %v1840, %v1896
    %v1905 = vsel %vm1804, %v1842, %v1897
    %v1906 = vsel %vm1804, %v1844, %v1898
    %v1907 = vsel %vm1804, %v1846, %v1899
    %v1908 = vsel %vm1804, %v1848, %v1900
    %v1909 = vsel %vm1804, %v1850, %v1901
    %v1910 = vsel %vm1804, %v1852, %v1902
    %1911 = vst [vmem:[#allocation9] sm:$0xff] %v1903
    %1912 = vst [vmem:[#allocation9 + $0x8] sm:$0xff] %v1904
    %1913 = vst [vmem:[#allocation9 + $0x10] sm:$0xff] %v1905
    %1914 = vst [vmem:[#allocation9 + $0x18] sm:$0xff] %v1906
    %1915 = vst [vmem:[#allocation9 + $0x20] sm:$0xff] %v1907
    %1916 = vst [vmem:[#allocation9 + $0x28] sm:$0xff] %v1908
    %1917 = vst [vmem:[#allocation9 + $0x30] sm:$0xff] %v1909
    %1918 = vst [vmem:[#allocation9 + $0x38] sm:$0xff] %v1910
    %v1919 = vld [vmem:[#allocation4] sm:$0xff]
    %v1920 = vld [vmem:[#allocation4 + $0x8] sm:$0xff]
    %1921 = vst [vmem:[#allocation10] sm:$0xff] %v1919
    %1922 = vst [vmem:[#allocation10 + $0x8] sm:$0xff] %v1920
    %v1923 = vld [vmem:[#allocation5] sm:$0xff]
    %v1924 = vld [vmem:[#allocation5 + $0x8] sm:$0xff]
    %1925 = vst [vmem:[#allocation12] sm:$0xff] %v1923
    %1926 = vst [vmem:[#allocation12 + $0x8] sm:$0xff] %v1924
    // Predicated region
    $region45: #{tpu_custom_call.1} parent=1 // pred_check
      _
    $region46: #{tpu_custom_call.1} parent=1 // pred_check_branch
      %1928 = sbr.rel (0) target = $region48
    $region47: #{tpu_custom_call.1} parent=1 // pred_region
      %s1930 = ssub.s32 1024, 1024
      %1931 = vsyncadd [#allocation8], %s1930
      %s1932 = sshll.u32 [#allocation9], 4
      %s1933 = int_to_ptr.vmem [resolvable:$true] %s1932
      %1938 = dma.vmem_to_hbm [thread:$0]  %s1933, 1024, %s7, [#allocation8], 128, 128, 8
    $region48: #{tpu_custom_call.1} parent=1 // pred_fallthru
      _
    // Predicated region
    $region49: #{tpu_custom_call.1} parent=1 // pred_check
      _
    $region50: #{tpu_custom_call.1} parent=1 // pred_check_branch
      %1940 = sbr.rel (0) target = $region52
    $region51: #{tpu_custom_call.1} parent=1 // pred_region
      %s1942 = ssub.s32 256, 256
      %1943 = vsyncadd [#allocation11], %s1942
      %s1944 = sshll.u32 [#allocation10], 4
      %s1945 = int_to_ptr.vmem [resolvable:$true] %s1944
      %1950 = dma.vmem_to_hbm [thread:$0]  %s1945, 256, %s8, [#allocation11], 128, 128, 8
    $region52: #{tpu_custom_call.1} parent=1 // pred_fallthru
      _
    // Predicated region
    $region53: #{tpu_custom_call.1} parent=1 // pred_check
      _
    $region54: #{tpu_custom_call.1} parent=1 // pred_check_branch
      %1952 = sbr.rel (0) target = $region56
    $region55: #{tpu_custom_call.1} parent=1 // pred_region
      %s1954 = ssub.s32 256, 256
      %1955 = vsyncadd [#allocation11], %s1954
      %s1956 = sshll.u32 [#allocation12], 4
      %s1957 = int_to_ptr.vmem [resolvable:$true] %s1956
      %1962 = dma.vmem_to_hbm [thread:$0]  %s1957, 256, %s9, [#allocation11], 128, 128, 8
    $region56: #{tpu_custom_call.1} parent=1 // pred_fallthru
      _
    // Predicated region
    $region57: #{tpu_custom_call.1} parent=1 // pred_check
      _
    $region58: #{tpu_custom_call.1} parent=1 // pred_check_branch
      %1964 = sbr.rel (0) target = $region60
    $region59: #{tpu_custom_call.1} parent=1 // pred_region
      %1965 = dma.done [#allocation8], 1024
    $region60: #{tpu_custom_call.1} parent=1 // pred_fallthru
      _
    // Predicated region
    $region61: #{tpu_custom_call.1} parent=1 // pred_check
      _
    $region62: #{tpu_custom_call.1} parent=1 // pred_check_branch
      %1967 = sbr.rel (0) target = $region64
    $region63: #{tpu_custom_call.1} parent=1 // pred_region
      %1968 = dma.done [#allocation11], 256
    $region64: #{tpu_custom_call.1} parent=1 // pred_fallthru
      _
    // Predicated region
    $region65: #{tpu_custom_call.1} parent=1 // pred_check
      _
    $region66: #{tpu_custom_call.1} parent=1 // pred_check_branch
      %1970 = sbr.rel (0) target = $region68
    $region67: #{tpu_custom_call.1} parent=1 // pred_region
      %1971 = dma.done [#allocation11], 256
    $region68: #{tpu_custom_call.1} parent=1 // pred_fallthru
      _
    %1972 = vsyncpa [#allocation7], 1
    %1973 = vsyncpa [#allocation8], 1
    %1974 = vsyncpa [#allocation11], 1

</llo_original>
